<compile_context>
chip_gen: v7x
topology: tpu7x:2x2x1
jax: 0.10.0
libtpu: 0.0.40
codegen_flags: <defaults>
</compile_context>

<pallas_src>
import numpy as np
import jax
import jax.numpy as jnp
from jax import lax
from jax.experimental import pallas as pl
from jax.experimental.pallas import tpu as pltpu

# Small, module-consistent test configuration (original uses IMAGE_SIZE=(128,128)).
IMAGE_SIZE = (16, 16)
BATCH = 2
C_IN, C1, C2 = 3, 16, 32
HIDDEN, N_CLASSES = 64, 2
H, W = IMAGE_SIZE
H2, W2 = H // 2, W // 2            # after pool1
H4, W4 = H // 4, W // 4            # after pool2
FLAT = C2 * H4 * W4
LANE = 128
K1, K1P = 9 * C_IN, 32             # conv1 im2col K, padded to 32
N1 = BATCH * H2 * W2               # conv1 pooled positions (rows of a1)
N2 = BATCH * H4 * W4               # conv2 pooled positions (rows of a2)


# ------------------------------- fused kernel --------------------------------

def fused_forward_kernel(cols1_ref, w1_ref, b1_ref, gg_ref, w2_ref, b2_ref,
                         wf1_ref, bf1_ref, wf2_ref, bf2_ref, out_ref):
    f32 = jnp.float32

    # conv1: one MXU matmul over all 4 pool offsets at once, then maxpool =
    # elementwise max over the 4 contiguous row groups, then bias + ReLU
    # (valid reordering: bias shared per window, ReLU monotone).
    n1 = cols1_ref.shape[0] // 4
    y1 = jnp.dot(cols1_ref[...], w1_ref[...], preferred_element_type=f32)
    p1 = jnp.maximum(jnp.maximum(y1[0 * n1:1 * n1], y1[1 * n1:2 * n1]),
                     jnp.maximum(y1[2 * n1:3 * n1], y1[3 * n1:4 * n1]))
    a1 = jnp.maximum(p1 + b1_ref[...], 0.0).astype(jnp.bfloat16)      # (N1, C1)

    # conv2: 3x3 patches gathered from the VMEM-resident a1 with 0/1 matmuls
    # (one gather matrix per kernel offset; zero rows = SAME zero padding),
    # accumulated against the per-offset weight slices.  Output rows are
    # ordered [pool_offset, h4, w4, b] so the pool is again a row-group max.
    c2 = w2_ref.shape[2]
    y2 = jnp.zeros((gg_ref.shape[1], c2), f32)
    for k in range(9):
        patch = jnp.dot(gg_ref[k], a1, preferred_element_type=f32)    # exact copy
        y2 = y2 + jnp.dot(patch.astype(jnp.bfloat16), w2_ref[k],
                          preferred_element_type=f32)
    n2 = gg_ref.shape[1] // 4
    p2 = jnp.maximum(jnp.maximum(y2[0 * n2:1 * n2], y2[1 * n2:2 * n2]),
                     jnp.maximum(y2[2 * n2:3 * n2], y2[3 * n2:4 * n2]))
    a2 = jnp.maximum(p2 + b2_ref[...], 0.0).astype(jnp.bfloat16)      # (N2, C2)

    # fc1 with the NHWC flatten folded in: a2 rows are ordered (h4, w4, b), so
    # each spatial position is a contiguous BATCH-row slice; wf1 rows were
    # pre-permuted to (h4, w4, c).  16 tiny matmuls accumulate hidden in f32.
    bsz = out_ref.shape[0]
    hidden = jnp.zeros((bsz, wf1_ref.shape[1]), f32)
    for j in range(n2 // bsz):
        hidden = hidden + jnp.dot(a2[j * bsz:(j + 1) * bsz, :],
                                  wf1_ref[j * c2:(j + 1) * c2, :],
                                  preferred_element_type=f32)
    h = jnp.maximum(hidden + bf1_ref[...], 0.0).astype(jnp.bfloat16)

    # fc2 (HIDDEN and classes padded to 128 lanes -> dense output store).
    out_ref[...] = (jnp.dot(h, wf2_ref[...], preferred_element_type=f32)
                    + bf2_ref[...])


# ------------------------------- host helpers --------------------------------

def build_cols1(x_nhwc):
    """conv1 3x3/pad=1 im2col rows in bf16, rows ordered
    [pool_offset (ph,pw), b, h2, w2]; contraction dim padded 27 -> 32.
    # TODO(synk): for the real IMAGE_SIZE=(128,128) generate these patches
    # in-kernel from a padded NHWC tile and tile the layers over a grid instead
    # of this host-side 9x im2col expansion (fine at the small test size).
    """
    b, h, w, c = x_nhwc.shape
    xp = jnp.pad(x_nhwc, ((0, 0), (1, 1), (1, 1), (0, 0)))
    patches = jnp.concatenate(
        [xp[:, dh:dh + h, dw:dw + w, :] for dh in range(3) for dw in range(3)],
        axis=-1)                                                # (B, H, W, 9C)
    groups = jnp.stack(
        [patches[:, ph::2, pw::2, :] for ph in range(2) for pw in range(2)],
        axis=0)                                                 # (4, B, H2, W2, 9C)
    cols = groups.reshape(4 * b * (h // 2) * (w // 2), 9 * c)
    cols = jnp.pad(cols, ((0, 0), (0, K1P - 9 * c)))
    return cols.astype(jnp.bfloat16)


def build_conv2_gathers():
    """0/1 gather matrices (one per 3x3 offset) that pull, for every conv2
    output row [pool_offset, h4, w4, b], the matching conv1 pooled activation
    row out of a1; all-zero rows implement the SAME-conv zero padding."""
    gg = np.zeros((9, 4 * N2, N1), np.float32)
    for k in range(9):
        dh, dw = divmod(k, 3)
        for g in range(4):
            ph, pw = divmod(g, 2)
            for b in range(BATCH):
                for ho in range(H4):
                    for wo in range(W4):
                        r = g * N2 + (ho * W4 + wo) * BATCH + b
                        hs = 2 * ho + ph + dh - 1
                        ws = 2 * wo + pw + dw - 1
                        if 0 <= hs < H2 and 0 <= ws < W2:
                            gg[k, r, (b * H2 + hs) * W2 + ws] = 1.0
    return jnp.asarray(gg, dtype=jnp.bfloat16)


# ------------------------------- forward -------------------------------------

@jax.jit
def anemianet_forward(x_nchw, fp):
    x = jnp.transpose(x_nchw, (0, 2, 3, 1))                    # NCHW -> NHWC
    cols1 = build_cols1(x)

    def full(shape):
        return pl.BlockSpec(shape, lambda i, _s=len(shape): (0,) * _s)

    logits = pl.pallas_call(
        fused_forward_kernel,
        out_shape=jax.ShapeDtypeStruct((BATCH, LANE), jnp.float32),
        grid=(1,),
        in_specs=[
            full((4 * N1, K1P)),        # conv1 im2col rows
            full((K1P, C1)),            # w_conv1
            full((1, C1)),              # b_conv1
            full((9, 4 * N2, N1)),      # conv2 gather matrices
            full((9, C1, C2)),          # w_conv2 (per 3x3 offset)
            full((1, C2)),              # b_conv2
            full((FLAT, LANE)),         # w_fc1 (rows (h4,w4,c), lanes padded)
            full((1, LANE)),            # b_fc1
            full((LANE, LANE)),         # w_fc2 (padded)
            full((1, LANE)),            # b_fc2 (padded)
        ],
        out_specs=full((BATCH, LANE)),
        compiler_params=pltpu.CompilerParams(
            dimension_semantics=("arbitrary",)),
    )(cols1, fp["w_conv1"], fp["b_conv1"], fp["gg"], fp["w_conv2"],
      fp["b_conv2"], fp["w_fc1"], fp["b_fc1"], fp["w_fc2"], fp["b_fc2"])
    return logits[:, :N_CLASSES]


def prepare_params(p):
    """One-time weight layout prep: conv weights to (offset, Cin, Cout) slices,
    fc1 rows permuted from NCHW-flatten to (h4, w4, c) order and padded to 128
    output lanes, fc2 padded to (128, 128); matmul operands bf16, biases f32."""
    w1 = jnp.transpose(p["w_conv1"], (2, 3, 1, 0)).reshape(K1, C1)
    w1 = jnp.pad(w1, ((0, K1P - K1), (0, 0)))
    w2 = jnp.transpose(p["w_conv2"], (2, 3, 1, 0)).reshape(9, C1, C2)
    wf1 = jnp.transpose(p["w_fc1"].reshape(HIDDEN, C2, H4, W4),
                        (2, 3, 1, 0)).reshape(FLAT, HIDDEN)
    wf1 = jnp.pad(wf1, ((0, 0), (0, LANE - HIDDEN)))
    wf2 = jnp.pad(p["w_fc2"].T, ((0, LANE - HIDDEN), (0, LANE - N_CLASSES)))
    return {
        "w_conv1": w1.astype(jnp.bfloat16),
        "b_conv1": p["b_conv1"].reshape(1, C1).astype(jnp.float32),
        "gg": build_conv2_gathers(),
        "w_conv2": w2.astype(jnp.bfloat16),
        "b_conv2": p["b_conv2"].reshape(1, C2).astype(jnp.float32),
        "w_fc1": wf1.astype(jnp.bfloat16),
        "b_fc1": jnp.pad(p["b_fc1"], (0, LANE - HIDDEN))
                    .reshape(1, LANE).astype(jnp.float32),
        "w_fc2": wf2.astype(jnp.bfloat16),
        "b_fc2": jnp.pad(p["b_fc2"], (0, LANE - N_CLASSES))
                    .reshape(1, LANE).astype(jnp.float32),
    }


# ------------------------------ reference (pure JAX, f32) ---------------------

def reference_forward(x_nchw, params):
    dn = ("NCHW", "OIHW", "NCHW")
    y = lax.conv_general_dilated(x_nchw, params["w_conv1"], (1, 1), "SAME",
                                 dimension_numbers=dn)
    y = jnp.maximum(y + params["b_conv1"][None, :, None, None], 0.0)
    y = lax.reduce_window(y, -jnp.inf, lax.max, (1, 1, 2, 2), (1, 1, 2, 2), "VALID")
    y = lax.conv_general_dilated(y, params["w_conv2"], (1, 1), "SAME",
                                 dimension_numbers=dn)
    y = jnp.maximum(y + params["b_conv2"][None, :, None, None], 0.0)
    y = lax.reduce_window(y, -jnp.inf, lax.max, (1, 1, 2, 2), (1, 1, 2, 2), "VALID")
    y = y.reshape(y.shape[0], -1)
    y = jnp.maximum(y @ params["w_fc1"].T + params["b_fc1"], 0.0)
    return y @ params["w_fc2"].T + params["b_fc2"]


# ---------------------------------- main --------------------------------------

def init_params():
    keys = jax.random.split(jax.random.PRNGKey(0), 8)
    f32 = jnp.float32
    return {
        "w_conv1": 0.1 * jax.random.normal(keys[0], (C1, C_IN, 3, 3), f32),
        "b_conv1": 0.1 * jax.random.normal(keys[1], (C1,), f32),
        "w_conv2": 0.1 * jax.random.normal(keys[2], (C2, C1, 3, 3), f32),
        "b_conv2": 0.1 * jax.random.normal(keys[3], (C2,), f32),
        "w_fc1": 0.05 * jax.random.normal(keys[4], (HIDDEN, FLAT), f32),
        "b_fc1": 0.05 * jax.random.normal(keys[5], (HIDDEN,), f32),
        "w_fc2": 0.05 * jax.random.normal(keys[6], (N_CLASSES, HIDDEN), f32),
        "b_fc2": 0.05 * jax.random.normal(keys[7], (N_CLASSES,), f32),
    }


if __name__ == "__main__":
    params = init_params()
    fast_params = prepare_params(params)
    x = jax.random.normal(
        jax.random.PRNGKey(0), (BATCH, C_IN, IMAGE_SIZE[0], IMAGE_SIZE[1]),
        jnp.float32)

    out = jax.block_until_ready(anemianet_forward(x, fast_params))
    ref = jax.block_until_ready(reference_forward(x, params))

    assert out.shape == (BATCH, N_CLASSES), out.shape
    # bf16 matmul operands (f32 accumulation / epilogues) vs. the f32 reference.
    assert jnp.allclose(out, ref, rtol=5e-2, atol=3e-2), (out, ref)

    print("KERNEL_OK")
</pallas_src>

<mosaic_0001>
module attributes {stable_mosaic.version = 11 : i64} {
  func.func @fused_forward_kernel(%arg0: i32, %arg1: memref<512x32xbf16, #tpu.memory_space<vmem>>, %arg2: memref<32x16xbf16, #tpu.memory_space<vmem>>, %arg3: memref<1x16xf32, #tpu.memory_space<vmem>>, %arg4: memref<9x128x128xbf16, #tpu.memory_space<vmem>>, %arg5: memref<9x16x32xbf16, #tpu.memory_space<vmem>>, %arg6: memref<1x32xf32, #tpu.memory_space<vmem>>, %arg7: memref<512x128xbf16, #tpu.memory_space<vmem>>, %arg8: memref<1x128xf32, #tpu.memory_space<vmem>>, %arg9: memref<128x128xbf16, #tpu.memory_space<vmem>>, %arg10: memref<1x128xf32, #tpu.memory_space<vmem>>, %arg11: memref<2x128xf32, #tpu.memory_space<vmem>>) attributes {dimension_semantics = [#tpu.dimension_semantics<arbitrary>], iteration_bounds = array<i64: 1>, scalar_prefetch = 0 : i64, scratch_operands = 0 : i64, tpu.core_type = #tpu.core_type<tc>, window_params = [{pipeline_mode = #tpu.pipeline_mode<synchronous>, transform_indices = @transform_0, window_bounds = array<i64: 512, 32>}, {pipeline_mode = #tpu.pipeline_mode<synchronous>, transform_indices = @transform_1, window_bounds = array<i64: 32, 16>}, {pipeline_mode = #tpu.pipeline_mode<synchronous>, transform_indices = @transform_2, window_bounds = array<i64: 1, 16>}, {pipeline_mode = #tpu.pipeline_mode<synchronous>, transform_indices = @transform_3, window_bounds = array<i64: 9, 128, 128>}, {pipeline_mode = #tpu.pipeline_mode<synchronous>, transform_indices = @transform_4, window_bounds = array<i64: 9, 16, 32>}, {pipeline_mode = #tpu.pipeline_mode<synchronous>, transform_indices = @transform_5, window_bounds = array<i64: 1, 32>}, {pipeline_mode = #tpu.pipeline_mode<synchronous>, transform_indices = @transform_6, window_bounds = array<i64: 512, 128>}, {pipeline_mode = #tpu.pipeline_mode<synchronous>, transform_indices = @transform_7, window_bounds = array<i64: 1, 128>}, {pipeline_mode = #tpu.pipeline_mode<synchronous>, transform_indices = @transform_8, window_bounds = array<i64: 128, 128>}, {pipeline_mode = #tpu.pipeline_mode<synchronous>, transform_indices = @transform_9, window_bounds = array<i64: 1, 128>}, {pipeline_mode = #tpu.pipeline_mode<synchronous>, transform_indices = @transform_10, window_bounds = array<i64: 2, 128>}]} {
    %c0 = arith.constant 0 : index
    %c0_0 = arith.constant 0 : index
    %0 = vector.load %arg1[%c0, %c0_0] : memref<512x32xbf16, #tpu.memory_space<vmem>>, vector<512x32xbf16>
    %c0_1 = arith.constant 0 : index
    %c0_2 = arith.constant 0 : index
    %1 = vector.load %arg2[%c0_1, %c0_2] : memref<32x16xbf16, #tpu.memory_space<vmem>>, vector<32x16xbf16>
    %cst = arith.constant dense<0.000000e+00> : vector<512x16xf32>
    %2 = tpu.matmul %0, %1, %cst {dimension_numbers = #tpu.dot_dimension_numbers<[1], [0], [0], [1], [0, 0, 1, 1], [], []>} : vector<512x32xbf16>, vector<32x16xbf16>, vector<512x16xf32> -> vector<512x16xf32>
    %3 = vector.extract_strided_slice %2 {offsets = [0, 0], sizes = [128, 16], strides = [1, 1]} : vector<512x16xf32> to vector<128x16xf32>
    %4 = vector.extract_strided_slice %2 {offsets = [128, 0], sizes = [128, 16], strides = [1, 1]} : vector<512x16xf32> to vector<128x16xf32>
    %5 = arith.maximumf %3, %4 : vector<128x16xf32>
    %6 = vector.extract_strided_slice %2 {offsets = [256, 0], sizes = [128, 16], strides = [1, 1]} : vector<512x16xf32> to vector<128x16xf32>
    %7 = vector.extract_strided_slice %2 {offsets = [384, 0], sizes = [128, 16], strides = [1, 1]} : vector<512x16xf32> to vector<128x16xf32>
    %8 = arith.maximumf %6, %7 : vector<128x16xf32>
    %9 = arith.maximumf %5, %8 : vector<128x16xf32>
    %c0_3 = arith.constant 0 : index
    %c0_4 = arith.constant 0 : index
    %10 = vector.load %arg3[%c0_3, %c0_4] : memref<1x16xf32, #tpu.memory_space<vmem>>, vector<1x16xf32>
    %11 = vector.broadcast %10 : vector<1x16xf32> to vector<128x16xf32>
    %12 = arith.addf %9, %11 : vector<128x16xf32>
    %cst_5 = arith.constant 0.000000e+00 : f32
    %13 = vector.broadcast %cst_5 : f32 to vector<128x16xf32>
    %14 = arith.maximumf %12, %13 : vector<128x16xf32>
    %15 = arith.truncf %14 : vector<128x16xf32> to vector<128x16xbf16>
    %cst_6 = arith.constant 0.000000e+00 : f32
    %16 = vector.broadcast %cst_6 : f32 to vector<128x32xf32>
    %c0_7 = arith.constant 0 : index
    %c0_8 = arith.constant 0 : index
    %c0_9 = arith.constant 0 : index
    %17 = vector.load %arg4[%c0_7, %c0_8, %c0_9] : memref<9x128x128xbf16, #tpu.memory_space<vmem>>, vector<1x128x128xbf16>
    %18 = vector.shape_cast %17 : vector<1x128x128xbf16> to vector<128x128xbf16>
    %cst_10 = arith.constant dense<0.000000e+00> : vector<128x16xf32>
    %19 = tpu.matmul %18, %15, %cst_10 {dimension_numbers = #tpu.dot_dimension_numbers<[1], [0], [0], [1], [0, 0, 1, 1], [], []>} : vector<128x128xbf16>, vector<128x16xbf16>, vector<128x16xf32> -> vector<128x16xf32>
    %20 = arith.truncf %19 : vector<128x16xf32> to vector<128x16xbf16>
    %c0_11 = arith.constant 0 : index
    %c0_12 = arith.constant 0 : index
    %c0_13 = arith.constant 0 : index
    %21 = vector.load %arg5[%c0_11, %c0_12, %c0_13] : memref<9x16x32xbf16, #tpu.memory_space<vmem>>, vector<1x16x32xbf16>
    %22 = vector.shape_cast %21 : vector<1x16x32xbf16> to vector<16x32xbf16>
    %cst_14 = arith.constant dense<0.000000e+00> : vector<128x32xf32>
    %23 = tpu.matmul %20, %22, %cst_14 {dimension_numbers = #tpu.dot_dimension_numbers<[1], [0], [0], [1], [0, 0, 1, 1], [], []>} : vector<128x16xbf16>, vector<16x32xbf16>, vector<128x32xf32> -> vector<128x32xf32>
    %24 = arith.addf %16, %23 : vector<128x32xf32>
    %c1 = arith.constant 1 : index
    %c0_15 = arith.constant 0 : index
    %c0_16 = arith.constant 0 : index
    %25 = vector.load %arg4[%c1, %c0_15, %c0_16] : memref<9x128x128xbf16, #tpu.memory_space<vmem>>, vector<1x128x128xbf16>
    %26 = vector.shape_cast %25 : vector<1x128x128xbf16> to vector<128x128xbf16>
    %cst_17 = arith.constant dense<0.000000e+00> : vector<128x16xf32>
    %27 = tpu.matmul %26, %15, %cst_17 {dimension_numbers = #tpu.dot_dimension_numbers<[1], [0], [0], [1], [0, 0, 1, 1], [], []>} : vector<128x128xbf16>, vector<128x16xbf16>, vector<128x16xf32> -> vector<128x16xf32>
    %28 = arith.truncf %27 : vector<128x16xf32> to vector<128x16xbf16>
    %c1_18 = arith.constant 1 : index
    %c0_19 = arith.constant 0 : index
    %c0_20 = arith.constant 0 : index
    %29 = vector.load %arg5[%c1_18, %c0_19, %c0_20] : memref<9x16x32xbf16, #tpu.memory_space<vmem>>, vector<1x16x32xbf16>
    %30 = vector.shape_cast %29 : vector<1x16x32xbf16> to vector<16x32xbf16>
    %cst_21 = arith.constant dense<0.000000e+00> : vector<128x32xf32>
    %31 = tpu.matmul %28, %30, %cst_21 {dimension_numbers = #tpu.dot_dimension_numbers<[1], [0], [0], [1], [0, 0, 1, 1], [], []>} : vector<128x16xbf16>, vector<16x32xbf16>, vector<128x32xf32> -> vector<128x32xf32>
    %32 = arith.addf %24, %31 : vector<128x32xf32>
    %c2 = arith.constant 2 : index
    %c0_22 = arith.constant 0 : index
    %c0_23 = arith.constant 0 : index
    %33 = vector.load %arg4[%c2, %c0_22, %c0_23] : memref<9x128x128xbf16, #tpu.memory_space<vmem>>, vector<1x128x128xbf16>
    %34 = vector.shape_cast %33 : vector<1x128x128xbf16> to vector<128x128xbf16>
    %cst_24 = arith.constant dense<0.000000e+00> : vector<128x16xf32>
    %35 = tpu.matmul %34, %15, %cst_24 {dimension_numbers = #tpu.dot_dimension_numbers<[1], [0], [0], [1], [0, 0, 1, 1], [], []>} : vector<128x128xbf16>, vector<128x16xbf16>, vector<128x16xf32> -> vector<128x16xf32>
    %36 = arith.truncf %35 : vector<128x16xf32> to vector<128x16xbf16>
    %c2_25 = arith.constant 2 : index
    %c0_26 = arith.constant 0 : index
    %c0_27 = arith.constant 0 : index
    %37 = vector.load %arg5[%c2_25, %c0_26, %c0_27] : memref<9x16x32xbf16, #tpu.memory_space<vmem>>, vector<1x16x32xbf16>
    %38 = vector.shape_cast %37 : vector<1x16x32xbf16> to vector<16x32xbf16>
    %cst_28 = arith.constant dense<0.000000e+00> : vector<128x32xf32>
    %39 = tpu.matmul %36, %38, %cst_28 {dimension_numbers = #tpu.dot_dimension_numbers<[1], [0], [0], [1], [0, 0, 1, 1], [], []>} : vector<128x16xbf16>, vector<16x32xbf16>, vector<128x32xf32> -> vector<128x32xf32>
    %40 = arith.addf %32, %39 : vector<128x32xf32>
    %c3 = arith.constant 3 : index
    %c0_29 = arith.constant 0 : index
    %c0_30 = arith.constant 0 : index
    %41 = vector.load %arg4[%c3, %c0_29, %c0_30] : memref<9x128x128xbf16, #tpu.memory_space<vmem>>, vector<1x128x128xbf16>
    %42 = vector.shape_cast %41 : vector<1x128x128xbf16> to vector<128x128xbf16>
    %cst_31 = arith.constant dense<0.000000e+00> : vector<128x16xf32>
    %43 = tpu.matmul %42, %15, %cst_31 {dimension_numbers = #tpu.dot_dimension_numbers<[1], [0], [0], [1], [0, 0, 1, 1], [], []>} : vector<128x128xbf16>, vector<128x16xbf16>, vector<128x16xf32> -> vector<128x16xf32>
    %44 = arith.truncf %43 : vector<128x16xf32> to vector<128x16xbf16>
    %c3_32 = arith.constant 3 : index
    %c0_33 = arith.constant 0 : index
    %c0_34 = arith.constant 0 : index
    %45 = vector.load %arg5[%c3_32, %c0_33, %c0_34] : memref<9x16x32xbf16, #tpu.memory_space<vmem>>, vector<1x16x32xbf16>
    %46 = vector.shape_cast %45 : vector<1x16x32xbf16> to vector<16x32xbf16>
    %cst_35 = arith.constant dense<0.000000e+00> : vector<128x32xf32>
    %47 = tpu.matmul %44, %46, %cst_35 {dimension_numbers = #tpu.dot_dimension_numbers<[1], [0], [0], [1], [0, 0, 1, 1], [], []>} : vector<128x16xbf16>, vector<16x32xbf16>, vector<128x32xf32> -> vector<128x32xf32>
    %48 = arith.addf %40, %47 : vector<128x32xf32>
    %c4 = arith.constant 4 : index
    %c0_36 = arith.constant 0 : index
    %c0_37 = arith.constant 0 : index
    %49 = vector.load %arg4[%c4, %c0_36, %c0_37] : memref<9x128x128xbf16, #tpu.memory_space<vmem>>, vector<1x128x128xbf16>
    %50 = vector.shape_cast %49 : vector<1x128x128xbf16> to vector<128x128xbf16>
    %cst_38 = arith.constant dense<0.000000e+00> : vector<128x16xf32>
    %51 = tpu.matmul %50, %15, %cst_38 {dimension_numbers = #tpu.dot_dimension_numbers<[1], [0], [0], [1], [0, 0, 1, 1], [], []>} : vector<128x128xbf16>, vector<128x16xbf16>, vector<128x16xf32> -> vector<128x16xf32>
    %52 = arith.truncf %51 : vector<128x16xf32> to vector<128x16xbf16>
    %c4_39 = arith.constant 4 : index
    %c0_40 = arith.constant 0 : index
    %c0_41 = arith.constant 0 : index
    %53 = vector.load %arg5[%c4_39, %c0_40, %c0_41] : memref<9x16x32xbf16, #tpu.memory_space<vmem>>, vector<1x16x32xbf16>
    %54 = vector.shape_cast %53 : vector<1x16x32xbf16> to vector<16x32xbf16>
    %cst_42 = arith.constant dense<0.000000e+00> : vector<128x32xf32>
    %55 = tpu.matmul %52, %54, %cst_42 {dimension_numbers = #tpu.dot_dimension_numbers<[1], [0], [0], [1], [0, 0, 1, 1], [], []>} : vector<128x16xbf16>, vector<16x32xbf16>, vector<128x32xf32> -> vector<128x32xf32>
    %56 = arith.addf %48, %55 : vector<128x32xf32>
    %c5 = arith.constant 5 : index
    %c0_43 = arith.constant 0 : index
    %c0_44 = arith.constant 0 : index
    %57 = vector.load %arg4[%c5, %c0_43, %c0_44] : memref<9x128x128xbf16, #tpu.memory_space<vmem>>, vector<1x128x128xbf16>
    %58 = vector.shape_cast %57 : vector<1x128x128xbf16> to vector<128x128xbf16>
    %cst_45 = arith.constant dense<0.000000e+00> : vector<128x16xf32>
    %59 = tpu.matmul %58, %15, %cst_45 {dimension_numbers = #tpu.dot_dimension_numbers<[1], [0], [0], [1], [0, 0, 1, 1], [], []>} : vector<128x128xbf16>, vector<128x16xbf16>, vector<128x16xf32> -> vector<128x16xf32>
    %60 = arith.truncf %59 : vector<128x16xf32> to vector<128x16xbf16>
    %c5_46 = arith.constant 5 : index
    %c0_47 = arith.constant 0 : index
    %c0_48 = arith.constant 0 : index
    %61 = vector.load %arg5[%c5_46, %c0_47, %c0_48] : memref<9x16x32xbf16, #tpu.memory_space<vmem>>, vector<1x16x32xbf16>
    %62 = vector.shape_cast %61 : vector<1x16x32xbf16> to vector<16x32xbf16>
    %cst_49 = arith.constant dense<0.000000e+00> : vector<128x32xf32>
    %63 = tpu.matmul %60, %62, %cst_49 {dimension_numbers = #tpu.dot_dimension_numbers<[1], [0], [0], [1], [0, 0, 1, 1], [], []>} : vector<128x16xbf16>, vector<16x32xbf16>, vector<128x32xf32> -> vector<128x32xf32>
    %64 = arith.addf %56, %63 : vector<128x32xf32>
    %c6 = arith.constant 6 : index
    %c0_50 = arith.constant 0 : index
    %c0_51 = arith.constant 0 : index
    %65 = vector.load %arg4[%c6, %c0_50, %c0_51] : memref<9x128x128xbf16, #tpu.memory_space<vmem>>, vector<1x128x128xbf16>
    %66 = vector.shape_cast %65 : vector<1x128x128xbf16> to vector<128x128xbf16>
    %cst_52 = arith.constant dense<0.000000e+00> : vector<128x16xf32>
    %67 = tpu.matmul %66, %15, %cst_52 {dimension_numbers = #tpu.dot_dimension_numbers<[1], [0], [0], [1], [0, 0, 1, 1], [], []>} : vector<128x128xbf16>, vector<128x16xbf16>, vector<128x16xf32> -> vector<128x16xf32>
    %68 = arith.truncf %67 : vector<128x16xf32> to vector<128x16xbf16>
    %c6_53 = arith.constant 6 : index
    %c0_54 = arith.constant 0 : index
    %c0_55 = arith.constant 0 : index
    %69 = vector.load %arg5[%c6_53, %c0_54, %c0_55] : memref<9x16x32xbf16, #tpu.memory_space<vmem>>, vector<1x16x32xbf16>
    %70 = vector.shape_cast %69 : vector<1x16x32xbf16> to vector<16x32xbf16>
    %cst_56 = arith.constant dense<0.000000e+00> : vector<128x32xf32>
    %71 = tpu.matmul %68, %70, %cst_56 {dimension_numbers = #tpu.dot_dimension_numbers<[1], [0], [0], [1], [0, 0, 1, 1], [], []>} : vector<128x16xbf16>, vector<16x32xbf16>, vector<128x32xf32> -> vector<128x32xf32>
    %72 = arith.addf %64, %71 : vector<128x32xf32>
    %c7 = arith.constant 7 : index
    %c0_57 = arith.constant 0 : index
    %c0_58 = arith.constant 0 : index
    %73 = vector.load %arg4[%c7, %c0_57, %c0_58] : memref<9x128x128xbf16, #tpu.memory_space<vmem>>, vector<1x128x128xbf16>
    %74 = vector.shape_cast %73 : vector<1x128x128xbf16> to vector<128x128xbf16>
    %cst_59 = arith.constant dense<0.000000e+00> : vector<128x16xf32>
    %75 = tpu.matmul %74, %15, %cst_59 {dimension_numbers = #tpu.dot_dimension_numbers<[1], [0], [0], [1], [0, 0, 1, 1], [], []>} : vector<128x128xbf16>, vector<128x16xbf16>, vector<128x16xf32> -> vector<128x16xf32>
    %76 = arith.truncf %75 : vector<128x16xf32> to vector<128x16xbf16>
    %c7_60 = arith.constant 7 : index
    %c0_61 = arith.constant 0 : index
    %c0_62 = arith.constant 0 : index
    %77 = vector.load %arg5[%c7_60, %c0_61, %c0_62] : memref<9x16x32xbf16, #tpu.memory_space<vmem>>, vector<1x16x32xbf16>
    %78 = vector.shape_cast %77 : vector<1x16x32xbf16> to vector<16x32xbf16>
    %cst_63 = arith.constant dense<0.000000e+00> : vector<128x32xf32>
    %79 = tpu.matmul %76, %78, %cst_63 {dimension_numbers = #tpu.dot_dimension_numbers<[1], [0], [0], [1], [0, 0, 1, 1], [], []>} : vector<128x16xbf16>, vector<16x32xbf16>, vector<128x32xf32> -> vector<128x32xf32>
    %80 = arith.addf %72, %79 : vector<128x32xf32>
    %c8 = arith.constant 8 : index
    %c0_64 = arith.constant 0 : index
    %c0_65 = arith.constant 0 : index
    %81 = vector.load %arg4[%c8, %c0_64, %c0_65] : memref<9x128x128xbf16, #tpu.memory_space<vmem>>, vector<1x128x128xbf16>
    %82 = vector.shape_cast %81 : vector<1x128x128xbf16> to vector<128x128xbf16>
    %cst_66 = arith.constant dense<0.000000e+00> : vector<128x16xf32>
    %83 = tpu.matmul %82, %15, %cst_66 {dimension_numbers = #tpu.dot_dimension_numbers<[1], [0], [0], [1], [0, 0, 1, 1], [], []>} : vector<128x128xbf16>, vector<128x16xbf16>, vector<128x16xf32> -> vector<128x16xf32>
    %84 = arith.truncf %83 : vector<128x16xf32> to vector<128x16xbf16>
    %c8_67 = arith.constant 8 : index
    %c0_68 = arith.constant 0 : index
    %c0_69 = arith.constant 0 : index
    %85 = vector.load %arg5[%c8_67, %c0_68, %c0_69] : memref<9x16x32xbf16, #tpu.memory_space<vmem>>, vector<1x16x32xbf16>
    %86 = vector.shape_cast %85 : vector<1x16x32xbf16> to vector<16x32xbf16>
    %cst_70 = arith.constant dense<0.000000e+00> : vector<128x32xf32>
    %87 = tpu.matmul %84, %86, %cst_70 {dimension_numbers = #tpu.dot_dimension_numbers<[1], [0], [0], [1], [0, 0, 1, 1], [], []>} : vector<128x16xbf16>, vector<16x32xbf16>, vector<128x32xf32> -> vector<128x32xf32>
    %88 = arith.addf %80, %87 : vector<128x32xf32>
    %89 = vector.extract_strided_slice %88 {offsets = [0, 0], sizes = [32, 32], strides = [1, 1]} : vector<128x32xf32> to vector<32x32xf32>
    %90 = vector.extract_strided_slice %88 {offsets = [32, 0], sizes = [32, 32], strides = [1, 1]} : vector<128x32xf32> to vector<32x32xf32>
    %91 = arith.maximumf %89, %90 : vector<32x32xf32>
    %92 = vector.extract_strided_slice %88 {offsets = [64, 0], sizes = [32, 32], strides = [1, 1]} : vector<128x32xf32> to vector<32x32xf32>
    %93 = vector.extract_strided_slice %88 {offsets = [96, 0], sizes = [32, 32], strides = [1, 1]} : vector<128x32xf32> to vector<32x32xf32>
    %94 = arith.maximumf %92, %93 : vector<32x32xf32>
    %95 = arith.maximumf %91, %94 : vector<32x32xf32>
    %c0_71 = arith.constant 0 : index
    %c0_72 = arith.constant 0 : index
    %96 = vector.load %arg6[%c0_71, %c0_72] : memref<1x32xf32, #tpu.memory_space<vmem>>, vector<1x32xf32>
    %97 = vector.broadcast %96 : vector<1x32xf32> to vector<32x32xf32>
    %98 = arith.addf %95, %97 : vector<32x32xf32>
    %cst_73 = arith.constant 0.000000e+00 : f32
    %99 = vector.broadcast %cst_73 : f32 to vector<32x32xf32>
    %100 = arith.maximumf %98, %99 : vector<32x32xf32>
    %101 = arith.truncf %100 : vector<32x32xf32> to vector<32x32xbf16>
    %cst_74 = arith.constant 0.000000e+00 : f32
    %102 = vector.broadcast %cst_74 : f32 to vector<2x128xf32>
    %103 = vector.extract_strided_slice %101 {offsets = [0, 0], sizes = [2, 32], strides = [1, 1]} : vector<32x32xbf16> to vector<2x32xbf16>
    %c0_75 = arith.constant 0 : index
    %c0_76 = arith.constant 0 : index
    %104 = vector.load %arg7[%c0_75, %c0_76] : memref<512x128xbf16, #tpu.memory_space<vmem>>, vector<32x128xbf16>
    %cst_77 = arith.constant dense<0.000000e+00> : vector<2x128xf32>
    %105 = tpu.matmul %103, %104, %cst_77 {dimension_numbers = #tpu.dot_dimension_numbers<[1], [0], [0], [1], [0, 0, 1, 1], [], []>} : vector<2x32xbf16>, vector<32x128xbf16>, vector<2x128xf32> -> vector<2x128xf32>
    %106 = arith.addf %102, %105 : vector<2x128xf32>
    %107 = vector.extract_strided_slice %101 {offsets = [2, 0], sizes = [2, 32], strides = [1, 1]} : vector<32x32xbf16> to vector<2x32xbf16>
    %c32 = arith.constant 32 : index
    %c0_78 = arith.constant 0 : index
    %108 = vector.load %arg7[%c32, %c0_78] : memref<512x128xbf16, #tpu.memory_space<vmem>>, vector<32x128xbf16>
    %cst_79 = arith.constant dense<0.000000e+00> : vector<2x128xf32>
    %109 = tpu.matmul %107, %108, %cst_79 {dimension_numbers = #tpu.dot_dimension_numbers<[1], [0], [0], [1], [0, 0, 1, 1], [], []>} : vector<2x32xbf16>, vector<32x128xbf16>, vector<2x128xf32> -> vector<2x128xf32>
    %110 = arith.addf %106, %109 : vector<2x128xf32>
    %111 = vector.extract_strided_slice %101 {offsets = [4, 0], sizes = [2, 32], strides = [1, 1]} : vector<32x32xbf16> to vector<2x32xbf16>
    %c64 = arith.constant 64 : index
    %c0_80 = arith.constant 0 : index
    %112 = vector.load %arg7[%c64, %c0_80] : memref<512x128xbf16, #tpu.memory_space<vmem>>, vector<32x128xbf16>
    %cst_81 = arith.constant dense<0.000000e+00> : vector<2x128xf32>
    %113 = tpu.matmul %111, %112, %cst_81 {dimension_numbers = #tpu.dot_dimension_numbers<[1], [0], [0], [1], [0, 0, 1, 1], [], []>} : vector<2x32xbf16>, vector<32x128xbf16>, vector<2x128xf32> -> vector<2x128xf32>
    %114 = arith.addf %110, %113 : vector<2x128xf32>
    %115 = vector.extract_strided_slice %101 {offsets = [6, 0], sizes = [2, 32], strides = [1, 1]} : vector<32x32xbf16> to vector<2x32xbf16>
    %c96 = arith.constant 96 : index
    %c0_82 = arith.constant 0 : index
    %116 = vector.load %arg7[%c96, %c0_82] : memref<512x128xbf16, #tpu.memory_space<vmem>>, vector<32x128xbf16>
    %cst_83 = arith.constant dense<0.000000e+00> : vector<2x128xf32>
    %117 = tpu.matmul %115, %116, %cst_83 {dimension_numbers = #tpu.dot_dimension_numbers<[1], [0], [0], [1], [0, 0, 1, 1], [], []>} : vector<2x32xbf16>, vector<32x128xbf16>, vector<2x128xf32> -> vector<2x128xf32>
    %118 = arith.addf %114, %117 : vector<2x128xf32>
    %119 = vector.extract_strided_slice %101 {offsets = [8, 0], sizes = [2, 32], strides = [1, 1]} : vector<32x32xbf16> to vector<2x32xbf16>
    %c128 = arith.constant 128 : index
    %c0_84 = arith.constant 0 : index
    %120 = vector.load %arg7[%c128, %c0_84] : memref<512x128xbf16, #tpu.memory_space<vmem>>, vector<32x128xbf16>
    %cst_85 = arith.constant dense<0.000000e+00> : vector<2x128xf32>
    %121 = tpu.matmul %119, %120, %cst_85 {dimension_numbers = #tpu.dot_dimension_numbers<[1], [0], [0], [1], [0, 0, 1, 1], [], []>} : vector<2x32xbf16>, vector<32x128xbf16>, vector<2x128xf32> -> vector<2x128xf32>
    %122 = arith.addf %118, %121 : vector<2x128xf32>
    %123 = vector.extract_strided_slice %101 {offsets = [10, 0], sizes = [2, 32], strides = [1, 1]} : vector<32x32xbf16> to vector<2x32xbf16>
    %c160 = arith.constant 160 : index
    %c0_86 = arith.constant 0 : index
    %124 = vector.load %arg7[%c160, %c0_86] : memref<512x128xbf16, #tpu.memory_space<vmem>>, vector<32x128xbf16>
    %cst_87 = arith.constant dense<0.000000e+00> : vector<2x128xf32>
    %125 = tpu.matmul %123, %124, %cst_87 {dimension_numbers = #tpu.dot_dimension_numbers<[1], [0], [0], [1], [0, 0, 1, 1], [], []>} : vector<2x32xbf16>, vector<32x128xbf16>, vector<2x128xf32> -> vector<2x128xf32>
    %126 = arith.addf %122, %125 : vector<2x128xf32>
    %127 = vector.extract_strided_slice %101 {offsets = [12, 0], sizes = [2, 32], strides = [1, 1]} : vector<32x32xbf16> to vector<2x32xbf16>
    %c192 = arith.constant 192 : index
    %c0_88 = arith.constant 0 : index
    %128 = vector.load %arg7[%c192, %c0_88] : memref<512x128xbf16, #tpu.memory_space<vmem>>, vector<32x128xbf16>
    %cst_89 = arith.constant dense<0.000000e+00> : vector<2x128xf32>
    %129 = tpu.matmul %127, %128, %cst_89 {dimension_numbers = #tpu.dot_dimension_numbers<[1], [0], [0], [1], [0, 0, 1, 1], [], []>} : vector<2x32xbf16>, vector<32x128xbf16>, vector<2x128xf32> -> vector<2x128xf32>
    %130 = arith.addf %126, %129 : vector<2x128xf32>
    %131 = vector.extract_strided_slice %101 {offsets = [14, 0], sizes = [2, 32], strides = [1, 1]} : vector<32x32xbf16> to vector<2x32xbf16>
    %c224 = arith.constant 224 : index
    %c0_90 = arith.constant 0 : index
    %132 = vector.load %arg7[%c224, %c0_90] : memref<512x128xbf16, #tpu.memory_space<vmem>>, vector<32x128xbf16>
    %cst_91 = arith.constant dense<0.000000e+00> : vector<2x128xf32>
    %133 = tpu.matmul %131, %132, %cst_91 {dimension_numbers = #tpu.dot_dimension_numbers<[1], [0], [0], [1], [0, 0, 1, 1], [], []>} : vector<2x32xbf16>, vector<32x128xbf16>, vector<2x128xf32> -> vector<2x128xf32>
    %134 = arith.addf %130, %133 : vector<2x128xf32>
    %135 = vector.extract_strided_slice %101 {offsets = [16, 0], sizes = [2, 32], strides = [1, 1]} : vector<32x32xbf16> to vector<2x32xbf16>
    %c256 = arith.constant 256 : index
    %c0_92 = arith.constant 0 : index
    %136 = vector.load %arg7[%c256, %c0_92] : memref<512x128xbf16, #tpu.memory_space<vmem>>, vector<32x128xbf16>
    %cst_93 = arith.constant dense<0.000000e+00> : vector<2x128xf32>
    %137 = tpu.matmul %135, %136, %cst_93 {dimension_numbers = #tpu.dot_dimension_numbers<[1], [0], [0], [1], [0, 0, 1, 1], [], []>} : vector<2x32xbf16>, vector<32x128xbf16>, vector<2x128xf32> -> vector<2x128xf32>
    %138 = arith.addf %134, %137 : vector<2x128xf32>
    %139 = vector.extract_strided_slice %101 {offsets = [18, 0], sizes = [2, 32], strides = [1, 1]} : vector<32x32xbf16> to vector<2x32xbf16>
    %c288 = arith.constant 288 : index
    %c0_94 = arith.constant 0 : index
    %140 = vector.load %arg7[%c288, %c0_94] : memref<512x128xbf16, #tpu.memory_space<vmem>>, vector<32x128xbf16>
    %cst_95 = arith.constant dense<0.000000e+00> : vector<2x128xf32>
    %141 = tpu.matmul %139, %140, %cst_95 {dimension_numbers = #tpu.dot_dimension_numbers<[1], [0], [0], [1], [0, 0, 1, 1], [], []>} : vector<2x32xbf16>, vector<32x128xbf16>, vector<2x128xf32> -> vector<2x128xf32>
    %142 = arith.addf %138, %141 : vector<2x128xf32>
    %143 = vector.extract_strided_slice %101 {offsets = [20, 0], sizes = [2, 32], strides = [1, 1]} : vector<32x32xbf16> to vector<2x32xbf16>
    %c320 = arith.constant 320 : index
    %c0_96 = arith.constant 0 : index
    %144 = vector.load %arg7[%c320, %c0_96] : memref<512x128xbf16, #tpu.memory_space<vmem>>, vector<32x128xbf16>
    %cst_97 = arith.constant dense<0.000000e+00> : vector<2x128xf32>
    %145 = tpu.matmul %143, %144, %cst_97 {dimension_numbers = #tpu.dot_dimension_numbers<[1], [0], [0], [1], [0, 0, 1, 1], [], []>} : vector<2x32xbf16>, vector<32x128xbf16>, vector<2x128xf32> -> vector<2x128xf32>
    %146 = arith.addf %142, %145 : vector<2x128xf32>
    %147 = vector.extract_strided_slice %101 {offsets = [22, 0], sizes = [2, 32], strides = [1, 1]} : vector<32x32xbf16> to vector<2x32xbf16>
    %c352 = arith.constant 352 : index
    %c0_98 = arith.constant 0 : index
    %148 = vector.load %arg7[%c352, %c0_98] : memref<512x128xbf16, #tpu.memory_space<vmem>>, vector<32x128xbf16>
    %cst_99 = arith.constant dense<0.000000e+00> : vector<2x128xf32>
    %149 = tpu.matmul %147, %148, %cst_99 {dimension_numbers = #tpu.dot_dimension_numbers<[1], [0], [0], [1], [0, 0, 1, 1], [], []>} : vector<2x32xbf16>, vector<32x128xbf16>, vector<2x128xf32> -> vector<2x128xf32>
    %150 = arith.addf %146, %149 : vector<2x128xf32>
    %151 = vector.extract_strided_slice %101 {offsets = [24, 0], sizes = [2, 32], strides = [1, 1]} : vector<32x32xbf16> to vector<2x32xbf16>
    %c384 = arith.constant 384 : index
    %c0_100 = arith.constant 0 : index
    %152 = vector.load %arg7[%c384, %c0_100] : memref<512x128xbf16, #tpu.memory_space<vmem>>, vector<32x128xbf16>
    %cst_101 = arith.constant dense<0.000000e+00> : vector<2x128xf32>
    %153 = tpu.matmul %151, %152, %cst_101 {dimension_numbers = #tpu.dot_dimension_numbers<[1], [0], [0], [1], [0, 0, 1, 1], [], []>} : vector<2x32xbf16>, vector<32x128xbf16>, vector<2x128xf32> -> vector<2x128xf32>
    %154 = arith.addf %150, %153 : vector<2x128xf32>
    %155 = vector.extract_strided_slice %101 {offsets = [26, 0], sizes = [2, 32], strides = [1, 1]} : vector<32x32xbf16> to vector<2x32xbf16>
    %c416 = arith.constant 416 : index
    %c0_102 = arith.constant 0 : index
    %156 = vector.load %arg7[%c416, %c0_102] : memref<512x128xbf16, #tpu.memory_space<vmem>>, vector<32x128xbf16>
    %cst_103 = arith.constant dense<0.000000e+00> : vector<2x128xf32>
    %157 = tpu.matmul %155, %156, %cst_103 {dimension_numbers = #tpu.dot_dimension_numbers<[1], [0], [0], [1], [0, 0, 1, 1], [], []>} : vector<2x32xbf16>, vector<32x128xbf16>, vector<2x128xf32> -> vector<2x128xf32>
    %158 = arith.addf %154, %157 : vector<2x128xf32>
    %159 = vector.extract_strided_slice %101 {offsets = [28, 0], sizes = [2, 32], strides = [1, 1]} : vector<32x32xbf16> to vector<2x32xbf16>
    %c448 = arith.constant 448 : index
    %c0_104 = arith.constant 0 : index
    %160 = vector.load %arg7[%c448, %c0_104] : memref<512x128xbf16, #tpu.memory_space<vmem>>, vector<32x128xbf16>
    %cst_105 = arith.constant dense<0.000000e+00> : vector<2x128xf32>
    %161 = tpu.matmul %159, %160, %cst_105 {dimension_numbers = #tpu.dot_dimension_numbers<[1], [0], [0], [1], [0, 0, 1, 1], [], []>} : vector<2x32xbf16>, vector<32x128xbf16>, vector<2x128xf32> -> vector<2x128xf32>
    %162 = arith.addf %158, %161 : vector<2x128xf32>
    %163 = vector.extract_strided_slice %101 {offsets = [30, 0], sizes = [2, 32], strides = [1, 1]} : vector<32x32xbf16> to vector<2x32xbf16>
    %c480 = arith.constant 480 : index
    %c0_106 = arith.constant 0 : index
    %164 = vector.load %arg7[%c480, %c0_106] : memref<512x128xbf16, #tpu.memory_space<vmem>>, vector<32x128xbf16>
    %cst_107 = arith.constant dense<0.000000e+00> : vector<2x128xf32>
    %165 = tpu.matmul %163, %164, %cst_107 {dimension_numbers = #tpu.dot_dimension_numbers<[1], [0], [0], [1], [0, 0, 1, 1], [], []>} : vector<2x32xbf16>, vector<32x128xbf16>, vector<2x128xf32> -> vector<2x128xf32>
    %166 = arith.addf %162, %165 : vector<2x128xf32>
    %c0_108 = arith.constant 0 : index
    %c0_109 = arith.constant 0 : index
    %167 = vector.load %arg8[%c0_108, %c0_109] : memref<1x128xf32, #tpu.memory_space<vmem>>, vector<1x128xf32>
    %168 = vector.broadcast %167 : vector<1x128xf32> to vector<2x128xf32>
    %169 = arith.addf %166, %168 : vector<2x128xf32>
    %cst_110 = arith.constant 0.000000e+00 : f32
    %170 = vector.broadcast %cst_110 : f32 to vector<2x128xf32>
    %171 = arith.maximumf %169, %170 : vector<2x128xf32>
    %172 = arith.truncf %171 : vector<2x128xf32> to vector<2x128xbf16>
    %c0_111 = arith.constant 0 : index
    %c0_112 = arith.constant 0 : index
    %173 = vector.load %arg9[%c0_111, %c0_112] : memref<128x128xbf16, #tpu.memory_space<vmem>>, vector<128x128xbf16>
    %cst_113 = arith.constant dense<0.000000e+00> : vector<2x128xf32>
    %174 = tpu.matmul %172, %173, %cst_113 {dimension_numbers = #tpu.dot_dimension_numbers<[1], [0], [0], [1], [0, 0, 1, 1], [], []>} : vector<2x128xbf16>, vector<128x128xbf16>, vector<2x128xf32> -> vector<2x128xf32>
    %c0_114 = arith.constant 0 : index
    %c0_115 = arith.constant 0 : index
    %175 = vector.load %arg10[%c0_114, %c0_115] : memref<1x128xf32, #tpu.memory_space<vmem>>, vector<1x128xf32>
    %176 = vector.broadcast %175 : vector<1x128xf32> to vector<2x128xf32>
    %177 = arith.addf %174, %176 : vector<2x128xf32>
    %c0_116 = arith.constant 0 : index
    %c0_117 = arith.constant 0 : index
    %178 = vector.load %arg11[%c0_116, %c0_117] : memref<2x128xf32, #tpu.memory_space<vmem>>, vector<2x128xf32>
    tpu.vector_store %arg11[%c0_116, %c0_117], %177 {strides = array<i32>} : memref<2x128xf32, #tpu.memory_space<vmem>>, vector<2x128xf32>,
    return
  }
  func.func @transform_0(%arg0: i32) -> (i32, i32) {
    %c0_i32 = arith.constant 0 : i32
    %c0_i32_0 = arith.constant 0 : i32
    %c0_i32_1 = arith.constant 0 : i32
    return %c0_i32, %c0_i32_0 : i32, i32
  }
  func.func @transform_1(%arg0: i32) -> (i32, i32) {
    %c0_i32 = arith.constant 0 : i32
    %c0_i32_0 = arith.constant 0 : i32
    %c0_i32_1 = arith.constant 0 : i32
    return %c0_i32, %c0_i32_0 : i32, i32
  }
  func.func @transform_2(%arg0: i32) -> (i32, i32) {
    %c0_i32 = arith.constant 0 : i32
    %c0_i32_0 = arith.constant 0 : i32
    %c0_i32_1 = arith.constant 0 : i32
    return %c0_i32, %c0_i32_0 : i32, i32
  }
  func.func @transform_3(%arg0: i32) -> (i32, i32, i32) {
    %c0_i32 = arith.constant 0 : i32
    %c0_i32_0 = arith.constant 0 : i32
    %c0_i32_1 = arith.constant 0 : i32
    %c0_i32_2 = arith.constant 0 : i32
    return %c0_i32, %c0_i32_0, %c0_i32_1 : i32, i32, i32
  }
  func.func @transform_4(%arg0: i32) -> (i32, i32, i32) {
    %c0_i32 = arith.constant 0 : i32
    %c0_i32_0 = arith.constant 0 : i32
    %c0_i32_1 = arith.constant 0 : i32
    %c0_i32_2 = arith.constant 0 : i32
    return %c0_i32, %c0_i32_0, %c0_i32_1 : i32, i32, i32
  }
  func.func @transform_5(%arg0: i32) -> (i32, i32) {
    %c0_i32 = arith.constant 0 : i32
    %c0_i32_0 = arith.constant 0 : i32
    %c0_i32_1 = arith.constant 0 : i32
    return %c0_i32, %c0_i32_0 : i32, i32
  }
  func.func @transform_6(%arg0: i32) -> (i32, i32) {
    %c0_i32 = arith.constant 0 : i32
    %c0_i32_0 = arith.constant 0 : i32
    %c0_i32_1 = arith.constant 0 : i32
    return %c0_i32, %c0_i32_0 : i32, i32
  }
  func.func @transform_7(%arg0: i32) -> (i32, i32) {
    %c0_i32 = arith.constant 0 : i32
    %c0_i32_0 = arith.constant 0 : i32
    %c0_i32_1 = arith.constant 0 : i32
    return %c0_i32, %c0_i32_0 : i32, i32
  }
  func.func @transform_8(%arg0: i32) -> (i32, i32) {
    %c0_i32 = arith.constant 0 : i32
    %c0_i32_0 = arith.constant 0 : i32
    %c0_i32_1 = arith.constant 0 : i32
    return %c0_i32, %c0_i32_0 : i32, i32
  }
  func.func @transform_9(%arg0: i32) -> (i32, i32) {
    %c0_i32 = arith.constant 0 : i32
    %c0_i32_0 = arith.constant 0 : i32
    %c0_i32_1 = arith.constant 0 : i32
    return %c0_i32, %c0_i32_0 : i32, i32
  }
  func.func @transform_10(%arg0: i32) -> (i32, i32) {
    %c0_i32 = arith.constant 0 : i32
    %c0_i32_0 = arith.constant 0 : i32
    %c0_i32_1 = arith.constant 0 : i32
    return %c0_i32, %c0_i32_0 : i32, i32
  }
}

</mosaic_0001>

<llo_original>
// kernel: anemianet_forward.1
$region0: #{anemianet_forward.1}
  #allocation0 [shape = 'u32[]', space=smem, size = 0x4, offset = 0x4, fixed_abs, tag = 'smem constant byte address 0x4 - core index']
  #allocation1 [shape = 'u32[144,128]{1,0:T(1,128)}', space=vmem, size = 0x12000, scoped, tag = 'internal scratch']
  %s0 = inlined_call_operand.vmem [shape: bf16[512,32], index: 0, kind: input, shape index: {}]
  %s1 = inlined_call_operand.vmem [shape: bf16[32,16], index: 1, kind: input, shape index: {}]
  %s2 = inlined_call_operand.vmem [shape: f32[1,16], index: 2, kind: input, shape index: {}]
  %s3 = inlined_call_operand.vmem [shape: bf16[9,128,128], index: 3, kind: input, shape index: {}]
  %s4 = inlined_call_operand.vmem [shape: bf16[9,16,32], index: 4, kind: input, shape index: {}]
  %s5 = inlined_call_operand.vmem [shape: f32[1,32], index: 5, kind: input, shape index: {}]
  %s6 = inlined_call_operand.vmem [shape: bf16[512,128], index: 6, kind: input, shape index: {}]
  %s7 = inlined_call_operand.vmem [shape: f32[1,128], index: 7, kind: input, shape index: {}]
  %s8 = inlined_call_operand.vmem [shape: bf16[128,128], index: 8, kind: input, shape index: {}]
  %s9 = inlined_call_operand.vmem [shape: f32[1,128], index: 9, kind: input, shape index: {}]
  %s10 = inlined_call_operand.hbm [shape: f32[2,128], index: 10, kind: output, shape index: {}]
  %s11 = sld [smem:[#allocation0]]
  $region50: #{anemianet_forward.1} parent=0
    _
  %s13 = ssub.s32 1, %s11
  %s14 = scalar_select 0, %s13, %s11
  $region1: #{anemianet_forward.1} parent=0
    #allocation2 [shape = 'u8[1024]{0}', space=vmem, size = 0x400, scoped, tag = 'output window, operand 0, single buffered']
    #allocation3 [shape = 's32[1]{0}', space=sflag, size = 0x4, scoped, tag = 'scoped memory for anemianet_forward.1']
    %15 = vsyncpa [#allocation3], 0
    // Predicated region
    $region2: #{anemianet_forward.1} parent=1 // pred_check
      _
    $region3: #{anemianet_forward.1} parent=1 // pred_check_branch
      %17 = sbr.rel (0) target = $region5
    $region4: #{anemianet_forward.1} parent=1 // pred_region
      _
    $region5: #{anemianet_forward.1} parent=1 // pred_fallthru
      _
    // Predicated region
    $region6: #{anemianet_forward.1} parent=1 // pred_check
      _
    $region7: #{anemianet_forward.1} parent=1 // pred_check_branch
      %19 = sbr.rel (0) target = $region9
    $region8: #{anemianet_forward.1} parent=1 // pred_region
      _
    $region9: #{anemianet_forward.1} parent=1 // pred_fallthru
      _
    // Predicated region
    $region10: #{anemianet_forward.1} parent=1 // pred_check
      _
    $region11: #{anemianet_forward.1} parent=1 // pred_check_branch
      %21 = sbr.rel (0) target = $region13
    $region12: #{anemianet_forward.1} parent=1 // pred_region
      _
    $region13: #{anemianet_forward.1} parent=1 // pred_fallthru
      _
    // Predicated region
    $region14: #{anemianet_forward.1} parent=1 // pred_check
      _
    $region15: #{anemianet_forward.1} parent=1 // pred_check_branch
      %23 = sbr.rel (0) target = $region17
    $region16: #{anemianet_forward.1} parent=1 // pred_region
      _
    $region17: #{anemianet_forward.1} parent=1 // pred_fallthru
      _
    // Predicated region
    $region18: #{anemianet_forward.1} parent=1 // pred_check
      _
    $region19: #{anemianet_forward.1} parent=1 // pred_check_branch
      %25 = sbr.rel (0) target = $region21
    $region20: #{anemianet_forward.1} parent=1 // pred_region
      _
    $region21: #{anemianet_forward.1} parent=1 // pred_fallthru
      _
    // Predicated region
    $region22: #{anemianet_forward.1} parent=1 // pred_check
      _
    $region23: #{anemianet_forward.1} parent=1 // pred_check_branch
      %27 = sbr.rel (0) target = $region25
    $region24: #{anemianet_forward.1} parent=1 // pred_region
      _
    $region25: #{anemianet_forward.1} parent=1 // pred_fallthru
      _
    // Predicated region
    $region26: #{anemianet_forward.1} parent=1 // pred_check
      _
    $region27: #{anemianet_forward.1} parent=1 // pred_check_branch
      %29 = sbr.rel (0) target = $region29
    $region28: #{anemianet_forward.1} parent=1 // pred_region
      _
    $region29: #{anemianet_forward.1} parent=1 // pred_fallthru
      _
    // Predicated region
    $region30: #{anemianet_forward.1} parent=1 // pred_check
      _
    $region31: #{anemianet_forward.1} parent=1 // pred_check_branch
      %31 = sbr.rel (0) target = $region33
    $region32: #{anemianet_forward.1} parent=1 // pred_region
      _
    $region33: #{anemianet_forward.1} parent=1 // pred_fallthru
      _
    // Predicated region
    $region34: #{anemianet_forward.1} parent=1 // pred_check
      _
    $region35: #{anemianet_forward.1} parent=1 // pred_check_branch
      %33 = sbr.rel (0) target = $region37
    $region36: #{anemianet_forward.1} parent=1 // pred_region
      _
    $region37: #{anemianet_forward.1} parent=1 // pred_fallthru
      _
    // Predicated region
    $region38: #{anemianet_forward.1} parent=1 // pred_check
      _
    $region39: #{anemianet_forward.1} parent=1 // pred_check_branch
      %35 = sbr.rel (0) target = $region41
    $region40: #{anemianet_forward.1} parent=1 // pred_region
      _
    $region41: #{anemianet_forward.1} parent=1 // pred_fallthru
      _
    %v37 = vld [vmem:[%s0] sm:$0xf]
    %v38 = vld [vmem:[%s0 + $0x4] sm:$0xf]
    %v39 = vld [vmem:[%s0 + $0x8] sm:$0xf]
    %v40 = vld [vmem:[%s0 + $0xc] sm:$0xf]
    %v41 = vld [vmem:[%s0 + $0x10] sm:$0xf]
    %v42 = vld [vmem:[%s0 + $0x14] sm:$0xf]
    %v43 = vld [vmem:[%s0 + $0x18] sm:$0xf]
    %v44 = vld [vmem:[%s0 + $0x1c] sm:$0xf]
    %v45 = vld [vmem:[%s0 + $0x20] sm:$0xf]
    %v46 = vld [vmem:[%s0 + $0x24] sm:$0xf]
    %v47 = vld [vmem:[%s0 + $0x28] sm:$0xf]
    %v48 = vld [vmem:[%s0 + $0x2c] sm:$0xf]
    %v49 = vld [vmem:[%s0 + $0x30] sm:$0xf]
    %v50 = vld [vmem:[%s0 + $0x34] sm:$0xf]
    %v51 = vld [vmem:[%s0 + $0x38] sm:$0xf]
    %v52 = vld [vmem:[%s0 + $0x3c] sm:$0xf]
    %v53 = vld [vmem:[%s0 + $0x40] sm:$0xf]
    %v54 = vld [vmem:[%s0 + $0x44] sm:$0xf]
    %v55 = vld [vmem:[%s0 + $0x48] sm:$0xf]
    %v56 = vld [vmem:[%s0 + $0x4c] sm:$0xf]
    %v57 = vld [vmem:[%s0 + $0x50] sm:$0xf]
    %v58 = vld [vmem:[%s0 + $0x54] sm:$0xf]
    %v59 = vld [vmem:[%s0 + $0x58] sm:$0xf]
    %v60 = vld [vmem:[%s0 + $0x5c] sm:$0xf]
    %v61 = vld [vmem:[%s0 + $0x60] sm:$0xf]
    %v62 = vld [vmem:[%s0 + $0x64] sm:$0xf]
    %v63 = vld [vmem:[%s0 + $0x68] sm:$0xf]
    %v64 = vld [vmem:[%s0 + $0x6c] sm:$0xf]
    %v65 = vld [vmem:[%s0 + $0x70] sm:$0xf]
    %v66 = vld [vmem:[%s0 + $0x74] sm:$0xf]
    %v67 = vld [vmem:[%s0 + $0x78] sm:$0xf]
    %v68 = vld [vmem:[%s0 + $0x7c] sm:$0xf]
    %v69 = vld [vmem:[%s0 + $0x80] sm:$0xf]
    %v70 = vld [vmem:[%s0 + $0x84] sm:$0xf]
    %v71 = vld [vmem:[%s0 + $0x88] sm:$0xf]
    %v72 = vld [vmem:[%s0 + $0x8c] sm:$0xf]
    %v73 = vld [vmem:[%s0 + $0x90] sm:$0xf]
    %v74 = vld [vmem:[%s0 + $0x94] sm:$0xf]
    %v75 = vld [vmem:[%s0 + $0x98] sm:$0xf]
    %v76 = vld [vmem:[%s0 + $0x9c] sm:$0xf]
    %v77 = vld [vmem:[%s0 + $0xa0] sm:$0xf]
    %v78 = vld [vmem:[%s0 + $0xa4] sm:$0xf]
    %v79 = vld [vmem:[%s0 + $0xa8] sm:$0xf]
    %v80 = vld [vmem:[%s0 + $0xac] sm:$0xf]
    %v81 = vld [vmem:[%s0 + $0xb0] sm:$0xf]
    %v82 = vld [vmem:[%s0 + $0xb4] sm:$0xf]
    %v83 = vld [vmem:[%s0 + $0xb8] sm:$0xf]
    %v84 = vld [vmem:[%s0 + $0xbc] sm:$0xf]
    %v85 = vld [vmem:[%s0 + $0xc0] sm:$0xf]
    %v86 = vld [vmem:[%s0 + $0xc4] sm:$0xf]
    %v87 = vld [vmem:[%s0 + $0xc8] sm:$0xf]
    %v88 = vld [vmem:[%s0 + $0xcc] sm:$0xf]
    %v89 = vld [vmem:[%s0 + $0xd0] sm:$0xf]
    %v90 = vld [vmem:[%s0 + $0xd4] sm:$0xf]
    %v91 = vld [vmem:[%s0 + $0xd8] sm:$0xf]
    %v92 = vld [vmem:[%s0 + $0xdc] sm:$0xf]
    %v93 = vld [vmem:[%s0 + $0xe0] sm:$0xf]
    %v94 = vld [vmem:[%s0 + $0xe4] sm:$0xf]
    %v95 = vld [vmem:[%s0 + $0xe8] sm:$0xf]
    %v96 = vld [vmem:[%s0 + $0xec] sm:$0xf]
    %v97 = vld [vmem:[%s0 + $0xf0] sm:$0xf]
    %v98 = vld [vmem:[%s0 + $0xf4] sm:$0xf]
    %v99 = vld [vmem:[%s0 + $0xf8] sm:$0xf]
    %v100 = vld [vmem:[%s0 + $0xfc] sm:$0xf]
    %v101 = vld [vmem:[%s1] sm:$0xf]
    %v102 = vld [vmem:[%s1 + $0x4] sm:$0xf]
    %v103 = vld [vmem:[%s1 + $0x8] sm:$0xf]
    %v104 = vld [vmem:[%s1 + $0xc] sm:$0xf]
    %v169 = vunpack.c.l.b16 %v37
    %v170 = vunpack.c.l.b16 %v38
    %v171 = vunpack.c.l.b16 %v39
    %v172 = vunpack.c.l.b16 %v40
    %v173 = vunpack.c.l.b16 %v41
    %v174 = vunpack.c.l.b16 %v42
    %v175 = vunpack.c.l.b16 %v43
    %v176 = vunpack.c.l.b16 %v44
    %v177 = vunpack.c.l.b16 %v45
    %v178 = vunpack.c.l.b16 %v46
    %v179 = vunpack.c.l.b16 %v47
    %v180 = vunpack.c.l.b16 %v48
    %v181 = vunpack.c.l.b16 %v49
    %v182 = vunpack.c.l.b16 %v50
    %v183 = vunpack.c.l.b16 %v51
    %v184 = vunpack.c.l.b16 %v52
    %v185 = vunpack.c.l.b16 %v53
    %v186 = vunpack.c.l.b16 %v54
    %v187 = vunpack.c.l.b16 %v55
    %v188 = vunpack.c.l.b16 %v56
    %v189 = vunpack.c.l.b16 %v57
    %v190 = vunpack.c.l.b16 %v58
    %v191 = vunpack.c.l.b16 %v59
    %v192 = vunpack.c.l.b16 %v60
    %v193 = vunpack.c.l.b16 %v61
    %v194 = vunpack.c.l.b16 %v62
    %v195 = vunpack.c.l.b16 %v63
    %v196 = vunpack.c.l.b16 %v64
    %v197 = vunpack.c.l.b16 %v65
    %v198 = vunpack.c.l.b16 %v66
    %v199 = vunpack.c.l.b16 %v67
    %v200 = vunpack.c.l.b16 %v68
    %v201 = vunpack.c.l.b16 %v69
    %v202 = vunpack.c.l.b16 %v70
    %v203 = vunpack.c.l.b16 %v71
    %v204 = vunpack.c.l.b16 %v72
    %v205 = vunpack.c.l.b16 %v73
    %v206 = vunpack.c.l.b16 %v74
    %v207 = vunpack.c.l.b16 %v75
    %v208 = vunpack.c.l.b16 %v76
    %v209 = vunpack.c.l.b16 %v77
    %v210 = vunpack.c.l.b16 %v78
    %v211 = vunpack.c.l.b16 %v79
    %v212 = vunpack.c.l.b16 %v80
    %v213 = vunpack.c.l.b16 %v81
    %v214 = vunpack.c.l.b16 %v82
    %v215 = vunpack.c.l.b16 %v83
    %v216 = vunpack.c.l.b16 %v84
    %v217 = vunpack.c.l.b16 %v85
    %v218 = vunpack.c.l.b16 %v86
    %v219 = vunpack.c.l.b16 %v87
    %v220 = vunpack.c.l.b16 %v88
    %v221 = vunpack.c.l.b16 %v89
    %v222 = vunpack.c.l.b16 %v90
    %v223 = vunpack.c.l.b16 %v91
    %v224 = vunpack.c.l.b16 %v92
    %v225 = vunpack.c.l.b16 %v93
    %v226 = vunpack.c.l.b16 %v94
    %v227 = vunpack.c.l.b16 %v95
    %v228 = vunpack.c.l.b16 %v96
    %v229 = vunpack.c.l.b16 %v97
    %v230 = vunpack.c.l.b16 %v98
    %v231 = vunpack.c.l.b16 %v99
    %v232 = vunpack.c.l.b16 %v100
    %v233 = vpack.c.b16 %v170, %v169
    %v234 = vpack.c.b16 %v172, %v171
    %v235 = vpack.c.b16 %v174, %v173
    %v236 = vpack.c.b16 %v176, %v175
    %v237 = vpack.c.b16 %v178, %v177
    %v238 = vpack.c.b16 %v180, %v179
    %v239 = vpack.c.b16 %v182, %v181
    %v240 = vpack.c.b16 %v184, %v183
    %v241 = vpack.c.b16 %v186, %v185
    %v242 = vpack.c.b16 %v188, %v187
    %v243 = vpack.c.b16 %v190, %v189
    %v244 = vpack.c.b16 %v192, %v191
    %v245 = vpack.c.b16 %v194, %v193
    %v246 = vpack.c.b16 %v196, %v195
    %v247 = vpack.c.b16 %v198, %v197
    %v248 = vpack.c.b16 %v200, %v199
    %v249 = vpack.c.b16 %v202, %v201
    %v250 = vpack.c.b16 %v204, %v203
    %v251 = vpack.c.b16 %v206, %v205
    %v252 = vpack.c.b16 %v208, %v207
    %v253 = vpack.c.b16 %v210, %v209
    %v254 = vpack.c.b16 %v212, %v211
    %v255 = vpack.c.b16 %v214, %v213
    %v256 = vpack.c.b16 %v216, %v215
    %v257 = vpack.c.b16 %v218, %v217
    %v258 = vpack.c.b16 %v220, %v219
    %v259 = vpack.c.b16 %v222, %v221
    %v260 = vpack.c.b16 %v224, %v223
    %v261 = vpack.c.b16 %v226, %v225
    %v262 = vpack.c.b16 %v228, %v227
    %v263 = vpack.c.b16 %v230, %v229
    %v264 = vpack.c.b16 %v232, %v231
    %v269 = vunpack.c.l.b16 %v101
    %v270 = vunpack.c.l.b16 %v102
    %v271 = vunpack.c.l.b16 %v103
    %v272 = vunpack.c.l.b16 %v104
    %v273 = vpack.c.b16 %v270, %v269
    %v274 = vpack.c.b16 %v272, %v271
    %vm277 = vcmask 261120
    %v279 = vsel %vm277, %v233, 0
    %v282 = vsel %vm277, %v234, 0
    %v285 = vsel %vm277, %v235, 0
    %v288 = vsel %vm277, %v236, 0
    %v291 = vsel %vm277, %v237, 0
    %v294 = vsel %vm277, %v238, 0
    %v297 = vsel %vm277, %v239, 0
    %v300 = vsel %vm277, %v240, 0
    %v303 = vsel %vm277, %v241, 0
    %v306 = vsel %vm277, %v242, 0
    %v309 = vsel %vm277, %v243, 0
    %v312 = vsel %vm277, %v244, 0
    %v315 = vsel %vm277, %v245, 0
    %v318 = vsel %vm277, %v246, 0
    %v321 = vsel %vm277, %v247, 0
    %v324 = vsel %vm277, %v248, 0
    %v327 = vsel %vm277, %v249, 0
    %v330 = vsel %vm277, %v250, 0
    %v333 = vsel %vm277, %v251, 0
    %v336 = vsel %vm277, %v252, 0
    %v339 = vsel %vm277, %v253, 0
    %v342 = vsel %vm277, %v254, 0
    %v345 = vsel %vm277, %v255, 0
    %v348 = vsel %vm277, %v256, 0
    %v351 = vsel %vm277, %v257, 0
    %v354 = vsel %vm277, %v258, 0
    %v357 = vsel %vm277, %v259, 0
    %v360 = vsel %vm277, %v260, 0
    %v363 = vsel %vm277, %v261, 0
    %v366 = vsel %vm277, %v262, 0
    %v369 = vsel %vm277, %v263, 0
    %v372 = vsel %vm277, %v264, 0
    %374 = vmatprep.subr.bf16.mxu0 0
    %375 = vmatpush1.bf16.msra.mxu0 %v273
    %376 = vmatprep.subr.bf16.mxu0 0
    %377 = vmatpush1.bf16.msra.mxu0 %v274
    %378 = vmatprep.subr.bf16.mxu0 0
    %379 = vmatpush1.bf16.msra.mxu0 0
    %380 = vmatprep.subr.bf16.mxu0 0
    %381 = vmatpush1.bf16.msra.mxu0 0
    %382 = vmatprep.subr.bf16.mxu0 0
    %383 = vmatpush1.bf16.msra.mxu0 0
    %384 = vmatprep.subr.bf16.mxu0 0
    %385 = vmatpush1.bf16.msra.mxu0 0
    %386 = vmatprep.subr.bf16.mxu0 0
    %387 = vmatpush1.bf16.msra.mxu0 0
    %388 = vmatprep.subr.bf16.mxu0 0
    %389 = vmatpush1.bf16.msra.mxu0 0
    %390 = vmatprep.subr.bf16.mxu0 0
    %391 = vmatpush1.bf16.msra.mxu0 0
    %392 = vmatprep.subr.bf16.mxu0 0
    %393 = vmatpush1.bf16.msra.mxu0 0
    %394 = vmatprep.subr.bf16.mxu0 0
    %395 = vmatpush1.bf16.msra.mxu0 0
    %396 = vmatprep.subr.bf16.mxu0 0
    %397 = vmatpush1.bf16.msra.mxu0 0
    %398 = vmatprep.subr.bf16.mxu0 0
    %399 = vmatpush1.bf16.msra.mxu0 0
    %400 = vmatprep.subr.bf16.mxu0 0
    %401 = vmatpush1.bf16.msra.mxu0 0
    %402 = vmatprep.subr.bf16.mxu0 0
    %403 = vmatpush1.bf16.msra.mxu0 0
    %404 = vmatprep.subr.bf16.mxu0 0
    %405 = vmatpush1.bf16.msra.mxu0 0
    %406 = vmatprep.mubr.bf16.mxu0 0
    %407 = vmatmul.mubr.bf16.gmra.mrb[0].mxu0 %v279
    %v408 = vpop.f32.mrb[0].mxu0
    %v409 = vadd.f32 0.0, %v408
    %v410 = vpop.f32.mrb[0].mxu0
    %v411 = vpop.f32.mrb[0].mxu0
    %v412 = vadd.f32 0.0, %v411
    %v413 = vpop.f32.mrb[0].mxu0
    %414 = vmatprep.mubr.bf16.mxu0 0
    %415 = vmatmul.mubr.bf16.gmra.mrb[0].mxu0 %v282
    %v416 = vpop.f32.mrb[0].mxu0
    %v417 = vadd.f32 0.0, %v416
    %v418 = vpop.f32.mrb[0].mxu0
    %v419 = vpop.f32.mrb[0].mxu0
    %v420 = vadd.f32 0.0, %v419
    %v421 = vpop.f32.mrb[0].mxu0
    %422 = vmatprep.mubr.bf16.mxu0 0
    %423 = vmatmul.mubr.bf16.gmra.mrb[0].mxu0 %v285
    %v424 = vpop.f32.mrb[0].mxu0
    %v425 = vadd.f32 0.0, %v424
    %v426 = vpop.f32.mrb[0].mxu0
    %v427 = vpop.f32.mrb[0].mxu0
    %v428 = vadd.f32 0.0, %v427
    %v429 = vpop.f32.mrb[0].mxu0
    %430 = vmatprep.mubr.bf16.mxu0 0
    %431 = vmatmul.mubr.bf16.gmra.mrb[0].mxu0 %v288
    %v432 = vpop.f32.mrb[0].mxu0
    %v433 = vadd.f32 0.0, %v432
    %v434 = vpop.f32.mrb[0].mxu0
    %v435 = vpop.f32.mrb[0].mxu0
    %v436 = vadd.f32 0.0, %v435
    %v437 = vpop.f32.mrb[0].mxu0
    %438 = vmatprep.mubr.bf16.mxu0 0
    %439 = vmatmul.mubr.bf16.gmra.mrb[0].mxu0 %v291
    %v440 = vpop.f32.mrb[0].mxu0
    %v441 = vadd.f32 0.0, %v440
    %v442 = vpop.f32.mrb[0].mxu0
    %v443 = vpop.f32.mrb[0].mxu0
    %v444 = vadd.f32 0.0, %v443
    %v445 = vpop.f32.mrb[0].mxu0
    %446 = vmatprep.mubr.bf16.mxu0 0
    %447 = vmatmul.mubr.bf16.gmra.mrb[0].mxu0 %v294
    %v448 = vpop.f32.mrb[0].mxu0
    %v449 = vadd.f32 0.0, %v448
    %v450 = vpop.f32.mrb[0].mxu0
    %v451 = vpop.f32.mrb[0].mxu0
    %v452 = vadd.f32 0.0, %v451
    %v453 = vpop.f32.mrb[0].mxu0
    %454 = vmatprep.mubr.bf16.mxu0 0
    %455 = vmatmul.mubr.bf16.gmra.mrb[0].mxu0 %v297
    %v456 = vpop.f32.mrb[0].mxu0
    %v457 = vadd.f32 0.0, %v456
    %v458 = vpop.f32.mrb[0].mxu0
    %v459 = vpop.f32.mrb[0].mxu0
    %v460 = vadd.f32 0.0, %v459
    %v461 = vpop.f32.mrb[0].mxu0
    %462 = vmatprep.mubr.bf16.mxu0 0
    %463 = vmatmul.mubr.bf16.gmra.mrb[0].mxu0 %v300
    %v464 = vpop.f32.mrb[0].mxu0
    %v465 = vadd.f32 0.0, %v464
    %v466 = vpop.f32.mrb[0].mxu0
    %v467 = vpop.f32.mrb[0].mxu0
    %v468 = vadd.f32 0.0, %v467
    %v469 = vpop.f32.mrb[0].mxu0
    %470 = vmatprep.mubr.bf16.mxu0 0
    %471 = vmatmul.mubr.bf16.gmra.mrb[0].mxu0 %v303
    %v472 = vpop.f32.mrb[0].mxu0
    %v473 = vadd.f32 0.0, %v472
    %v474 = vpop.f32.mrb[0].mxu0
    %v475 = vpop.f32.mrb[0].mxu0
    %v476 = vadd.f32 0.0, %v475
    %v477 = vpop.f32.mrb[0].mxu0
    %478 = vmatprep.mubr.bf16.mxu0 0
    %479 = vmatmul.mubr.bf16.gmra.mrb[0].mxu0 %v306
    %v480 = vpop.f32.mrb[0].mxu0
    %v481 = vadd.f32 0.0, %v480
    %v482 = vpop.f32.mrb[0].mxu0
    %v483 = vpop.f32.mrb[0].mxu0
    %v484 = vadd.f32 0.0, %v483
    %v485 = vpop.f32.mrb[0].mxu0
    %486 = vmatprep.mubr.bf16.mxu0 0
    %487 = vmatmul.mubr.bf16.gmra.mrb[0].mxu0 %v309
    %v488 = vpop.f32.mrb[0].mxu0
    %v489 = vadd.f32 0.0, %v488
    %v490 = vpop.f32.mrb[0].mxu0
    %v491 = vpop.f32.mrb[0].mxu0
    %v492 = vadd.f32 0.0, %v491
    %v493 = vpop.f32.mrb[0].mxu0
    %494 = vmatprep.mubr.bf16.mxu0 0
    %495 = vmatmul.mubr.bf16.gmra.mrb[0].mxu0 %v312
    %v496 = vpop.f32.mrb[0].mxu0
    %v497 = vadd.f32 0.0, %v496
    %v498 = vpop.f32.mrb[0].mxu0
    %v499 = vpop.f32.mrb[0].mxu0
    %v500 = vadd.f32 0.0, %v499
    %v501 = vpop.f32.mrb[0].mxu0
    %502 = vmatprep.mubr.bf16.mxu0 0
    %503 = vmatmul.mubr.bf16.gmra.mrb[0].mxu0 %v315
    %v504 = vpop.f32.mrb[0].mxu0
    %v505 = vadd.f32 0.0, %v504
    %v506 = vpop.f32.mrb[0].mxu0
    %v507 = vpop.f32.mrb[0].mxu0
    %v508 = vadd.f32 0.0, %v507
    %v509 = vpop.f32.mrb[0].mxu0
    %510 = vmatprep.mubr.bf16.mxu0 0
    %511 = vmatmul.mubr.bf16.gmra.mrb[0].mxu0 %v318
    %v512 = vpop.f32.mrb[0].mxu0
    %v513 = vadd.f32 0.0, %v512
    %v514 = vpop.f32.mrb[0].mxu0
    %v515 = vpop.f32.mrb[0].mxu0
    %v516 = vadd.f32 0.0, %v515
    %v517 = vpop.f32.mrb[0].mxu0
    %518 = vmatprep.mubr.bf16.mxu0 0
    %519 = vmatmul.mubr.bf16.gmra.mrb[0].mxu0 %v321
    %v520 = vpop.f32.mrb[0].mxu0
    %v521 = vadd.f32 0.0, %v520
    %v522 = vpop.f32.mrb[0].mxu0
    %v523 = vpop.f32.mrb[0].mxu0
    %v524 = vadd.f32 0.0, %v523
    %v525 = vpop.f32.mrb[0].mxu0
    %526 = vmatprep.mubr.bf16.mxu0 0
    %527 = vmatmul.mubr.bf16.gmra.mrb[0].mxu0 %v324
    %v528 = vpop.f32.mrb[0].mxu0
    %v529 = vadd.f32 0.0, %v528
    %v530 = vpop.f32.mrb[0].mxu0
    %v531 = vpop.f32.mrb[0].mxu0
    %v532 = vadd.f32 0.0, %v531
    %v533 = vpop.f32.mrb[0].mxu0
    %534 = vmatprep.mubr.bf16.mxu0 0
    %535 = vmatmul.mubr.bf16.gmra.mrb[0].mxu0 %v327
    %v536 = vpop.f32.mrb[0].mxu0
    %v537 = vadd.f32 0.0, %v536
    %v538 = vpop.f32.mrb[0].mxu0
    %v539 = vpop.f32.mrb[0].mxu0
    %v540 = vadd.f32 0.0, %v539
    %v541 = vpop.f32.mrb[0].mxu0
    %542 = vmatprep.mubr.bf16.mxu0 0
    %543 = vmatmul.mubr.bf16.gmra.mrb[0].mxu0 %v330
    %v544 = vpop.f32.mrb[0].mxu0
    %v545 = vadd.f32 0.0, %v544
    %v546 = vpop.f32.mrb[0].mxu0
    %v547 = vpop.f32.mrb[0].mxu0
    %v548 = vadd.f32 0.0, %v547
    %v549 = vpop.f32.mrb[0].mxu0
    %550 = vmatprep.mubr.bf16.mxu0 0
    %551 = vmatmul.mubr.bf16.gmra.mrb[0].mxu0 %v333
    %v552 = vpop.f32.mrb[0].mxu0
    %v553 = vadd.f32 0.0, %v552
    %v554 = vpop.f32.mrb[0].mxu0
    %v555 = vpop.f32.mrb[0].mxu0
    %v556 = vadd.f32 0.0, %v555
    %v557 = vpop.f32.mrb[0].mxu0
    %558 = vmatprep.mubr.bf16.mxu0 0
    %559 = vmatmul.mubr.bf16.gmra.mrb[0].mxu0 %v336
    %v560 = vpop.f32.mrb[0].mxu0
    %v561 = vadd.f32 0.0, %v560
    %v562 = vpop.f32.mrb[0].mxu0
    %v563 = vpop.f32.mrb[0].mxu0
    %v564 = vadd.f32 0.0, %v563
    %v565 = vpop.f32.mrb[0].mxu0
    %566 = vmatprep.mubr.bf16.mxu0 0
    %567 = vmatmul.mubr.bf16.gmra.mrb[0].mxu0 %v339
    %v568 = vpop.f32.mrb[0].mxu0
    %v569 = vadd.f32 0.0, %v568
    %v570 = vpop.f32.mrb[0].mxu0
    %v571 = vpop.f32.mrb[0].mxu0
    %v572 = vadd.f32 0.0, %v571
    %v573 = vpop.f32.mrb[0].mxu0
    %574 = vmatprep.mubr.bf16.mxu0 0
    %575 = vmatmul.mubr.bf16.gmra.mrb[0].mxu0 %v342
    %v576 = vpop.f32.mrb[0].mxu0
    %v577 = vadd.f32 0.0, %v576
    %v578 = vpop.f32.mrb[0].mxu0
    %v579 = vpop.f32.mrb[0].mxu0
    %v580 = vadd.f32 0.0, %v579
    %v581 = vpop.f32.mrb[0].mxu0
    %582 = vmatprep.mubr.bf16.mxu0 0
    %583 = vmatmul.mubr.bf16.gmra.mrb[0].mxu0 %v345
    %v584 = vpop.f32.mrb[0].mxu0
    %v585 = vadd.f32 0.0, %v584
    %v586 = vpop.f32.mrb[0].mxu0
    %v587 = vpop.f32.mrb[0].mxu0
    %v588 = vadd.f32 0.0, %v587
    %v589 = vpop.f32.mrb[0].mxu0
    %590 = vmatprep.mubr.bf16.mxu0 0
    %591 = vmatmul.mubr.bf16.gmra.mrb[0].mxu0 %v348
    %v592 = vpop.f32.mrb[0].mxu0
    %v593 = vadd.f32 0.0, %v592
    %v594 = vpop.f32.mrb[0].mxu0
    %v595 = vpop.f32.mrb[0].mxu0
    %v596 = vadd.f32 0.0, %v595
    %v597 = vpop.f32.mrb[0].mxu0
    %598 = vmatprep.mubr.bf16.mxu0 0
    %599 = vmatmul.mubr.bf16.gmra.mrb[0].mxu0 %v351
    %v600 = vpop.f32.mrb[0].mxu0
    %v601 = vadd.f32 0.0, %v600
    %v602 = vpop.f32.mrb[0].mxu0
    %v603 = vpop.f32.mrb[0].mxu0
    %v604 = vadd.f32 0.0, %v603
    %v605 = vpop.f32.mrb[0].mxu0
    %606 = vmatprep.mubr.bf16.mxu0 0
    %607 = vmatmul.mubr.bf16.gmra.mrb[0].mxu0 %v354
    %v608 = vpop.f32.mrb[0].mxu0
    %v609 = vadd.f32 0.0, %v608
    %v610 = vpop.f32.mrb[0].mxu0
    %v611 = vpop.f32.mrb[0].mxu0
    %v612 = vadd.f32 0.0, %v611
    %v613 = vpop.f32.mrb[0].mxu0
    %614 = vmatprep.mubr.bf16.mxu0 0
    %615 = vmatmul.mubr.bf16.gmra.mrb[0].mxu0 %v357
    %v616 = vpop.f32.mrb[0].mxu0
    %v617 = vadd.f32 0.0, %v616
    %v618 = vpop.f32.mrb[0].mxu0
    %v619 = vpop.f32.mrb[0].mxu0
    %v620 = vadd.f32 0.0, %v619
    %v621 = vpop.f32.mrb[0].mxu0
    %622 = vmatprep.mubr.bf16.mxu0 0
    %623 = vmatmul.mubr.bf16.gmra.mrb[0].mxu0 %v360
    %v624 = vpop.f32.mrb[0].mxu0
    %v625 = vadd.f32 0.0, %v624
    %v626 = vpop.f32.mrb[0].mxu0
    %v627 = vpop.f32.mrb[0].mxu0
    %v628 = vadd.f32 0.0, %v627
    %v629 = vpop.f32.mrb[0].mxu0
    %630 = vmatprep.mubr.bf16.mxu0 0
    %631 = vmatmul.mubr.bf16.gmra.mrb[0].mxu0 %v363
    %v632 = vpop.f32.mrb[0].mxu0
    %v633 = vadd.f32 0.0, %v632
    %v634 = vpop.f32.mrb[0].mxu0
    %v635 = vpop.f32.mrb[0].mxu0
    %v636 = vadd.f32 0.0, %v635
    %v637 = vpop.f32.mrb[0].mxu0
    %638 = vmatprep.mubr.bf16.mxu0 0
    %639 = vmatmul.mubr.bf16.gmra.mrb[0].mxu0 %v366
    %v640 = vpop.f32.mrb[0].mxu0
    %v641 = vadd.f32 0.0, %v640
    %v642 = vpop.f32.mrb[0].mxu0
    %v643 = vpop.f32.mrb[0].mxu0
    %v644 = vadd.f32 0.0, %v643
    %v645 = vpop.f32.mrb[0].mxu0
    %646 = vmatprep.mubr.bf16.mxu0 0
    %647 = vmatmul.mubr.bf16.gmra.mrb[0].mxu0 %v369
    %v648 = vpop.f32.mrb[0].mxu0
    %v649 = vadd.f32 0.0, %v648
    %v650 = vpop.f32.mrb[0].mxu0
    %v651 = vpop.f32.mrb[0].mxu0
    %v652 = vadd.f32 0.0, %v651
    %v653 = vpop.f32.mrb[0].mxu0
    %654 = vmatprep.mubr.bf16.mxu0 0
    %655 = vmatmul.mubr.bf16.gmra.mrb[0].mxu0 %v372
    %v656 = vpop.f32.mrb[0].mxu0
    %v657 = vadd.f32 0.0, %v656
    %v658 = vpop.f32.mrb[0].mxu0
    %v659 = vpop.f32.mrb[0].mxu0
    %v660 = vadd.f32 0.0, %v659
    %v661 = vpop.f32.mrb[0].mxu0
    %662 = vdwg.mxu0
    %v663 = vmax.f32 %v409, %v473
    %v664 = vmax.f32 %v412, %v476
    %v665 = vmax.f32 %v417, %v481
    %v666 = vmax.f32 %v420, %v484
    %v667 = vmax.f32 %v425, %v489
    %v668 = vmax.f32 %v428, %v492
    %v669 = vmax.f32 %v433, %v497
    %v670 = vmax.f32 %v436, %v500
    %v671 = vmax.f32 %v441, %v505
    %v672 = vmax.f32 %v444, %v508
    %v673 = vmax.f32 %v449, %v513
    %v674 = vmax.f32 %v452, %v516
    %v675 = vmax.f32 %v457, %v521
    %v676 = vmax.f32 %v460, %v524
    %v677 = vmax.f32 %v465, %v529
    %v678 = vmax.f32 %v468, %v532
    %v679 = vmax.f32 %v537, %v601
    %v680 = vmax.f32 %v540, %v604
    %v681 = vmax.f32 %v545, %v609
    %v682 = vmax.f32 %v548, %v612
    %v683 = vmax.f32 %v553, %v617
    %v684 = vmax.f32 %v556, %v620
    %v685 = vmax.f32 %v561, %v625
    %v686 = vmax.f32 %v564, %v628
    %v687 = vmax.f32 %v569, %v633
    %v688 = vmax.f32 %v572, %v636
    %v689 = vmax.f32 %v577, %v641
    %v690 = vmax.f32 %v580, %v644
    %v691 = vmax.f32 %v585, %v649
    %v692 = vmax.f32 %v588, %v652
    %v693 = vmax.f32 %v593, %v657
    %v694 = vmax.f32 %v596, %v660
    %v695 = vmax.f32 %v663, %v679
    %v696 = vmax.f32 %v664, %v680
    %v697 = vmax.f32 %v665, %v681
    %v698 = vmax.f32 %v666, %v682
    %v699 = vmax.f32 %v667, %v683
    %v700 = vmax.f32 %v668, %v684
    %v701 = vmax.f32 %v669, %v685
    %v702 = vmax.f32 %v670, %v686
    %v703 = vmax.f32 %v671, %v687
    %v704 = vmax.f32 %v672, %v688
    %v705 = vmax.f32 %v673, %v689
    %v706 = vmax.f32 %v674, %v690
    %v707 = vmax.f32 %v675, %v691
    %v708 = vmax.f32 %v676, %v692
    %v709 = vmax.f32 %v677, %v693
    %v710 = vmax.f32 %v678, %v694
    %v711 = vld [vmem:[%s2] sm:$0x1]
    %v713 = vlaneseq
    %v714 = vshrl.u32 %v713, 7
    %v715 = vsub.s32 0, %v714
    %v716 = vrot.slane %v711, %v715
    %v718 = vadd.f32 %v695, %v716
    %v719 = vadd.f32 %v696, %v716
    %v720 = vadd.f32 %v697, %v716
    %v721 = vadd.f32 %v698, %v716
    %v722 = vadd.f32 %v699, %v716
    %v723 = vadd.f32 %v700, %v716
    %v724 = vadd.f32 %v701, %v716
    %v725 = vadd.f32 %v702, %v716
    %v726 = vadd.f32 %v703, %v716
    %v727 = vadd.f32 %v704, %v716
    %v728 = vadd.f32 %v705, %v716
    %v729 = vadd.f32 %v706, %v716
    %v730 = vadd.f32 %v707, %v716
    %v731 = vadd.f32 %v708, %v716
    %v732 = vadd.f32 %v709, %v716
    %v733 = vadd.f32 %v710, %v716
    %v734 = vmax.f32 %v718, 0.0
    %v735 = vmax.f32 %v719, 0.0
    %v736 = vmax.f32 %v720, 0.0
    %v737 = vmax.f32 %v721, 0.0
    %v738 = vmax.f32 %v722, 0.0
    %v739 = vmax.f32 %v723, 0.0
    %v740 = vmax.f32 %v724, 0.0
    %v741 = vmax.f32 %v725, 0.0
    %v742 = vmax.f32 %v726, 0.0
    %v743 = vmax.f32 %v727, 0.0
    %v744 = vmax.f32 %v728, 0.0
    %v745 = vmax.f32 %v729, 0.0
    %v746 = vmax.f32 %v730, 0.0
    %v747 = vmax.f32 %v731, 0.0
    %v748 = vmax.f32 %v732, 0.0
    %v749 = vmax.f32 %v733, 0.0
    %v750 = vpack.c.bf16 %v735, %v734
    %v751 = vpack.c.bf16 %v737, %v736
    %v752 = vpack.c.bf16 %v739, %v738
    %v753 = vpack.c.bf16 %v741, %v740
    %v754 = vpack.c.bf16 %v743, %v742
    %v755 = vpack.c.bf16 %v745, %v744
    %v756 = vpack.c.bf16 %v747, %v746
    %v757 = vpack.c.bf16 %v749, %v748
    %v758 = vld [vmem:[%s3] sm:$0xf]
    %v759 = vld [vmem:[%s3 + $0x4] sm:$0xf]
    %v760 = vld [vmem:[%s3 + $0x8] sm:$0xf]
    %v761 = vld [vmem:[%s3 + $0xc] sm:$0xf]
    %v762 = vld [vmem:[%s3 + $0x10] sm:$0xf]
    %v763 = vld [vmem:[%s3 + $0x14] sm:$0xf]
    %v764 = vld [vmem:[%s3 + $0x18] sm:$0xf]
    %v765 = vld [vmem:[%s3 + $0x1c] sm:$0xf]
    %v766 = vld [vmem:[%s3 + $0x20] sm:$0xf]
    %v767 = vld [vmem:[%s3 + $0x24] sm:$0xf]
    %v768 = vld [vmem:[%s3 + $0x28] sm:$0xf]
    %v769 = vld [vmem:[%s3 + $0x2c] sm:$0xf]
    %v770 = vld [vmem:[%s3 + $0x30] sm:$0xf]
    %v771 = vld [vmem:[%s3 + $0x34] sm:$0xf]
    %v772 = vld [vmem:[%s3 + $0x38] sm:$0xf]
    %v773 = vld [vmem:[%s3 + $0x3c] sm:$0xf]
    %v790 = vunpack.c.l.b16 %v758
    %v791 = vunpack.c.l.b16 %v759
    %v792 = vunpack.c.l.b16 %v760
    %v793 = vunpack.c.l.b16 %v761
    %v794 = vunpack.c.l.b16 %v762
    %v795 = vunpack.c.l.b16 %v763
    %v796 = vunpack.c.l.b16 %v764
    %v797 = vunpack.c.l.b16 %v765
    %v798 = vunpack.c.l.b16 %v766
    %v799 = vunpack.c.l.b16 %v767
    %v800 = vunpack.c.l.b16 %v768
    %v801 = vunpack.c.l.b16 %v769
    %v802 = vunpack.c.l.b16 %v770
    %v803 = vunpack.c.l.b16 %v771
    %v804 = vunpack.c.l.b16 %v772
    %v805 = vunpack.c.l.b16 %v773
    %v806 = vpack.c.b16 %v791, %v790
    %v807 = vpack.c.b16 %v793, %v792
    %v808 = vpack.c.b16 %v795, %v794
    %v809 = vpack.c.b16 %v797, %v796
    %v810 = vpack.c.b16 %v799, %v798
    %v811 = vpack.c.b16 %v801, %v800
    %v812 = vpack.c.b16 %v803, %v802
    %v813 = vpack.c.b16 %v805, %v804
    %822 = vmatprep.subr.bf16.mxu0 0
    %823 = vmatpush1.bf16.msra.mxu0 %v750
    %824 = vmatprep.subr.bf16.mxu0 0
    %825 = vmatpush1.bf16.msra.mxu0 %v751
    %826 = vmatprep.subr.bf16.mxu0 0
    %827 = vmatpush1.bf16.msra.mxu0 %v752
    %828 = vmatprep.subr.bf16.mxu0 0
    %829 = vmatpush1.bf16.msra.mxu0 %v753
    %830 = vmatprep.subr.bf16.mxu0 0
    %831 = vmatpush1.bf16.msra.mxu0 %v754
    %832 = vmatprep.subr.bf16.mxu0 0
    %833 = vmatpush1.bf16.msra.mxu0 %v755
    %834 = vmatprep.subr.bf16.mxu0 0
    %835 = vmatpush1.bf16.msra.mxu0 %v756
    %836 = vmatprep.subr.bf16.mxu0 0
    %837 = vmatpush1.bf16.msra.mxu0 %v757
    %838 = vmatprep.subr.bf16.mxu0 0
    %839 = vmatpush1.bf16.msra.mxu0 0
    %840 = vmatprep.subr.bf16.mxu0 0
    %841 = vmatpush1.bf16.msra.mxu0 0
    %842 = vmatprep.subr.bf16.mxu0 0
    %843 = vmatpush1.bf16.msra.mxu0 0
    %844 = vmatprep.subr.bf16.mxu0 0
    %845 = vmatpush1.bf16.msra.mxu0 0
    %846 = vmatprep.subr.bf16.mxu0 0
    %847 = vmatpush1.bf16.msra.mxu0 0
    %848 = vmatprep.subr.bf16.mxu0 0
    %849 = vmatpush1.bf16.msra.mxu0 0
    %850 = vmatprep.subr.bf16.mxu0 0
    %851 = vmatpush1.bf16.msra.mxu0 0
    %852 = vmatprep.subr.bf16.mxu0 0
    %853 = vmatpush1.bf16.msra.mxu0 0
    %854 = vmatprep.mubr.bf16.mxu0 0
    %855 = vmatmul.mubr.bf16.gmra.mrb[0].mxu0 %v806
    %v856 = vpop.f32.mrb[0].mxu0
    %v857 = vadd.f32 0.0, %v856
    %v858 = vpop.f32.mrb[0].mxu0
    %v859 = vpop.f32.mrb[0].mxu0
    %v860 = vadd.f32 0.0, %v859
    %v861 = vpop.f32.mrb[0].mxu0
    %862 = vmatprep.mubr.bf16.mxu0 0
    %863 = vmatmul.mubr.bf16.gmra.mrb[0].mxu0 %v807
    %v864 = vpop.f32.mrb[0].mxu0
    %v865 = vadd.f32 0.0, %v864
    %v866 = vpop.f32.mrb[0].mxu0
    %v867 = vpop.f32.mrb[0].mxu0
    %v868 = vadd.f32 0.0, %v867
    %v869 = vpop.f32.mrb[0].mxu0
    %870 = vmatprep.mubr.bf16.mxu0 0
    %871 = vmatmul.mubr.bf16.gmra.mrb[0].mxu0 %v808
    %v872 = vpop.f32.mrb[0].mxu0
    %v873 = vadd.f32 0.0, %v872
    %v874 = vpop.f32.mrb[0].mxu0
    %v875 = vpop.f32.mrb[0].mxu0
    %v876 = vadd.f32 0.0, %v875
    %v877 = vpop.f32.mrb[0].mxu0
    %878 = vmatprep.mubr.bf16.mxu0 0
    %879 = vmatmul.mubr.bf16.gmra.mrb[0].mxu0 %v809
    %v880 = vpop.f32.mrb[0].mxu0
    %v881 = vadd.f32 0.0, %v880
    %v882 = vpop.f32.mrb[0].mxu0
    %v883 = vpop.f32.mrb[0].mxu0
    %v884 = vadd.f32 0.0, %v883
    %v885 = vpop.f32.mrb[0].mxu0
    %886 = vmatprep.mubr.bf16.mxu0 0
    %887 = vmatmul.mubr.bf16.gmra.mrb[0].mxu0 %v810
    %v888 = vpop.f32.mrb[0].mxu0
    %v889 = vadd.f32 0.0, %v888
    %v890 = vpop.f32.mrb[0].mxu0
    %v891 = vpop.f32.mrb[0].mxu0
    %v892 = vadd.f32 0.0, %v891
    %v893 = vpop.f32.mrb[0].mxu0
    %894 = vmatprep.mubr.bf16.mxu0 0
    %895 = vmatmul.mubr.bf16.gmra.mrb[0].mxu0 %v811
    %v896 = vpop.f32.mrb[0].mxu0
    %v897 = vadd.f32 0.0, %v896
    %v898 = vpop.f32.mrb[0].mxu0
    %v899 = vpop.f32.mrb[0].mxu0
    %v900 = vadd.f32 0.0, %v899
    %v901 = vpop.f32.mrb[0].mxu0
    %902 = vmatprep.mubr.bf16.mxu0 0
    %903 = vmatmul.mubr.bf16.gmra.mrb[0].mxu0 %v812
    %v904 = vpop.f32.mrb[0].mxu0
    %v905 = vadd.f32 0.0, %v904
    %v906 = vpop.f32.mrb[0].mxu0
    %v907 = vpop.f32.mrb[0].mxu0
    %v908 = vadd.f32 0.0, %v907
    %v909 = vpop.f32.mrb[0].mxu0
    %910 = vmatprep.mubr.bf16.mxu0 0
    %911 = vmatmul.mubr.bf16.gmra.mrb[0].mxu0 %v813
    %v912 = vpop.f32.mrb[0].mxu0
    %v913 = vadd.f32 0.0, %v912
    %v914 = vpop.f32.mrb[0].mxu0
    %v915 = vpop.f32.mrb[0].mxu0
    %v916 = vadd.f32 0.0, %v915
    %v917 = vpop.f32.mrb[0].mxu0
    %918 = vdwg.mxu0
    %v919 = vpack.c.bf16 %v860, %v857
    %v920 = vpack.c.bf16 %v868, %v865
    %v921 = vpack.c.bf16 %v876, %v873
    %v922 = vpack.c.bf16 %v884, %v881
    %v923 = vpack.c.bf16 %v892, %v889
    %v924 = vpack.c.bf16 %v900, %v897
    %v925 = vpack.c.bf16 %v908, %v905
    %v926 = vpack.c.bf16 %v916, %v913
    %v927 = vld [vmem:[%s4] sm:$0xf]
    %v928 = vld [vmem:[%s4 + $0x4] sm:$0xf]
    %s929 = scalar_lea.vmem %s3, 64
    %v930 = vld [vmem:[%s929] sm:$0xf]
    %v931 = vld [vmem:[%s929 + $0x4] sm:$0xf]
    %v932 = vld [vmem:[%s929 + $0x8] sm:$0xf]
    %v933 = vld [vmem:[%s929 + $0xc] sm:$0xf]
    %v934 = vld [vmem:[%s929 + $0x10] sm:$0xf]
    %v935 = vld [vmem:[%s929 + $0x14] sm:$0xf]
    %v936 = vld [vmem:[%s929 + $0x18] sm:$0xf]
    %v937 = vld [vmem:[%s929 + $0x1c] sm:$0xf]
    %v938 = vld [vmem:[%s929 + $0x20] sm:$0xf]
    %v939 = vld [vmem:[%s929 + $0x24] sm:$0xf]
    %v940 = vld [vmem:[%s929 + $0x28] sm:$0xf]
    %v941 = vld [vmem:[%s929 + $0x2c] sm:$0xf]
    %v942 = vld [vmem:[%s929 + $0x30] sm:$0xf]
    %v943 = vld [vmem:[%s929 + $0x34] sm:$0xf]
    %v944 = vld [vmem:[%s929 + $0x38] sm:$0xf]
    %v945 = vld [vmem:[%s929 + $0x3c] sm:$0xf]
    %v962 = vunpack.c.l.b16 %v930
    %v963 = vunpack.c.l.b16 %v931
    %v964 = vunpack.c.l.b16 %v932
    %v965 = vunpack.c.l.b16 %v933
    %v966 = vunpack.c.l.b16 %v934
    %v967 = vunpack.c.l.b16 %v935
    %v968 = vunpack.c.l.b16 %v936
    %v969 = vunpack.c.l.b16 %v937
    %v970 = vunpack.c.l.b16 %v938
    %v971 = vunpack.c.l.b16 %v939
    %v972 = vunpack.c.l.b16 %v940
    %v973 = vunpack.c.l.b16 %v941
    %v974 = vunpack.c.l.b16 %v942
    %v975 = vunpack.c.l.b16 %v943
    %v976 = vunpack.c.l.b16 %v944
    %v977 = vunpack.c.l.b16 %v945
    %v978 = vpack.c.b16 %v963, %v962
    %v979 = vpack.c.b16 %v965, %v964
    %v980 = vpack.c.b16 %v967, %v966
    %v981 = vpack.c.b16 %v969, %v968
    %v982 = vpack.c.b16 %v971, %v970
    %v983 = vpack.c.b16 %v973, %v972
    %v984 = vpack.c.b16 %v975, %v974
    %v985 = vpack.c.b16 %v977, %v976
    %994 = vmatprep.subr.bf16.mxu0 0
    %995 = vmatpush1.bf16.msra.mxu0 %v750
    %996 = vmatprep.subr.bf16.mxu0 0
    %997 = vmatpush1.bf16.msra.mxu0 %v751
    %998 = vmatprep.subr.bf16.mxu0 0
    %999 = vmatpush1.bf16.msra.mxu0 %v752
    %1000 = vmatprep.subr.bf16.mxu0 0
    %1001 = vmatpush1.bf16.msra.mxu0 %v753
    %1002 = vmatprep.subr.bf16.mxu0 0
    %1003 = vmatpush1.bf16.msra.mxu0 %v754
    %1004 = vmatprep.subr.bf16.mxu0 0
    %1005 = vmatpush1.bf16.msra.mxu0 %v755
    %1006 = vmatprep.subr.bf16.mxu0 0
    %1007 = vmatpush1.bf16.msra.mxu0 %v756
    %1008 = vmatprep.subr.bf16.mxu0 0
    %1009 = vmatpush1.bf16.msra.mxu0 %v757
    %1010 = vmatprep.subr.bf16.mxu0 0
    %1011 = vmatpush1.bf16.msra.mxu0 0
    %1012 = vmatprep.subr.bf16.mxu0 0
    %1013 = vmatpush1.bf16.msra.mxu0 0
    %1014 = vmatprep.subr.bf16.mxu0 0
    %1015 = vmatpush1.bf16.msra.mxu0 0
    %1016 = vmatprep.subr.bf16.mxu0 0
    %1017 = vmatpush1.bf16.msra.mxu0 0
    %1018 = vmatprep.subr.bf16.mxu0 0
    %1019 = vmatpush1.bf16.msra.mxu0 0
    %1020 = vmatprep.subr.bf16.mxu0 0
    %1021 = vmatpush1.bf16.msra.mxu0 0
    %1022 = vmatprep.subr.bf16.mxu0 0
    %1023 = vmatpush1.bf16.msra.mxu0 0
    %1024 = vmatprep.subr.bf16.mxu0 0
    %1025 = vmatpush1.bf16.msra.mxu0 0
    %1026 = vmatprep.mubr.bf16.mxu0 0
    %1027 = vmatmul.mubr.bf16.gmra.mrb[0].mxu0 %v978
    %v1028 = vpop.f32.mrb[0].mxu0
    %v1029 = vadd.f32 0.0, %v1028
    %v1030 = vpop.f32.mrb[0].mxu0
    %v1031 = vpop.f32.mrb[0].mxu0
    %v1032 = vadd.f32 0.0, %v1031
    %v1033 = vpop.f32.mrb[0].mxu0
    %1034 = vmatprep.mubr.bf16.mxu0 0
    %1035 = vmatmul.mubr.bf16.gmra.mrb[0].mxu0 %v979
    %v1036 = vpop.f32.mrb[0].mxu0
    %v1037 = vadd.f32 0.0, %v1036
    %v1038 = vpop.f32.mrb[0].mxu0
    %v1039 = vpop.f32.mrb[0].mxu0
    %v1040 = vadd.f32 0.0, %v1039
    %v1041 = vpop.f32.mrb[0].mxu0
    %1042 = vmatprep.mubr.bf16.mxu0 0
    %1043 = vmatmul.mubr.bf16.gmra.mrb[0].mxu0 %v980
    %v1044 = vpop.f32.mrb[0].mxu0
    %v1045 = vadd.f32 0.0, %v1044
    %v1046 = vpop.f32.mrb[0].mxu0
    %v1047 = vpop.f32.mrb[0].mxu0
    %v1048 = vadd.f32 0.0, %v1047
    %v1049 = vpop.f32.mrb[0].mxu0
    %1050 = vmatprep.mubr.bf16.mxu0 0
    %1051 = vmatmul.mubr.bf16.gmra.mrb[0].mxu0 %v981
    %v1052 = vpop.f32.mrb[0].mxu0
    %v1053 = vadd.f32 0.0, %v1052
    %v1054 = vpop.f32.mrb[0].mxu0
    %v1055 = vpop.f32.mrb[0].mxu0
    %v1056 = vadd.f32 0.0, %v1055
    %v1057 = vpop.f32.mrb[0].mxu0
    %1058 = vmatprep.mubr.bf16.mxu0 0
    %1059 = vmatmul.mubr.bf16.gmra.mrb[0].mxu0 %v982
    %v1060 = vpop.f32.mrb[0].mxu0
    %v1061 = vadd.f32 0.0, %v1060
    %v1062 = vpop.f32.mrb[0].mxu0
    %v1063 = vpop.f32.mrb[0].mxu0
    %v1064 = vadd.f32 0.0, %v1063
    %v1065 = vpop.f32.mrb[0].mxu0
    %1066 = vmatprep.mubr.bf16.mxu0 0
    %1067 = vmatmul.mubr.bf16.gmra.mrb[0].mxu0 %v983
    %v1068 = vpop.f32.mrb[0].mxu0
    %v1069 = vadd.f32 0.0, %v1068
    %v1070 = vpop.f32.mrb[0].mxu0
    %v1071 = vpop.f32.mrb[0].mxu0
    %v1072 = vadd.f32 0.0, %v1071
    %v1073 = vpop.f32.mrb[0].mxu0
    %1074 = vmatprep.mubr.bf16.mxu0 0
    %1075 = vmatmul.mubr.bf16.gmra.mrb[0].mxu0 %v984
    %v1076 = vpop.f32.mrb[0].mxu0
    %v1077 = vadd.f32 0.0, %v1076
    %v1078 = vpop.f32.mrb[0].mxu0
    %v1079 = vpop.f32.mrb[0].mxu0
    %v1080 = vadd.f32 0.0, %v1079
    %v1081 = vpop.f32.mrb[0].mxu0
    %1082 = vmatprep.mubr.bf16.mxu0 0
    %1083 = vmatmul.mubr.bf16.gmra.mrb[0].mxu0 %v985
    %v1084 = vpop.f32.mrb[0].mxu0
    %v1085 = vadd.f32 0.0, %v1084
    %v1086 = vpop.f32.mrb[0].mxu0
    %v1087 = vpop.f32.mrb[0].mxu0
    %v1088 = vadd.f32 0.0, %v1087
    %v1089 = vpop.f32.mrb[0].mxu0
    %1090 = vdwg.mxu0
    %v1091 = vpack.c.bf16 %v1032, %v1029
    %v1092 = vpack.c.bf16 %v1040, %v1037
    %v1093 = vpack.c.bf16 %v1048, %v1045
    %v1094 = vpack.c.bf16 %v1056, %v1053
    %v1095 = vpack.c.bf16 %v1064, %v1061
    %v1096 = vpack.c.bf16 %v1072, %v1069
    %v1097 = vpack.c.bf16 %v1080, %v1077
    %v1098 = vpack.c.bf16 %v1088, %v1085
    %s1099 = scalar_lea.vmem %s4, 8
    %v1100 = vld [vmem:[%s1099] sm:$0xf]
    %v1101 = vld [vmem:[%s1099 + $0x4] sm:$0xf]
    %v1104 = vunpack.c.l.b16 %v1100
    %v1105 = vunpack.c.l.b16 %v1101
    %v1106 = vpack.c.b16 %v1105, %v1104
    %vm1108 = vcmask 130048
    %v1110 = vsel %vm1108, %v1091, 0
    %v1113 = vsel %vm1108, %v1092, 0
    %v1116 = vsel %vm1108, %v1093, 0
    %v1119 = vsel %vm1108, %v1094, 0
    %v1122 = vsel %vm1108, %v1095, 0
    %v1125 = vsel %vm1108, %v1096, 0
    %v1128 = vsel %vm1108, %v1097, 0
    %v1131 = vsel %vm1108, %v1098, 0
    %1133 = vmatprep.subr.bf16.mxu0 0
    %1134 = vmatpush1.bf16.msra.mxu0 %v1106
    %1135 = vmatprep.subr.bf16.mxu0 0
    %1136 = vmatpush1.bf16.msra.mxu0 0
    %1137 = vmatprep.subr.bf16.mxu0 0
    %1138 = vmatpush1.bf16.msra.mxu0 0
    %1139 = vmatprep.subr.bf16.mxu0 0
    %1140 = vmatpush1.bf16.msra.mxu0 0
    %1141 = vmatprep.subr.bf16.mxu0 0
    %1142 = vmatpush1.bf16.msra.mxu0 0
    %1143 = vmatprep.subr.bf16.mxu0 0
    %1144 = vmatpush1.bf16.msra.mxu0 0
    %1145 = vmatprep.subr.bf16.mxu0 0
    %1146 = vmatpush1.bf16.msra.mxu0 0
    %1147 = vmatprep.subr.bf16.mxu0 0
    %1148 = vmatpush1.bf16.msra.mxu0 0
    %1149 = vmatprep.subr.bf16.mxu0 0
    %1150 = vmatpush1.bf16.msra.mxu0 0
    %1151 = vmatprep.subr.bf16.mxu0 0
    %1152 = vmatpush1.bf16.msra.mxu0 0
    %1153 = vmatprep.subr.bf16.mxu0 0
    %1154 = vmatpush1.bf16.msra.mxu0 0
    %1155 = vmatprep.subr.bf16.mxu0 0
    %1156 = vmatpush1.bf16.msra.mxu0 0
    %1157 = vmatprep.subr.bf16.mxu0 0
    %1158 = vmatpush1.bf16.msra.mxu0 0
    %1159 = vmatprep.subr.bf16.mxu0 0
    %1160 = vmatpush1.bf16.msra.mxu0 0
    %1161 = vmatprep.subr.bf16.mxu0 0
    %1162 = vmatpush1.bf16.msra.mxu0 0
    %1163 = vmatprep.subr.bf16.mxu0 0
    %1164 = vmatpush1.bf16.msra.mxu0 0
    %1165 = vmatprep.mubr.bf16.mxu0 0
    %1166 = vmatmul.mubr.bf16.gmra.mrb[0].mxu0 %v1110
    %v1167 = vpop.f32.mrb[0].mxu0
    %v1168 = vadd.f32 0.0, %v1167
    %v1169 = vpop.f32.mrb[0].mxu0
    %v1170 = vpop.f32.mrb[0].mxu0
    %v1171 = vadd.f32 0.0, %v1170
    %v1172 = vpop.f32.mrb[0].mxu0
    %1173 = vmatprep.mubr.bf16.mxu0 0
    %1174 = vmatmul.mubr.bf16.gmra.mrb[0].mxu0 %v1113
    %v1175 = vpop.f32.mrb[0].mxu0
    %v1176 = vadd.f32 0.0, %v1175
    %v1177 = vpop.f32.mrb[0].mxu0
    %v1178 = vpop.f32.mrb[0].mxu0
    %v1179 = vadd.f32 0.0, %v1178
    %v1180 = vpop.f32.mrb[0].mxu0
    %1181 = vmatprep.mubr.bf16.mxu0 0
    %1182 = vmatmul.mubr.bf16.gmra.mrb[0].mxu0 %v1116
    %v1183 = vpop.f32.mrb[0].mxu0
    %v1184 = vadd.f32 0.0, %v1183
    %v1185 = vpop.f32.mrb[0].mxu0
    %v1186 = vpop.f32.mrb[0].mxu0
    %v1187 = vadd.f32 0.0, %v1186
    %v1188 = vpop.f32.mrb[0].mxu0
    %1189 = vmatprep.mubr.bf16.mxu0 0
    %1190 = vmatmul.mubr.bf16.gmra.mrb[0].mxu0 %v1119
    %v1191 = vpop.f32.mrb[0].mxu0
    %v1192 = vadd.f32 0.0, %v1191
    %v1193 = vpop.f32.mrb[0].mxu0
    %v1194 = vpop.f32.mrb[0].mxu0
    %v1195 = vadd.f32 0.0, %v1194
    %v1196 = vpop.f32.mrb[0].mxu0
    %1197 = vmatprep.mubr.bf16.mxu0 0
    %1198 = vmatmul.mubr.bf16.gmra.mrb[0].mxu0 %v1122
    %v1199 = vpop.f32.mrb[0].mxu0
    %v1200 = vadd.f32 0.0, %v1199
    %v1201 = vpop.f32.mrb[0].mxu0
    %v1202 = vpop.f32.mrb[0].mxu0
    %v1203 = vadd.f32 0.0, %v1202
    %v1204 = vpop.f32.mrb[0].mxu0
    %1205 = vmatprep.mubr.bf16.mxu0 0
    %1206 = vmatmul.mubr.bf16.gmra.mrb[0].mxu0 %v1125
    %v1207 = vpop.f32.mrb[0].mxu0
    %v1208 = vadd.f32 0.0, %v1207
    %v1209 = vpop.f32.mrb[0].mxu0
    %v1210 = vpop.f32.mrb[0].mxu0
    %v1211 = vadd.f32 0.0, %v1210
    %v1212 = vpop.f32.mrb[0].mxu0
    %1213 = vmatprep.mubr.bf16.mxu0 0
    %1214 = vmatmul.mubr.bf16.gmra.mrb[0].mxu0 %v1128
    %v1215 = vpop.f32.mrb[0].mxu0
    %v1216 = vadd.f32 0.0, %v1215
    %v1217 = vpop.f32.mrb[0].mxu0
    %v1218 = vpop.f32.mrb[0].mxu0
    %v1219 = vadd.f32 0.0, %v1218
    %v1220 = vpop.f32.mrb[0].mxu0
    %1221 = vmatprep.mubr.bf16.mxu0 0
    %1222 = vmatmul.mubr.bf16.gmra.mrb[0].mxu0 %v1131
    %v1223 = vpop.f32.mrb[0].mxu0
    %v1224 = vadd.f32 0.0, %v1223
    %v1225 = vpop.f32.mrb[0].mxu0
    %v1226 = vpop.f32.mrb[0].mxu0
    %v1227 = vadd.f32 0.0, %v1226
    %v1228 = vpop.f32.mrb[0].mxu0
    %1229 = vdwg.mxu0
    %v1232 = vunpack.c.l.b16 %v927
    %v1233 = vunpack.c.l.b16 %v928
    %v1234 = vpack.c.b16 %v1233, %v1232
    %v1237 = vsel %vm1108, %v919, 0
    %v1240 = vsel %vm1108, %v920, 0
    %v1243 = vsel %vm1108, %v921, 0
    %v1246 = vsel %vm1108, %v922, 0
    %v1249 = vsel %vm1108, %v923, 0
    %v1252 = vsel %vm1108, %v924, 0
    %v1255 = vsel %vm1108, %v925, 0
    %v1258 = vsel %vm1108, %v926, 0
    %1260 = vmatprep.subr.bf16.mxu0 0
    %1261 = vmatpush1.bf16.msra.mxu0 %v1234
    %1262 = vmatprep.subr.bf16.mxu0 0
    %1263 = vmatpush1.bf16.msra.mxu0 0
    %1264 = vmatprep.subr.bf16.mxu0 0
    %1265 = vmatpush1.bf16.msra.mxu0 0
    %1266 = vmatprep.subr.bf16.mxu0 0
    %1267 = vmatpush1.bf16.msra.mxu0 0
    %1268 = vmatprep.subr.bf16.mxu0 0
    %1269 = vmatpush1.bf16.msra.mxu0 0
    %1270 = vmatprep.subr.bf16.mxu0 0
    %1271 = vmatpush1.bf16.msra.mxu0 0
    %1272 = vmatprep.subr.bf16.mxu0 0
    %1273 = vmatpush1.bf16.msra.mxu0 0
    %1274 = vmatprep.subr.bf16.mxu0 0
    %1275 = vmatpush1.bf16.msra.mxu0 0
    %1276 = vmatprep.subr.bf16.mxu0 0
    %1277 = vmatpush1.bf16.msra.mxu0 0
    %1278 = vmatprep.subr.bf16.mxu0 0
    %1279 = vmatpush1.bf16.msra.mxu0 0
    %1280 = vmatprep.subr.bf16.mxu0 0
    %1281 = vmatpush1.bf16.msra.mxu0 0
    %1282 = vmatprep.subr.bf16.mxu0 0
    %1283 = vmatpush1.bf16.msra.mxu0 0
    %1284 = vmatprep.subr.bf16.mxu0 0
    %1285 = vmatpush1.bf16.msra.mxu0 0
    %1286 = vmatprep.subr.bf16.mxu0 0
    %1287 = vmatpush1.bf16.msra.mxu0 0
    %1288 = vmatprep.subr.bf16.mxu0 0
    %1289 = vmatpush1.bf16.msra.mxu0 0
    %1290 = vmatprep.subr.bf16.mxu0 0
    %1291 = vmatpush1.bf16.msra.mxu0 0
    %1292 = vmatprep.mubr.bf16.mxu0 0
    %1293 = vmatmul.mubr.bf16.gmra.mrb[0].mxu0 %v1237
    %v1294 = vpop.f32.mrb[0].mxu0
    %v1295 = vadd.f32 %v1168, %v1294
    %v1296 = vpop.f32.mrb[0].mxu0
    %v1297 = vpop.f32.mrb[0].mxu0
    %v1298 = vadd.f32 %v1171, %v1297
    %v1299 = vpop.f32.mrb[0].mxu0
    %1300 = vmatprep.mubr.bf16.mxu0 0
    %1301 = vmatmul.mubr.bf16.gmra.mrb[0].mxu0 %v1240
    %v1302 = vpop.f32.mrb[0].mxu0
    %v1303 = vadd.f32 %v1176, %v1302
    %v1304 = vpop.f32.mrb[0].mxu0
    %v1305 = vpop.f32.mrb[0].mxu0
    %v1306 = vadd.f32 %v1179, %v1305
    %v1307 = vpop.f32.mrb[0].mxu0
    %1308 = vmatprep.mubr.bf16.mxu0 0
    %1309 = vmatmul.mubr.bf16.gmra.mrb[0].mxu0 %v1243
    %v1310 = vpop.f32.mrb[0].mxu0
    %v1311 = vadd.f32 %v1184, %v1310
    %v1312 = vpop.f32.mrb[0].mxu0
    %v1313 = vpop.f32.mrb[0].mxu0
    %v1314 = vadd.f32 %v1187, %v1313
    %v1315 = vpop.f32.mrb[0].mxu0
    %1316 = vmatprep.mubr.bf16.mxu0 0
    %1317 = vmatmul.mubr.bf16.gmra.mrb[0].mxu0 %v1246
    %v1318 = vpop.f32.mrb[0].mxu0
    %v1319 = vadd.f32 %v1192, %v1318
    %v1320 = vpop.f32.mrb[0].mxu0
    %v1321 = vpop.f32.mrb[0].mxu0
    %v1322 = vadd.f32 %v1195, %v1321
    %v1323 = vpop.f32.mrb[0].mxu0
    %1324 = vmatprep.mubr.bf16.mxu0 0
    %1325 = vmatmul.mubr.bf16.gmra.mrb[0].mxu0 %v1249
    %v1326 = vpop.f32.mrb[0].mxu0
    %v1327 = vadd.f32 %v1200, %v1326
    %v1328 = vpop.f32.mrb[0].mxu0
    %v1329 = vpop.f32.mrb[0].mxu0
    %v1330 = vadd.f32 %v1203, %v1329
    %v1331 = vpop.f32.mrb[0].mxu0
    %1332 = vmatprep.mubr.bf16.mxu0 0
    %1333 = vmatmul.mubr.bf16.gmra.mrb[0].mxu0 %v1252
    %v1334 = vpop.f32.mrb[0].mxu0
    %v1335 = vadd.f32 %v1208, %v1334
    %v1336 = vpop.f32.mrb[0].mxu0
    %v1337 = vpop.f32.mrb[0].mxu0
    %v1338 = vadd.f32 %v1211, %v1337
    %v1339 = vpop.f32.mrb[0].mxu0
    %1340 = vmatprep.mubr.bf16.mxu0 0
    %1341 = vmatmul.mubr.bf16.gmra.mrb[0].mxu0 %v1255
    %v1342 = vpop.f32.mrb[0].mxu0
    %v1343 = vadd.f32 %v1216, %v1342
    %v1344 = vpop.f32.mrb[0].mxu0
    %v1345 = vpop.f32.mrb[0].mxu0
    %v1346 = vadd.f32 %v1219, %v1345
    %v1347 = vpop.f32.mrb[0].mxu0
    %1348 = vmatprep.mubr.bf16.mxu0 0
    %1349 = vmatmul.mubr.bf16.gmra.mrb[0].mxu0 %v1258
    %v1350 = vpop.f32.mrb[0].mxu0
    %v1351 = vadd.f32 %v1224, %v1350
    %v1352 = vpop.f32.mrb[0].mxu0
    %v1353 = vpop.f32.mrb[0].mxu0
    %v1354 = vadd.f32 %v1227, %v1353
    %v1355 = vpop.f32.mrb[0].mxu0
    %1356 = vdwg.mxu0
    %s1357 = scalar_lea.vmem %s3, 128
    %v1358 = vld [vmem:[%s1357] sm:$0xf]
    %v1359 = vld [vmem:[%s1357 + $0x4] sm:$0xf]
    %v1360 = vld [vmem:[%s1357 + $0x8] sm:$0xf]
    %v1361 = vld [vmem:[%s1357 + $0xc] sm:$0xf]
    %v1362 = vld [vmem:[%s1357 + $0x10] sm:$0xf]
    %v1363 = vld [vmem:[%s1357 + $0x14] sm:$0xf]
    %v1364 = vld [vmem:[%s1357 + $0x18] sm:$0xf]
    %v1365 = vld [vmem:[%s1357 + $0x1c] sm:$0xf]
    %v1366 = vld [vmem:[%s1357 + $0x20] sm:$0xf]
    %v1367 = vld [vmem:[%s1357 + $0x24] sm:$0xf]
    %v1368 = vld [vmem:[%s1357 + $0x28] sm:$0xf]
    %v1369 = vld [vmem:[%s1357 + $0x2c] sm:$0xf]
    %v1370 = vld [vmem:[%s1357 + $0x30] sm:$0xf]
    %v1371 = vld [vmem:[%s1357 + $0x34] sm:$0xf]
    %v1372 = vld [vmem:[%s1357 + $0x38] sm:$0xf]
    %v1373 = vld [vmem:[%s1357 + $0x3c] sm:$0xf]
    %v1390 = vunpack.c.l.b16 %v1358
    %v1391 = vunpack.c.l.b16 %v1359
    %v1392 = vunpack.c.l.b16 %v1360
    %v1393 = vunpack.c.l.b16 %v1361
    %v1394 = vunpack.c.l.b16 %v1362
    %v1395 = vunpack.c.l.b16 %v1363
    %v1396 = vunpack.c.l.b16 %v1364
    %v1397 = vunpack.c.l.b16 %v1365
    %v1398 = vunpack.c.l.b16 %v1366
    %v1399 = vunpack.c.l.b16 %v1367
    %v1400 = vunpack.c.l.b16 %v1368
    %v1401 = vunpack.c.l.b16 %v1369
    %v1402 = vunpack.c.l.b16 %v1370
    %v1403 = vunpack.c.l.b16 %v1371
    %v1404 = vunpack.c.l.b16 %v1372
    %v1405 = vunpack.c.l.b16 %v1373
    %v1406 = vpack.c.b16 %v1391, %v1390
    %v1407 = vpack.c.b16 %v1393, %v1392
    %v1408 = vpack.c.b16 %v1395, %v1394
    %v1409 = vpack.c.b16 %v1397, %v1396
    %v1410 = vpack.c.b16 %v1399, %v1398
    %v1411 = vpack.c.b16 %v1401, %v1400
    %v1412 = vpack.c.b16 %v1403, %v1402
    %v1413 = vpack.c.b16 %v1405, %v1404
    %1422 = vmatprep.subr.bf16.mxu0 0
    %1423 = vmatpush1.bf16.msra.mxu0 %v750
    %1424 = vmatprep.subr.bf16.mxu0 0
    %1425 = vmatpush1.bf16.msra.mxu0 %v751
    %1426 = vmatprep.subr.bf16.mxu0 0
    %1427 = vmatpush1.bf16.msra.mxu0 %v752
    %1428 = vmatprep.subr.bf16.mxu0 0
    %1429 = vmatpush1.bf16.msra.mxu0 %v753
    %1430 = vmatprep.subr.bf16.mxu0 0
    %1431 = vmatpush1.bf16.msra.mxu0 %v754
    %1432 = vmatprep.subr.bf16.mxu0 0
    %1433 = vmatpush1.bf16.msra.mxu0 %v755
    %1434 = vmatprep.subr.bf16.mxu0 0
    %1435 = vmatpush1.bf16.msra.mxu0 %v756
    %1436 = vmatprep.subr.bf16.mxu0 0
    %1437 = vmatpush1.bf16.msra.mxu0 %v757
    %1438 = vmatprep.subr.bf16.mxu0 0
    %1439 = vmatpush1.bf16.msra.mxu0 0
    %1440 = vmatprep.subr.bf16.mxu0 0
    %1441 = vmatpush1.bf16.msra.mxu0 0
    %1442 = vmatprep.subr.bf16.mxu0 0
    %1443 = vmatpush1.bf16.msra.mxu0 0
    %1444 = vmatprep.subr.bf16.mxu0 0
    %1445 = vmatpush1.bf16.msra.mxu0 0
    %1446 = vmatprep.subr.bf16.mxu0 0
    %1447 = vmatpush1.bf16.msra.mxu0 0
    %1448 = vmatprep.subr.bf16.mxu0 0
    %1449 = vmatpush1.bf16.msra.mxu0 0
    %1450 = vmatprep.subr.bf16.mxu0 0
    %1451 = vmatpush1.bf16.msra.mxu0 0
    %1452 = vmatprep.subr.bf16.mxu0 0
    %1453 = vmatpush1.bf16.msra.mxu0 0
    %1454 = vmatprep.mubr.bf16.mxu0 0
    %1455 = vmatmul.mubr.bf16.gmra.mrb[0].mxu0 %v1406
    %v1456 = vpop.f32.mrb[0].mxu0
    %v1457 = vadd.f32 0.0, %v1456
    %v1458 = vpop.f32.mrb[0].mxu0
    %v1459 = vpop.f32.mrb[0].mxu0
    %v1460 = vadd.f32 0.0, %v1459
    %v1461 = vpop.f32.mrb[0].mxu0
    %1462 = vmatprep.mubr.bf16.mxu0 0
    %1463 = vmatmul.mubr.bf16.gmra.mrb[0].mxu0 %v1407
    %v1464 = vpop.f32.mrb[0].mxu0
    %v1465 = vadd.f32 0.0, %v1464
    %v1466 = vpop.f32.mrb[0].mxu0
    %v1467 = vpop.f32.mrb[0].mxu0
    %v1468 = vadd.f32 0.0, %v1467
    %v1469 = vpop.f32.mrb[0].mxu0
    %1470 = vmatprep.mubr.bf16.mxu0 0
    %1471 = vmatmul.mubr.bf16.gmra.mrb[0].mxu0 %v1408
    %v1472 = vpop.f32.mrb[0].mxu0
    %v1473 = vadd.f32 0.0, %v1472
    %v1474 = vpop.f32.mrb[0].mxu0
    %v1475 = vpop.f32.mrb[0].mxu0
    %v1476 = vadd.f32 0.0, %v1475
    %v1477 = vpop.f32.mrb[0].mxu0
    %1478 = vmatprep.mubr.bf16.mxu0 0
    %1479 = vmatmul.mubr.bf16.gmra.mrb[0].mxu0 %v1409
    %v1480 = vpop.f32.mrb[0].mxu0
    %v1481 = vadd.f32 0.0, %v1480
    %v1482 = vpop.f32.mrb[0].mxu0
    %v1483 = vpop.f32.mrb[0].mxu0
    %v1484 = vadd.f32 0.0, %v1483
    %v1485 = vpop.f32.mrb[0].mxu0
    %1486 = vmatprep.mubr.bf16.mxu0 0
    %1487 = vmatmul.mubr.bf16.gmra.mrb[0].mxu0 %v1410
    %v1488 = vpop.f32.mrb[0].mxu0
    %v1489 = vadd.f32 0.0, %v1488
    %v1490 = vpop.f32.mrb[0].mxu0
    %v1491 = vpop.f32.mrb[0].mxu0
    %v1492 = vadd.f32 0.0, %v1491
    %v1493 = vpop.f32.mrb[0].mxu0
    %1494 = vmatprep.mubr.bf16.mxu0 0
    %1495 = vmatmul.mubr.bf16.gmra.mrb[0].mxu0 %v1411
    %v1496 = vpop.f32.mrb[0].mxu0
    %v1497 = vadd.f32 0.0, %v1496
    %v1498 = vpop.f32.mrb[0].mxu0
    %v1499 = vpop.f32.mrb[0].mxu0
    %v1500 = vadd.f32 0.0, %v1499
    %v1501 = vpop.f32.mrb[0].mxu0
    %1502 = vmatprep.mubr.bf16.mxu0 0
    %1503 = vmatmul.mubr.bf16.gmra.mrb[0].mxu0 %v1412
    %v1504 = vpop.f32.mrb[0].mxu0
    %v1505 = vadd.f32 0.0, %v1504
    %v1506 = vpop.f32.mrb[0].mxu0
    %v1507 = vpop.f32.mrb[0].mxu0
    %v1508 = vadd.f32 0.0, %v1507
    %v1509 = vpop.f32.mrb[0].mxu0
    %1510 = vmatprep.mubr.bf16.mxu0 0
    %1511 = vmatmul.mubr.bf16.gmra.mrb[0].mxu0 %v1413
    %v1512 = vpop.f32.mrb[0].mxu0
    %v1513 = vadd.f32 0.0, %v1512
    %v1514 = vpop.f32.mrb[0].mxu0
    %v1515 = vpop.f32.mrb[0].mxu0
    %v1516 = vadd.f32 0.0, %v1515
    %v1517 = vpop.f32.mrb[0].mxu0
    %1518 = vdwg.mxu0
    %v1519 = vpack.c.bf16 %v1460, %v1457
    %v1520 = vpack.c.bf16 %v1468, %v1465
    %v1521 = vpack.c.bf16 %v1476, %v1473
    %v1522 = vpack.c.bf16 %v1484, %v1481
    %v1523 = vpack.c.bf16 %v1492, %v1489
    %v1524 = vpack.c.bf16 %v1500, %v1497
    %v1525 = vpack.c.bf16 %v1508, %v1505
    %v1526 = vpack.c.bf16 %v1516, %v1513
    %s1527 = scalar_lea.vmem %s4, 16
    %v1528 = vld [vmem:[%s1527] sm:$0xf]
    %v1529 = vld [vmem:[%s1527 + $0x4] sm:$0xf]
    %v1532 = vunpack.c.l.b16 %v1528
    %v1533 = vunpack.c.l.b16 %v1529
    %v1534 = vpack.c.b16 %v1533, %v1532
    %v1537 = vsel %vm1108, %v1519, 0
    %v1540 = vsel %vm1108, %v1520, 0
    %v1543 = vsel %vm1108, %v1521, 0
    %v1546 = vsel %vm1108, %v1522, 0
    %v1549 = vsel %vm1108, %v1523, 0
    %v1552 = vsel %vm1108, %v1524, 0
    %v1555 = vsel %vm1108, %v1525, 0
    %v1558 = vsel %vm1108, %v1526, 0
    %1560 = vmatprep.subr.bf16.mxu0 0
    %1561 = vmatpush1.bf16.msra.mxu0 %v1534
    %1562 = vmatprep.subr.bf16.mxu0 0
    %1563 = vmatpush1.bf16.msra.mxu0 0
    %1564 = vmatprep.subr.bf16.mxu0 0
    %1565 = vmatpush1.bf16.msra.mxu0 0
    %1566 = vmatprep.subr.bf16.mxu0 0
    %1567 = vmatpush1.bf16.msra.mxu0 0
    %1568 = vmatprep.subr.bf16.mxu0 0
    %1569 = vmatpush1.bf16.msra.mxu0 0
    %1570 = vmatprep.subr.bf16.mxu0 0
    %1571 = vmatpush1.bf16.msra.mxu0 0
    %1572 = vmatprep.subr.bf16.mxu0 0
    %1573 = vmatpush1.bf16.msra.mxu0 0
    %1574 = vmatprep.subr.bf16.mxu0 0
    %1575 = vmatpush1.bf16.msra.mxu0 0
    %1576 = vmatprep.subr.bf16.mxu0 0
    %1577 = vmatpush1.bf16.msra.mxu0 0
    %1578 = vmatprep.subr.bf16.mxu0 0
    %1579 = vmatpush1.bf16.msra.mxu0 0
    %1580 = vmatprep.subr.bf16.mxu0 0
    %1581 = vmatpush1.bf16.msra.mxu0 0
    %1582 = vmatprep.subr.bf16.mxu0 0
    %1583 = vmatpush1.bf16.msra.mxu0 0
    %1584 = vmatprep.subr.bf16.mxu0 0
    %1585 = vmatpush1.bf16.msra.mxu0 0
    %1586 = vmatprep.subr.bf16.mxu0 0
    %1587 = vmatpush1.bf16.msra.mxu0 0
    %1588 = vmatprep.subr.bf16.mxu0 0
    %1589 = vmatpush1.bf16.msra.mxu0 0
    %1590 = vmatprep.subr.bf16.mxu0 0
    %1591 = vmatpush1.bf16.msra.mxu0 0
    %1592 = vmatprep.mubr.bf16.mxu0 0
    %1593 = vmatmul.mubr.bf16.gmra.mrb[0].mxu0 %v1537
    %v1594 = vpop.f32.mrb[0].mxu0
    %v1595 = vadd.f32 0.0, %v1594
    %v1596 = vpop.f32.mrb[0].mxu0
    %v1597 = vpop.f32.mrb[0].mxu0
    %v1598 = vadd.f32 0.0, %v1597
    %v1599 = vpop.f32.mrb[0].mxu0
    %1600 = vmatprep.mubr.bf16.mxu0 0
    %1601 = vmatmul.mubr.bf16.gmra.mrb[0].mxu0 %v1540
    %v1602 = vpop.f32.mrb[0].mxu0
    %v1603 = vadd.f32 0.0, %v1602
    %v1604 = vpop.f32.mrb[0].mxu0
    %v1605 = vpop.f32.mrb[0].mxu0
    %v1606 = vadd.f32 0.0, %v1605
    %v1607 = vpop.f32.mrb[0].mxu0
    %1608 = vmatprep.mubr.bf16.mxu0 0
    %1609 = vmatmul.mubr.bf16.gmra.mrb[0].mxu0 %v1543
    %v1610 = vpop.f32.mrb[0].mxu0
    %v1611 = vadd.f32 0.0, %v1610
    %v1612 = vpop.f32.mrb[0].mxu0
    %v1613 = vpop.f32.mrb[0].mxu0
    %v1614 = vadd.f32 0.0, %v1613
    %v1615 = vpop.f32.mrb[0].mxu0
    %1616 = vmatprep.mubr.bf16.mxu0 0
    %1617 = vmatmul.mubr.bf16.gmra.mrb[0].mxu0 %v1546
    %v1618 = vpop.f32.mrb[0].mxu0
    %v1619 = vadd.f32 0.0, %v1618
    %v1620 = vpop.f32.mrb[0].mxu0
    %v1621 = vpop.f32.mrb[0].mxu0
    %v1622 = vadd.f32 0.0, %v1621
    %v1623 = vpop.f32.mrb[0].mxu0
    %1624 = vmatprep.mubr.bf16.mxu0 0
    %1625 = vmatmul.mubr.bf16.gmra.mrb[0].mxu0 %v1549
    %v1626 = vpop.f32.mrb[0].mxu0
    %v1627 = vadd.f32 0.0, %v1626
    %v1628 = vpop.f32.mrb[0].mxu0
    %v1629 = vpop.f32.mrb[0].mxu0
    %v1630 = vadd.f32 0.0, %v1629
    %v1631 = vpop.f32.mrb[0].mxu0
    %1632 = vmatprep.mubr.bf16.mxu0 0
    %1633 = vmatmul.mubr.bf16.gmra.mrb[0].mxu0 %v1552
    %v1634 = vpop.f32.mrb[0].mxu0
    %v1635 = vadd.f32 0.0, %v1634
    %v1636 = vpop.f32.mrb[0].mxu0
    %v1637 = vpop.f32.mrb[0].mxu0
    %v1638 = vadd.f32 0.0, %v1637
    %v1639 = vpop.f32.mrb[0].mxu0
    %1640 = vmatprep.mubr.bf16.mxu0 0
    %1641 = vmatmul.mubr.bf16.gmra.mrb[0].mxu0 %v1555
    %v1642 = vpop.f32.mrb[0].mxu0
    %v1643 = vadd.f32 0.0, %v1642
    %v1644 = vpop.f32.mrb[0].mxu0
    %v1645 = vpop.f32.mrb[0].mxu0
    %v1646 = vadd.f32 0.0, %v1645
    %v1647 = vpop.f32.mrb[0].mxu0
    %1648 = vmatprep.mubr.bf16.mxu0 0
    %1649 = vmatmul.mubr.bf16.gmra.mrb[0].mxu0 %v1558
    %v1650 = vpop.f32.mrb[0].mxu0
    %v1651 = vadd.f32 0.0, %v1650
    %v1652 = vpop.f32.mrb[0].mxu0
    %v1653 = vpop.f32.mrb[0].mxu0
    %v1654 = vadd.f32 0.0, %v1653
    %v1655 = vpop.f32.mrb[0].mxu0
    %1656 = vdwg.mxu0
    %v1657 = vadd.f32 %v1295, %v1595
    %v1658 = vadd.f32 %v1298, %v1598
    %v1659 = vadd.f32 %v1303, %v1603
    %v1660 = vadd.f32 %v1306, %v1606
    %v1661 = vadd.f32 %v1311, %v1611
    %v1662 = vadd.f32 %v1314, %v1614
    %v1663 = vadd.f32 %v1319, %v1619
    %v1664 = vadd.f32 %v1322, %v1622
    %v1665 = vadd.f32 %v1327, %v1627
    %v1666 = vadd.f32 %v1330, %v1630
    %v1667 = vadd.f32 %v1335, %v1635
    %v1668 = vadd.f32 %v1338, %v1638
    %v1669 = vadd.f32 %v1343, %v1643
    %v1670 = vadd.f32 %v1346, %v1646
    %v1671 = vadd.f32 %v1351, %v1651
    %v1672 = vadd.f32 %v1354, %v1654
    %s1673 = scalar_lea.vmem %s3, 192
    %v1674 = vld [vmem:[%s1673] sm:$0xf]
    %v1675 = vld [vmem:[%s1673 + $0x4] sm:$0xf]
    %v1676 = vld [vmem:[%s1673 + $0x8] sm:$0xf]
    %v1677 = vld [vmem:[%s1673 + $0xc] sm:$0xf]
    %v1678 = vld [vmem:[%s1673 + $0x10] sm:$0xf]
    %v1679 = vld [vmem:[%s1673 + $0x14] sm:$0xf]
    %v1680 = vld [vmem:[%s1673 + $0x18] sm:$0xf]
    %v1681 = vld [vmem:[%s1673 + $0x1c] sm:$0xf]
    %v1682 = vld [vmem:[%s1673 + $0x20] sm:$0xf]
    %v1683 = vld [vmem:[%s1673 + $0x24] sm:$0xf]
    %v1684 = vld [vmem:[%s1673 + $0x28] sm:$0xf]
    %v1685 = vld [vmem:[%s1673 + $0x2c] sm:$0xf]
    %v1686 = vld [vmem:[%s1673 + $0x30] sm:$0xf]
    %v1687 = vld [vmem:[%s1673 + $0x34] sm:$0xf]
    %v1688 = vld [vmem:[%s1673 + $0x38] sm:$0xf]
    %v1689 = vld [vmem:[%s1673 + $0x3c] sm:$0xf]
    %v1706 = vunpack.c.l.b16 %v1674
    %v1707 = vunpack.c.l.b16 %v1675
    %v1708 = vunpack.c.l.b16 %v1676
    %v1709 = vunpack.c.l.b16 %v1677
    %v1710 = vunpack.c.l.b16 %v1678
    %v1711 = vunpack.c.l.b16 %v1679
    %v1712 = vunpack.c.l.b16 %v1680
    %v1713 = vunpack.c.l.b16 %v1681
    %v1714 = vunpack.c.l.b16 %v1682
    %v1715 = vunpack.c.l.b16 %v1683
    %v1716 = vunpack.c.l.b16 %v1684
    %v1717 = vunpack.c.l.b16 %v1685
    %v1718 = vunpack.c.l.b16 %v1686
    %v1719 = vunpack.c.l.b16 %v1687
    %v1720 = vunpack.c.l.b16 %v1688
    %v1721 = vunpack.c.l.b16 %v1689
    %v1722 = vpack.c.b16 %v1707, %v1706
    %v1723 = vpack.c.b16 %v1709, %v1708
    %v1724 = vpack.c.b16 %v1711, %v1710
    %v1725 = vpack.c.b16 %v1713, %v1712
    %v1726 = vpack.c.b16 %v1715, %v1714
    %v1727 = vpack.c.b16 %v1717, %v1716
    %v1728 = vpack.c.b16 %v1719, %v1718
    %v1729 = vpack.c.b16 %v1721, %v1720
    %1738 = vmatprep.subr.bf16.mxu0 0
    %1739 = vmatpush1.bf16.msra.mxu0 %v750
    %1740 = vmatprep.subr.bf16.mxu0 0
    %1741 = vmatpush1.bf16.msra.mxu0 %v751
    %1742 = vmatprep.subr.bf16.mxu0 0
    %1743 = vmatpush1.bf16.msra.mxu0 %v752
    %1744 = vmatprep.subr.bf16.mxu0 0
    %1745 = vmatpush1.bf16.msra.mxu0 %v753
    %1746 = vmatprep.subr.bf16.mxu0 0
    %1747 = vmatpush1.bf16.msra.mxu0 %v754
    %1748 = vmatprep.subr.bf16.mxu0 0
    %1749 = vmatpush1.bf16.msra.mxu0 %v755
    %1750 = vmatprep.subr.bf16.mxu0 0
    %1751 = vmatpush1.bf16.msra.mxu0 %v756
    %1752 = vmatprep.subr.bf16.mxu0 0
    %1753 = vmatpush1.bf16.msra.mxu0 %v757
    %1754 = vmatprep.subr.bf16.mxu0 0
    %1755 = vmatpush1.bf16.msra.mxu0 0
    %1756 = vmatprep.subr.bf16.mxu0 0
    %1757 = vmatpush1.bf16.msra.mxu0 0
    %1758 = vmatprep.subr.bf16.mxu0 0
    %1759 = vmatpush1.bf16.msra.mxu0 0
    %1760 = vmatprep.subr.bf16.mxu0 0
    %1761 = vmatpush1.bf16.msra.mxu0 0
    %1762 = vmatprep.subr.bf16.mxu0 0
    %1763 = vmatpush1.bf16.msra.mxu0 0
    %1764 = vmatprep.subr.bf16.mxu0 0
    %1765 = vmatpush1.bf16.msra.mxu0 0
    %1766 = vmatprep.subr.bf16.mxu0 0
    %1767 = vmatpush1.bf16.msra.mxu0 0
    %1768 = vmatprep.subr.bf16.mxu0 0
    %1769 = vmatpush1.bf16.msra.mxu0 0
    %1770 = vmatprep.mubr.bf16.mxu0 0
    %1771 = vmatmul.mubr.bf16.gmra.mrb[0].mxu0 %v1722
    %v1772 = vpop.f32.mrb[0].mxu0
    %v1773 = vadd.f32 0.0, %v1772
    %v1774 = vpop.f32.mrb[0].mxu0
    %v1775 = vpop.f32.mrb[0].mxu0
    %v1776 = vadd.f32 0.0, %v1775
    %v1777 = vpop.f32.mrb[0].mxu0
    %1778 = vmatprep.mubr.bf16.mxu0 0
    %1779 = vmatmul.mubr.bf16.gmra.mrb[0].mxu0 %v1723
    %v1780 = vpop.f32.mrb[0].mxu0
    %v1781 = vadd.f32 0.0, %v1780
    %v1782 = vpop.f32.mrb[0].mxu0
    %v1783 = vpop.f32.mrb[0].mxu0
    %v1784 = vadd.f32 0.0, %v1783
    %v1785 = vpop.f32.mrb[0].mxu0
    %1786 = vmatprep.mubr.bf16.mxu0 0
    %1787 = vmatmul.mubr.bf16.gmra.mrb[0].mxu0 %v1724
    %v1788 = vpop.f32.mrb[0].mxu0
    %v1789 = vadd.f32 0.0, %v1788
    %v1790 = vpop.f32.mrb[0].mxu0
    %v1791 = vpop.f32.mrb[0].mxu0
    %v1792 = vadd.f32 0.0, %v1791
    %v1793 = vpop.f32.mrb[0].mxu0
    %1794 = vmatprep.mubr.bf16.mxu0 0
    %1795 = vmatmul.mubr.bf16.gmra.mrb[0].mxu0 %v1725
    %v1796 = vpop.f32.mrb[0].mxu0
    %v1797 = vadd.f32 0.0, %v1796
    %v1798 = vpop.f32.mrb[0].mxu0
    %v1799 = vpop.f32.mrb[0].mxu0
    %v1800 = vadd.f32 0.0, %v1799
    %v1801 = vpop.f32.mrb[0].mxu0
    %1802 = vmatprep.mubr.bf16.mxu0 0
    %1803 = vmatmul.mubr.bf16.gmra.mrb[0].mxu0 %v1726
    %v1804 = vpop.f32.mrb[0].mxu0
    %v1805 = vadd.f32 0.0, %v1804
    %v1806 = vpop.f32.mrb[0].mxu0
    %v1807 = vpop.f32.mrb[0].mxu0
    %v1808 = vadd.f32 0.0, %v1807
    %v1809 = vpop.f32.mrb[0].mxu0
    %1810 = vmatprep.mubr.bf16.mxu0 0
    %1811 = vmatmul.mubr.bf16.gmra.mrb[0].mxu0 %v1727
    %v1812 = vpop.f32.mrb[0].mxu0
    %v1813 = vadd.f32 0.0, %v1812
    %v1814 = vpop.f32.mrb[0].mxu0
    %v1815 = vpop.f32.mrb[0].mxu0
    %v1816 = vadd.f32 0.0, %v1815
    %v1817 = vpop.f32.mrb[0].mxu0
    %1818 = vmatprep.mubr.bf16.mxu0 0
    %1819 = vmatmul.mubr.bf16.gmra.mrb[0].mxu0 %v1728
    %v1820 = vpop.f32.mrb[0].mxu0
    %v1821 = vadd.f32 0.0, %v1820
    %v1822 = vpop.f32.mrb[0].mxu0
    %v1823 = vpop.f32.mrb[0].mxu0
    %v1824 = vadd.f32 0.0, %v1823
    %v1825 = vpop.f32.mrb[0].mxu0
    %1826 = vmatprep.mubr.bf16.mxu0 0
    %1827 = vmatmul.mubr.bf16.gmra.mrb[0].mxu0 %v1729
    %v1828 = vpop.f32.mrb[0].mxu0
    %v1829 = vadd.f32 0.0, %v1828
    %v1830 = vpop.f32.mrb[0].mxu0
    %v1831 = vpop.f32.mrb[0].mxu0
    %v1832 = vadd.f32 0.0, %v1831
    %v1833 = vpop.f32.mrb[0].mxu0
    %1834 = vdwg.mxu0
    %v1835 = vpack.c.bf16 %v1776, %v1773
    %v1836 = vpack.c.bf16 %v1784, %v1781
    %v1837 = vpack.c.bf16 %v1792, %v1789
    %v1838 = vpack.c.bf16 %v1800, %v1797
    %v1839 = vpack.c.bf16 %v1808, %v1805
    %v1840 = vpack.c.bf16 %v1816, %v1813
    %v1841 = vpack.c.bf16 %v1824, %v1821
    %v1842 = vpack.c.bf16 %v1832, %v1829
    %s1843 = scalar_lea.vmem %s4, 24
    %v1844 = vld [vmem:[%s1843] sm:$0xf]
    %v1845 = vld [vmem:[%s1843 + $0x4] sm:$0xf]
    %v1848 = vunpack.c.l.b16 %v1844
    %v1849 = vunpack.c.l.b16 %v1845
    %v1850 = vpack.c.b16 %v1849, %v1848
    %v1853 = vsel %vm1108, %v1835, 0
    %v1856 = vsel %vm1108, %v1836, 0
    %v1859 = vsel %vm1108, %v1837, 0
    %v1862 = vsel %vm1108, %v1838, 0
    %v1865 = vsel %vm1108, %v1839, 0
    %v1868 = vsel %vm1108, %v1840, 0
    %v1871 = vsel %vm1108, %v1841, 0
    %v1874 = vsel %vm1108, %v1842, 0
    %1876 = vmatprep.subr.bf16.mxu0 0
    %1877 = vmatpush1.bf16.msra.mxu0 %v1850
    %1878 = vmatprep.subr.bf16.mxu0 0
    %1879 = vmatpush1.bf16.msra.mxu0 0
    %1880 = vmatprep.subr.bf16.mxu0 0
    %1881 = vmatpush1.bf16.msra.mxu0 0
    %1882 = vmatprep.subr.bf16.mxu0 0
    %1883 = vmatpush1.bf16.msra.mxu0 0
    %1884 = vmatprep.subr.bf16.mxu0 0
    %1885 = vmatpush1.bf16.msra.mxu0 0
    %1886 = vmatprep.subr.bf16.mxu0 0
    %1887 = vmatpush1.bf16.msra.mxu0 0
    %1888 = vmatprep.subr.bf16.mxu0 0
    %1889 = vmatpush1.bf16.msra.mxu0 0
    %1890 = vmatprep.subr.bf16.mxu0 0
    %1891 = vmatpush1.bf16.msra.mxu0 0
    %1892 = vmatprep.subr.bf16.mxu0 0
    %1893 = vmatpush1.bf16.msra.mxu0 0
    %1894 = vmatprep.subr.bf16.mxu0 0
    %1895 = vmatpush1.bf16.msra.mxu0 0
    %1896 = vmatprep.subr.bf16.mxu0 0
    %1897 = vmatpush1.bf16.msra.mxu0 0
    %1898 = vmatprep.subr.bf16.mxu0 0
    %1899 = vmatpush1.bf16.msra.mxu0 0
    %1900 = vmatprep.subr.bf16.mxu0 0
    %1901 = vmatpush1.bf16.msra.mxu0 0
    %1902 = vmatprep.subr.bf16.mxu0 0
    %1903 = vmatpush1.bf16.msra.mxu0 0
    %1904 = vmatprep.subr.bf16.mxu0 0
    %1905 = vmatpush1.bf16.msra.mxu0 0
    %1906 = vmatprep.subr.bf16.mxu0 0
    %1907 = vmatpush1.bf16.msra.mxu0 0
    %1908 = vmatprep.mubr.bf16.mxu0 0
    %1909 = vmatmul.mubr.bf16.gmra.mrb[0].mxu0 %v1853
    %v1910 = vpop.f32.mrb[0].mxu0
    %v1911 = vadd.f32 0.0, %v1910
    %v1912 = vpop.f32.mrb[0].mxu0
    %v1913 = vpop.f32.mrb[0].mxu0
    %v1914 = vadd.f32 0.0, %v1913
    %v1915 = vpop.f32.mrb[0].mxu0
    %1916 = vmatprep.mubr.bf16.mxu0 0
    %1917 = vmatmul.mubr.bf16.gmra.mrb[0].mxu0 %v1856
    %v1918 = vpop.f32.mrb[0].mxu0
    %v1919 = vadd.f32 0.0, %v1918
    %v1920 = vpop.f32.mrb[0].mxu0
    %v1921 = vpop.f32.mrb[0].mxu0
    %v1922 = vadd.f32 0.0, %v1921
    %v1923 = vpop.f32.mrb[0].mxu0
    %1924 = vmatprep.mubr.bf16.mxu0 0
    %1925 = vmatmul.mubr.bf16.gmra.mrb[0].mxu0 %v1859
    %v1926 = vpop.f32.mrb[0].mxu0
    %v1927 = vadd.f32 0.0, %v1926
    %v1928 = vpop.f32.mrb[0].mxu0
    %v1929 = vpop.f32.mrb[0].mxu0
    %v1930 = vadd.f32 0.0, %v1929
    %v1931 = vpop.f32.mrb[0].mxu0
    %1932 = vmatprep.mubr.bf16.mxu0 0
    %1933 = vmatmul.mubr.bf16.gmra.mrb[0].mxu0 %v1862
    %v1934 = vpop.f32.mrb[0].mxu0
    %v1935 = vadd.f32 0.0, %v1934
    %v1936 = vpop.f32.mrb[0].mxu0
    %v1937 = vpop.f32.mrb[0].mxu0
    %v1938 = vadd.f32 0.0, %v1937
    %v1939 = vpop.f32.mrb[0].mxu0
    %1940 = vmatprep.mubr.bf16.mxu0 0
    %1941 = vmatmul.mubr.bf16.gmra.mrb[0].mxu0 %v1865
    %v1942 = vpop.f32.mrb[0].mxu0
    %v1943 = vadd.f32 0.0, %v1942
    %v1944 = vpop.f32.mrb[0].mxu0
    %v1945 = vpop.f32.mrb[0].mxu0
    %v1946 = vadd.f32 0.0, %v1945
    %v1947 = vpop.f32.mrb[0].mxu0
    %1948 = vmatprep.mubr.bf16.mxu0 0
    %1949 = vmatmul.mubr.bf16.gmra.mrb[0].mxu0 %v1868
    %v1950 = vpop.f32.mrb[0].mxu0
    %v1951 = vadd.f32 0.0, %v1950
    %v1952 = vpop.f32.mrb[0].mxu0
    %v1953 = vpop.f32.mrb[0].mxu0
    %v1954 = vadd.f32 0.0, %v1953
    %v1955 = vpop.f32.mrb[0].mxu0
    %1956 = vmatprep.mubr.bf16.mxu0 0
    %1957 = vmatmul.mubr.bf16.gmra.mrb[0].mxu0 %v1871
    %v1958 = vpop.f32.mrb[0].mxu0
    %v1959 = vadd.f32 0.0, %v1958
    %v1960 = vpop.f32.mrb[0].mxu0
    %v1961 = vpop.f32.mrb[0].mxu0
    %v1962 = vadd.f32 0.0, %v1961
    %v1963 = vpop.f32.mrb[0].mxu0
    %1964 = vmatprep.mubr.bf16.mxu0 0
    %1965 = vmatmul.mubr.bf16.gmra.mrb[0].mxu0 %v1874
    %v1966 = vpop.f32.mrb[0].mxu0
    %v1967 = vadd.f32 0.0, %v1966
    %v1968 = vpop.f32.mrb[0].mxu0
    %v1969 = vpop.f32.mrb[0].mxu0
    %v1970 = vadd.f32 0.0, %v1969
    %v1971 = vpop.f32.mrb[0].mxu0
    %1972 = vdwg.mxu0
    %v1973 = vadd.f32 %v1657, %v1911
    %v1974 = vadd.f32 %v1658, %v1914
    %v1975 = vadd.f32 %v1659, %v1919
    %v1976 = vadd.f32 %v1660, %v1922
    %v1977 = vadd.f32 %v1661, %v1927
    %v1978 = vadd.f32 %v1662, %v1930
    %v1979 = vadd.f32 %v1663, %v1935
    %v1980 = vadd.f32 %v1664, %v1938
    %v1981 = vadd.f32 %v1665, %v1943
    %v1982 = vadd.f32 %v1666, %v1946
    %v1983 = vadd.f32 %v1667, %v1951
    %v1984 = vadd.f32 %v1668, %v1954
    %v1985 = vadd.f32 %v1669, %v1959
    %v1986 = vadd.f32 %v1670, %v1962
    %v1987 = vadd.f32 %v1671, %v1967
    %v1988 = vadd.f32 %v1672, %v1970
    %s1989 = scalar_lea.vmem %s3, 256
    %v1990 = vld [vmem:[%s1989] sm:$0xf]
    %v1991 = vld [vmem:[%s1989 + $0x4] sm:$0xf]
    %v1992 = vld [vmem:[%s1989 + $0x8] sm:$0xf]
    %v1993 = vld [vmem:[%s1989 + $0xc] sm:$0xf]
    %v1994 = vld [vmem:[%s1989 + $0x10] sm:$0xf]
    %v1995 = vld [vmem:[%s1989 + $0x14] sm:$0xf]
    %v1996 = vld [vmem:[%s1989 + $0x18] sm:$0xf]
    %v1997 = vld [vmem:[%s1989 + $0x1c] sm:$0xf]
    %v1998 = vld [vmem:[%s1989 + $0x20] sm:$0xf]
    %v1999 = vld [vmem:[%s1989 + $0x24] sm:$0xf]
    %v2000 = vld [vmem:[%s1989 + $0x28] sm:$0xf]
    %v2001 = vld [vmem:[%s1989 + $0x2c] sm:$0xf]
    %v2002 = vld [vmem:[%s1989 + $0x30] sm:$0xf]
    %v2003 = vld [vmem:[%s1989 + $0x34] sm:$0xf]
    %v2004 = vld [vmem:[%s1989 + $0x38] sm:$0xf]
    %v2005 = vld [vmem:[%s1989 + $0x3c] sm:$0xf]
    %v2022 = vunpack.c.l.b16 %v1990
    %v2023 = vunpack.c.l.b16 %v1991
    %v2024 = vunpack.c.l.b16 %v1992
    %v2025 = vunpack.c.l.b16 %v1993
    %v2026 = vunpack.c.l.b16 %v1994
    %v2027 = vunpack.c.l.b16 %v1995
    %v2028 = vunpack.c.l.b16 %v1996
    %v2029 = vunpack.c.l.b16 %v1997
    %v2030 = vunpack.c.l.b16 %v1998
    %v2031 = vunpack.c.l.b16 %v1999
    %v2032 = vunpack.c.l.b16 %v2000
    %v2033 = vunpack.c.l.b16 %v2001
    %v2034 = vunpack.c.l.b16 %v2002
    %v2035 = vunpack.c.l.b16 %v2003
    %v2036 = vunpack.c.l.b16 %v2004
    %v2037 = vunpack.c.l.b16 %v2005
    %v2038 = vpack.c.b16 %v2023, %v2022
    %v2039 = vpack.c.b16 %v2025, %v2024
    %v2040 = vpack.c.b16 %v2027, %v2026
    %v2041 = vpack.c.b16 %v2029, %v2028
    %v2042 = vpack.c.b16 %v2031, %v2030
    %v2043 = vpack.c.b16 %v2033, %v2032
    %v2044 = vpack.c.b16 %v2035, %v2034
    %v2045 = vpack.c.b16 %v2037, %v2036
    %2054 = vmatprep.subr.bf16.mxu0 0
    %2055 = vmatpush1.bf16.msra.mxu0 %v750
    %2056 = vmatprep.subr.bf16.mxu0 0
    %2057 = vmatpush1.bf16.msra.mxu0 %v751
    %2058 = vmatprep.subr.bf16.mxu0 0
    %2059 = vmatpush1.bf16.msra.mxu0 %v752
    %2060 = vmatprep.subr.bf16.mxu0 0
    %2061 = vmatpush1.bf16.msra.mxu0 %v753
    %2062 = vmatprep.subr.bf16.mxu0 0
    %2063 = vmatpush1.bf16.msra.mxu0 %v754
    %2064 = vmatprep.subr.bf16.mxu0 0
    %2065 = vmatpush1.bf16.msra.mxu0 %v755
    %2066 = vmatprep.subr.bf16.mxu0 0
    %2067 = vmatpush1.bf16.msra.mxu0 %v756
    %2068 = vmatprep.subr.bf16.mxu0 0
    %2069 = vmatpush1.bf16.msra.mxu0 %v757
    %2070 = vmatprep.subr.bf16.mxu0 0
    %2071 = vmatpush1.bf16.msra.mxu0 0
    %2072 = vmatprep.subr.bf16.mxu0 0
    %2073 = vmatpush1.bf16.msra.mxu0 0
    %2074 = vmatprep.subr.bf16.mxu0 0
    %2075 = vmatpush1.bf16.msra.mxu0 0
    %2076 = vmatprep.subr.bf16.mxu0 0
    %2077 = vmatpush1.bf16.msra.mxu0 0
    %2078 = vmatprep.subr.bf16.mxu0 0
    %2079 = vmatpush1.bf16.msra.mxu0 0
    %2080 = vmatprep.subr.bf16.mxu0 0
    %2081 = vmatpush1.bf16.msra.mxu0 0
    %2082 = vmatprep.subr.bf16.mxu0 0
    %2083 = vmatpush1.bf16.msra.mxu0 0
    %2084 = vmatprep.subr.bf16.mxu0 0
    %2085 = vmatpush1.bf16.msra.mxu0 0
    %2086 = vmatprep.mubr.bf16.mxu0 0
    %2087 = vmatmul.mubr.bf16.gmra.mrb[0].mxu0 %v2038
    %v2088 = vpop.f32.mrb[0].mxu0
    %v2089 = vadd.f32 0.0, %v2088
    %v2090 = vpop.f32.mrb[0].mxu0
    %v2091 = vpop.f32.mrb[0].mxu0
    %v2092 = vadd.f32 0.0, %v2091
    %v2093 = vpop.f32.mrb[0].mxu0
    %2094 = vmatprep.mubr.bf16.mxu0 0
    %2095 = vmatmul.mubr.bf16.gmra.mrb[0].mxu0 %v2039
    %v2096 = vpop.f32.mrb[0].mxu0
    %v2097 = vadd.f32 0.0, %v2096
    %v2098 = vpop.f32.mrb[0].mxu0
    %v2099 = vpop.f32.mrb[0].mxu0
    %v2100 = vadd.f32 0.0, %v2099
    %v2101 = vpop.f32.mrb[0].mxu0
    %2102 = vmatprep.mubr.bf16.mxu0 0
    %2103 = vmatmul.mubr.bf16.gmra.mrb[0].mxu0 %v2040
    %v2104 = vpop.f32.mrb[0].mxu0
    %v2105 = vadd.f32 0.0, %v2104
    %v2106 = vpop.f32.mrb[0].mxu0
    %v2107 = vpop.f32.mrb[0].mxu0
    %v2108 = vadd.f32 0.0, %v2107
    %v2109 = vpop.f32.mrb[0].mxu0
    %2110 = vmatprep.mubr.bf16.mxu0 0
    %2111 = vmatmul.mubr.bf16.gmra.mrb[0].mxu0 %v2041
    %v2112 = vpop.f32.mrb[0].mxu0
    %v2113 = vadd.f32 0.0, %v2112
    %v2114 = vpop.f32.mrb[0].mxu0
    %v2115 = vpop.f32.mrb[0].mxu0
    %v2116 = vadd.f32 0.0, %v2115
    %v2117 = vpop.f32.mrb[0].mxu0
    %2118 = vmatprep.mubr.bf16.mxu0 0
    %2119 = vmatmul.mubr.bf16.gmra.mrb[0].mxu0 %v2042
    %v2120 = vpop.f32.mrb[0].mxu0
    %v2121 = vadd.f32 0.0, %v2120
    %v2122 = vpop.f32.mrb[0].mxu0
    %v2123 = vpop.f32.mrb[0].mxu0
    %v2124 = vadd.f32 0.0, %v2123
    %v2125 = vpop.f32.mrb[0].mxu0
    %2126 = vmatprep.mubr.bf16.mxu0 0
    %2127 = vmatmul.mubr.bf16.gmra.mrb[0].mxu0 %v2043
    %v2128 = vpop.f32.mrb[0].mxu0
    %v2129 = vadd.f32 0.0, %v2128
    %v2130 = vpop.f32.mrb[0].mxu0
    %v2131 = vpop.f32.mrb[0].mxu0
    %v2132 = vadd.f32 0.0, %v2131
    %v2133 = vpop.f32.mrb[0].mxu0
    %2134 = vmatprep.mubr.bf16.mxu0 0
    %2135 = vmatmul.mubr.bf16.gmra.mrb[0].mxu0 %v2044
    %v2136 = vpop.f32.mrb[0].mxu0
    %v2137 = vadd.f32 0.0, %v2136
    %v2138 = vpop.f32.mrb[0].mxu0
    %v2139 = vpop.f32.mrb[0].mxu0
    %v2140 = vadd.f32 0.0, %v2139
    %v2141 = vpop.f32.mrb[0].mxu0
    %2142 = vmatprep.mubr.bf16.mxu0 0
    %2143 = vmatmul.mubr.bf16.gmra.mrb[0].mxu0 %v2045
    %v2144 = vpop.f32.mrb[0].mxu0
    %v2145 = vadd.f32 0.0, %v2144
    %v2146 = vpop.f32.mrb[0].mxu0
    %v2147 = vpop.f32.mrb[0].mxu0
    %v2148 = vadd.f32 0.0, %v2147
    %v2149 = vpop.f32.mrb[0].mxu0
    %2150 = vdwg.mxu0
    %v2151 = vpack.c.bf16 %v2092, %v2089
    %v2152 = vpack.c.bf16 %v2100, %v2097
    %v2153 = vpack.c.bf16 %v2108, %v2105
    %v2154 = vpack.c.bf16 %v2116, %v2113
    %v2155 = vpack.c.bf16 %v2124, %v2121
    %v2156 = vpack.c.bf16 %v2132, %v2129
    %v2157 = vpack.c.bf16 %v2140, %v2137
    %v2158 = vpack.c.bf16 %v2148, %v2145
    %s2159 = scalar_lea.vmem %s4, 32
    %v2160 = vld [vmem:[%s2159] sm:$0xf]
    %v2161 = vld [vmem:[%s2159 + $0x4] sm:$0xf]
    %v2164 = vunpack.c.l.b16 %v2160
    %v2165 = vunpack.c.l.b16 %v2161
    %v2166 = vpack.c.b16 %v2165, %v2164
    %v2169 = vsel %vm1108, %v2151, 0
    %v2172 = vsel %vm1108, %v2152, 0
    %v2175 = vsel %vm1108, %v2153, 0
    %v2178 = vsel %vm1108, %v2154, 0
    %v2181 = vsel %vm1108, %v2155, 0
    %v2184 = vsel %vm1108, %v2156, 0
    %v2187 = vsel %vm1108, %v2157, 0
    %v2190 = vsel %vm1108, %v2158, 0
    %2192 = vmatprep.subr.bf16.mxu0 0
    %2193 = vmatpush1.bf16.msra.mxu0 %v2166
    %2194 = vmatprep.subr.bf16.mxu0 0
    %2195 = vmatpush1.bf16.msra.mxu0 0
    %2196 = vmatprep.subr.bf16.mxu0 0
    %2197 = vmatpush1.bf16.msra.mxu0 0
    %2198 = vmatprep.subr.bf16.mxu0 0
    %2199 = vmatpush1.bf16.msra.mxu0 0
    %2200 = vmatprep.subr.bf16.mxu0 0
    %2201 = vmatpush1.bf16.msra.mxu0 0
    %2202 = vmatprep.subr.bf16.mxu0 0
    %2203 = vmatpush1.bf16.msra.mxu0 0
    %2204 = vmatprep.subr.bf16.mxu0 0
    %2205 = vmatpush1.bf16.msra.mxu0 0
    %2206 = vmatprep.subr.bf16.mxu0 0
    %2207 = vmatpush1.bf16.msra.mxu0 0
    %2208 = vmatprep.subr.bf16.mxu0 0
    %2209 = vmatpush1.bf16.msra.mxu0 0
    %2210 = vmatprep.subr.bf16.mxu0 0
    %2211 = vmatpush1.bf16.msra.mxu0 0
    %2212 = vmatprep.subr.bf16.mxu0 0
    %2213 = vmatpush1.bf16.msra.mxu0 0
    %2214 = vmatprep.subr.bf16.mxu0 0
    %2215 = vmatpush1.bf16.msra.mxu0 0
    %2216 = vmatprep.subr.bf16.mxu0 0
    %2217 = vmatpush1.bf16.msra.mxu0 0
    %2218 = vmatprep.subr.bf16.mxu0 0
    %2219 = vmatpush1.bf16.msra.mxu0 0
    %2220 = vmatprep.subr.bf16.mxu0 0
    %2221 = vmatpush1.bf16.msra.mxu0 0
    %2222 = vmatprep.subr.bf16.mxu0 0
    %2223 = vmatpush1.bf16.msra.mxu0 0
    %2224 = vmatprep.mubr.bf16.mxu0 0
    %2225 = vmatmul.mubr.bf16.gmra.mrb[0].mxu0 %v2169
    %v2226 = vpop.f32.mrb[0].mxu0
    %v2227 = vadd.f32 0.0, %v2226
    %v2228 = vpop.f32.mrb[0].mxu0
    %v2229 = vpop.f32.mrb[0].mxu0
    %v2230 = vadd.f32 0.0, %v2229
    %v2231 = vpop.f32.mrb[0].mxu0
    %2232 = vmatprep.mubr.bf16.mxu0 0
    %2233 = vmatmul.mubr.bf16.gmra.mrb[0].mxu0 %v2172
    %v2234 = vpop.f32.mrb[0].mxu0
    %v2235 = vadd.f32 0.0, %v2234
    %v2236 = vpop.f32.mrb[0].mxu0
    %v2237 = vpop.f32.mrb[0].mxu0
    %v2238 = vadd.f32 0.0, %v2237
    %v2239 = vpop.f32.mrb[0].mxu0
    %2240 = vmatprep.mubr.bf16.mxu0 0
    %2241 = vmatmul.mubr.bf16.gmra.mrb[0].mxu0 %v2175
    %v2242 = vpop.f32.mrb[0].mxu0
    %v2243 = vadd.f32 0.0, %v2242
    %v2244 = vpop.f32.mrb[0].mxu0
    %v2245 = vpop.f32.mrb[0].mxu0
    %v2246 = vadd.f32 0.0, %v2245
    %v2247 = vpop.f32.mrb[0].mxu0
    %2248 = vmatprep.mubr.bf16.mxu0 0
    %2249 = vmatmul.mubr.bf16.gmra.mrb[0].mxu0 %v2178
    %v2250 = vpop.f32.mrb[0].mxu0
    %v2251 = vadd.f32 0.0, %v2250
    %v2252 = vpop.f32.mrb[0].mxu0
    %v2253 = vpop.f32.mrb[0].mxu0
    %v2254 = vadd.f32 0.0, %v2253
    %v2255 = vpop.f32.mrb[0].mxu0
    %2256 = vmatprep.mubr.bf16.mxu0 0
    %2257 = vmatmul.mubr.bf16.gmra.mrb[0].mxu0 %v2181
    %v2258 = vpop.f32.mrb[0].mxu0
    %v2259 = vadd.f32 0.0, %v2258
    %v2260 = vpop.f32.mrb[0].mxu0
    %v2261 = vpop.f32.mrb[0].mxu0
    %v2262 = vadd.f32 0.0, %v2261
    %v2263 = vpop.f32.mrb[0].mxu0
    %2264 = vmatprep.mubr.bf16.mxu0 0
    %2265 = vmatmul.mubr.bf16.gmra.mrb[0].mxu0 %v2184
    %v2266 = vpop.f32.mrb[0].mxu0
    %v2267 = vadd.f32 0.0, %v2266
    %v2268 = vpop.f32.mrb[0].mxu0
    %v2269 = vpop.f32.mrb[0].mxu0
    %v2270 = vadd.f32 0.0, %v2269
    %v2271 = vpop.f32.mrb[0].mxu0
    %2272 = vmatprep.mubr.bf16.mxu0 0
    %2273 = vmatmul.mubr.bf16.gmra.mrb[0].mxu0 %v2187
    %v2274 = vpop.f32.mrb[0].mxu0
    %v2275 = vadd.f32 0.0, %v2274
    %v2276 = vpop.f32.mrb[0].mxu0
    %v2277 = vpop.f32.mrb[0].mxu0
    %v2278 = vadd.f32 0.0, %v2277
    %v2279 = vpop.f32.mrb[0].mxu0
    %2280 = vmatprep.mubr.bf16.mxu0 0
    %2281 = vmatmul.mubr.bf16.gmra.mrb[0].mxu0 %v2190
    %v2282 = vpop.f32.mrb[0].mxu0
    %v2283 = vadd.f32 0.0, %v2282
    %v2284 = vpop.f32.mrb[0].mxu0
    %v2285 = vpop.f32.mrb[0].mxu0
    %v2286 = vadd.f32 0.0, %v2285
    %v2287 = vpop.f32.mrb[0].mxu0
    %2288 = vdwg.mxu0
    %v2289 = vadd.f32 %v1973, %v2227
    %v2290 = vadd.f32 %v1974, %v2230
    %v2291 = vadd.f32 %v1975, %v2235
    %v2292 = vadd.f32 %v1976, %v2238
    %v2293 = vadd.f32 %v1977, %v2243
    %v2294 = vadd.f32 %v1978, %v2246
    %v2295 = vadd.f32 %v1979, %v2251
    %v2296 = vadd.f32 %v1980, %v2254
    %v2297 = vadd.f32 %v1981, %v2259
    %v2298 = vadd.f32 %v1982, %v2262
    %v2299 = vadd.f32 %v1983, %v2267
    %v2300 = vadd.f32 %v1984, %v2270
    %v2301 = vadd.f32 %v1985, %v2275
    %v2302 = vadd.f32 %v1986, %v2278
    %v2303 = vadd.f32 %v1987, %v2283
    %v2304 = vadd.f32 %v1988, %v2286
    %s2305 = scalar_lea.vmem %s3, 320
    %v2306 = vld [vmem:[%s2305] sm:$0xf]
    %v2307 = vld [vmem:[%s2305 + $0x4] sm:$0xf]
    %v2308 = vld [vmem:[%s2305 + $0x8] sm:$0xf]
    %v2309 = vld [vmem:[%s2305 + $0xc] sm:$0xf]
    %v2310 = vld [vmem:[%s2305 + $0x10] sm:$0xf]
    %v2311 = vld [vmem:[%s2305 + $0x14] sm:$0xf]
    %v2312 = vld [vmem:[%s2305 + $0x18] sm:$0xf]
    %v2313 = vld [vmem:[%s2305 + $0x1c] sm:$0xf]
    %v2314 = vld [vmem:[%s2305 + $0x20] sm:$0xf]
    %v2315 = vld [vmem:[%s2305 + $0x24] sm:$0xf]
    %v2316 = vld [vmem:[%s2305 + $0x28] sm:$0xf]
    %v2317 = vld [vmem:[%s2305 + $0x2c] sm:$0xf]
    %v2318 = vld [vmem:[%s2305 + $0x30] sm:$0xf]
    %v2319 = vld [vmem:[%s2305 + $0x34] sm:$0xf]
    %v2320 = vld [vmem:[%s2305 + $0x38] sm:$0xf]
    %v2321 = vld [vmem:[%s2305 + $0x3c] sm:$0xf]
    %v2338 = vunpack.c.l.b16 %v2306
    %v2339 = vunpack.c.l.b16 %v2307
    %v2340 = vunpack.c.l.b16 %v2308
    %v2341 = vunpack.c.l.b16 %v2309
    %v2342 = vunpack.c.l.b16 %v2310
    %v2343 = vunpack.c.l.b16 %v2311
    %v2344 = vunpack.c.l.b16 %v2312
    %v2345 = vunpack.c.l.b16 %v2313
    %v2346 = vunpack.c.l.b16 %v2314
    %v2347 = vunpack.c.l.b16 %v2315
    %v2348 = vunpack.c.l.b16 %v2316
    %v2349 = vunpack.c.l.b16 %v2317
    %v2350 = vunpack.c.l.b16 %v2318
    %v2351 = vunpack.c.l.b16 %v2319
    %v2352 = vunpack.c.l.b16 %v2320
    %v2353 = vunpack.c.l.b16 %v2321
    %v2354 = vpack.c.b16 %v2339, %v2338
    %v2355 = vpack.c.b16 %v2341, %v2340
    %v2356 = vpack.c.b16 %v2343, %v2342
    %v2357 = vpack.c.b16 %v2345, %v2344
    %v2358 = vpack.c.b16 %v2347, %v2346
    %v2359 = vpack.c.b16 %v2349, %v2348
    %v2360 = vpack.c.b16 %v2351, %v2350
    %v2361 = vpack.c.b16 %v2353, %v2352
    %2370 = vmatprep.subr.bf16.mxu0 0
    %2371 = vmatpush1.bf16.msra.mxu0 %v750
    %2372 = vmatprep.subr.bf16.mxu0 0
    %2373 = vmatpush1.bf16.msra.mxu0 %v751
    %2374 = vmatprep.subr.bf16.mxu0 0
    %2375 = vmatpush1.bf16.msra.mxu0 %v752
    %2376 = vmatprep.subr.bf16.mxu0 0
    %2377 = vmatpush1.bf16.msra.mxu0 %v753
    %2378 = vmatprep.subr.bf16.mxu0 0
    %2379 = vmatpush1.bf16.msra.mxu0 %v754
    %2380 = vmatprep.subr.bf16.mxu0 0
    %2381 = vmatpush1.bf16.msra.mxu0 %v755
    %2382 = vmatprep.subr.bf16.mxu0 0
    %2383 = vmatpush1.bf16.msra.mxu0 %v756
    %2384 = vmatprep.subr.bf16.mxu0 0
    %2385 = vmatpush1.bf16.msra.mxu0 %v757
    %2386 = vmatprep.subr.bf16.mxu0 0
    %2387 = vmatpush1.bf16.msra.mxu0 0
    %2388 = vmatprep.subr.bf16.mxu0 0
    %2389 = vmatpush1.bf16.msra.mxu0 0
    %2390 = vmatprep.subr.bf16.mxu0 0
    %2391 = vmatpush1.bf16.msra.mxu0 0
    %2392 = vmatprep.subr.bf16.mxu0 0
    %2393 = vmatpush1.bf16.msra.mxu0 0
    %2394 = vmatprep.subr.bf16.mxu0 0
    %2395 = vmatpush1.bf16.msra.mxu0 0
    %2396 = vmatprep.subr.bf16.mxu0 0
    %2397 = vmatpush1.bf16.msra.mxu0 0
    %2398 = vmatprep.subr.bf16.mxu0 0
    %2399 = vmatpush1.bf16.msra.mxu0 0
    %2400 = vmatprep.subr.bf16.mxu0 0
    %2401 = vmatpush1.bf16.msra.mxu0 0
    %2402 = vmatprep.mubr.bf16.mxu0 0
    %2403 = vmatmul.mubr.bf16.gmra.mrb[0].mxu0 %v2354
    %v2404 = vpop.f32.mrb[0].mxu0
    %v2405 = vadd.f32 0.0, %v2404
    %v2406 = vpop.f32.mrb[0].mxu0
    %v2407 = vpop.f32.mrb[0].mxu0
    %v2408 = vadd.f32 0.0, %v2407
    %v2409 = vpop.f32.mrb[0].mxu0
    %2410 = vmatprep.mubr.bf16.mxu0 0
    %2411 = vmatmul.mubr.bf16.gmra.mrb[0].mxu0 %v2355
    %v2412 = vpop.f32.mrb[0].mxu0
    %v2413 = vadd.f32 0.0, %v2412
    %v2414 = vpop.f32.mrb[0].mxu0
    %v2415 = vpop.f32.mrb[0].mxu0
    %v2416 = vadd.f32 0.0, %v2415
    %v2417 = vpop.f32.mrb[0].mxu0
    %2418 = vmatprep.mubr.bf16.mxu0 0
    %2419 = vmatmul.mubr.bf16.gmra.mrb[0].mxu0 %v2356
    %v2420 = vpop.f32.mrb[0].mxu0
    %v2421 = vadd.f32 0.0, %v2420
    %v2422 = vpop.f32.mrb[0].mxu0
    %v2423 = vpop.f32.mrb[0].mxu0
    %v2424 = vadd.f32 0.0, %v2423
    %v2425 = vpop.f32.mrb[0].mxu0
    %2426 = vmatprep.mubr.bf16.mxu0 0
    %2427 = vmatmul.mubr.bf16.gmra.mrb[0].mxu0 %v2357
    %v2428 = vpop.f32.mrb[0].mxu0
    %v2429 = vadd.f32 0.0, %v2428
    %v2430 = vpop.f32.mrb[0].mxu0
    %v2431 = vpop.f32.mrb[0].mxu0
    %v2432 = vadd.f32 0.0, %v2431
    %v2433 = vpop.f32.mrb[0].mxu0
    %2434 = vmatprep.mubr.bf16.mxu0 0
    %2435 = vmatmul.mubr.bf16.gmra.mrb[0].mxu0 %v2358
    %v2436 = vpop.f32.mrb[0].mxu0
    %v2437 = vadd.f32 0.0, %v2436
    %v2438 = vpop.f32.mrb[0].mxu0
    %v2439 = vpop.f32.mrb[0].mxu0
    %v2440 = vadd.f32 0.0, %v2439
    %v2441 = vpop.f32.mrb[0].mxu0
    %2442 = vmatprep.mubr.bf16.mxu0 0
    %2443 = vmatmul.mubr.bf16.gmra.mrb[0].mxu0 %v2359
    %v2444 = vpop.f32.mrb[0].mxu0
    %v2445 = vadd.f32 0.0, %v2444
    %v2446 = vpop.f32.mrb[0].mxu0
    %v2447 = vpop.f32.mrb[0].mxu0
    %v2448 = vadd.f32 0.0, %v2447
    %v2449 = vpop.f32.mrb[0].mxu0
    %2450 = vmatprep.mubr.bf16.mxu0 0
    %2451 = vmatmul.mubr.bf16.gmra.mrb[0].mxu0 %v2360
    %v2452 = vpop.f32.mrb[0].mxu0
    %v2453 = vadd.f32 0.0, %v2452
    %v2454 = vpop.f32.mrb[0].mxu0
    %v2455 = vpop.f32.mrb[0].mxu0
    %v2456 = vadd.f32 0.0, %v2455
    %v2457 = vpop.f32.mrb[0].mxu0
    %2458 = vmatprep.mubr.bf16.mxu0 0
    %2459 = vmatmul.mubr.bf16.gmra.mrb[0].mxu0 %v2361
    %v2460 = vpop.f32.mrb[0].mxu0
    %v2461 = vadd.f32 0.0, %v2460
    %v2462 = vpop.f32.mrb[0].mxu0
    %v2463 = vpop.f32.mrb[0].mxu0
    %v2464 = vadd.f32 0.0, %v2463
    %v2465 = vpop.f32.mrb[0].mxu0
    %2466 = vdwg.mxu0
    %v2467 = vpack.c.bf16 %v2408, %v2405
    %v2468 = vpack.c.bf16 %v2416, %v2413
    %v2469 = vpack.c.bf16 %v2424, %v2421
    %v2470 = vpack.c.bf16 %v2432, %v2429
    %v2471 = vpack.c.bf16 %v2440, %v2437
    %v2472 = vpack.c.bf16 %v2448, %v2445
    %v2473 = vpack.c.bf16 %v2456, %v2453
    %v2474 = vpack.c.bf16 %v2464, %v2461
    %s2475 = scalar_lea.vmem %s4, 40
    %v2476 = vld [vmem:[%s2475] sm:$0xf]
    %v2477 = vld [vmem:[%s2475 + $0x4] sm:$0xf]
    %v2480 = vunpack.c.l.b16 %v2476
    %v2481 = vunpack.c.l.b16 %v2477
    %v2482 = vpack.c.b16 %v2481, %v2480
    %v2485 = vsel %vm1108, %v2467, 0
    %v2488 = vsel %vm1108, %v2468, 0
    %v2491 = vsel %vm1108, %v2469, 0
    %v2494 = vsel %vm1108, %v2470, 0
    %v2497 = vsel %vm1108, %v2471, 0
    %v2500 = vsel %vm1108, %v2472, 0
    %v2503 = vsel %vm1108, %v2473, 0
    %v2506 = vsel %vm1108, %v2474, 0
    %2508 = vmatprep.subr.bf16.mxu0 0
    %2509 = vmatpush1.bf16.msra.mxu0 %v2482
    %2510 = vmatprep.subr.bf16.mxu0 0
    %2511 = vmatpush1.bf16.msra.mxu0 0
    %2512 = vmatprep.subr.bf16.mxu0 0
    %2513 = vmatpush1.bf16.msra.mxu0 0
    %2514 = vmatprep.subr.bf16.mxu0 0
    %2515 = vmatpush1.bf16.msra.mxu0 0
    %2516 = vmatprep.subr.bf16.mxu0 0
    %2517 = vmatpush1.bf16.msra.mxu0 0
    %2518 = vmatprep.subr.bf16.mxu0 0
    %2519 = vmatpush1.bf16.msra.mxu0 0
    %2520 = vmatprep.subr.bf16.mxu0 0
    %2521 = vmatpush1.bf16.msra.mxu0 0
    %2522 = vmatprep.subr.bf16.mxu0 0
    %2523 = vmatpush1.bf16.msra.mxu0 0
    %2524 = vmatprep.subr.bf16.mxu0 0
    %2525 = vmatpush1.bf16.msra.mxu0 0
    %2526 = vmatprep.subr.bf16.mxu0 0
    %2527 = vmatpush1.bf16.msra.mxu0 0
    %2528 = vmatprep.subr.bf16.mxu0 0
    %2529 = vmatpush1.bf16.msra.mxu0 0
    %2530 = vmatprep.subr.bf16.mxu0 0
    %2531 = vmatpush1.bf16.msra.mxu0 0
    %2532 = vmatprep.subr.bf16.mxu0 0
    %2533 = vmatpush1.bf16.msra.mxu0 0
    %2534 = vmatprep.subr.bf16.mxu0 0
    %2535 = vmatpush1.bf16.msra.mxu0 0
    %2536 = vmatprep.subr.bf16.mxu0 0
    %2537 = vmatpush1.bf16.msra.mxu0 0
    %2538 = vmatprep.subr.bf16.mxu0 0
    %2539 = vmatpush1.bf16.msra.mxu0 0
    %2540 = vmatprep.mubr.bf16.mxu0 0
    %2541 = vmatmul.mubr.bf16.gmra.mrb[0].mxu0 %v2485
    %v2542 = vpop.f32.mrb[0].mxu0
    %v2543 = vadd.f32 0.0, %v2542
    %v2544 = vpop.f32.mrb[0].mxu0
    %v2545 = vpop.f32.mrb[0].mxu0
    %v2546 = vadd.f32 0.0, %v2545
    %v2547 = vpop.f32.mrb[0].mxu0
    %2548 = vmatprep.mubr.bf16.mxu0 0
    %2549 = vmatmul.mubr.bf16.gmra.mrb[0].mxu0 %v2488
    %v2550 = vpop.f32.mrb[0].mxu0
    %v2551 = vadd.f32 0.0, %v2550
    %v2552 = vpop.f32.mrb[0].mxu0
    %v2553 = vpop.f32.mrb[0].mxu0
    %v2554 = vadd.f32 0.0, %v2553
    %v2555 = vpop.f32.mrb[0].mxu0
    %2556 = vmatprep.mubr.bf16.mxu0 0
    %2557 = vmatmul.mubr.bf16.gmra.mrb[0].mxu0 %v2491
    %v2558 = vpop.f32.mrb[0].mxu0
    %v2559 = vadd.f32 0.0, %v2558
    %v2560 = vpop.f32.mrb[0].mxu0
    %v2561 = vpop.f32.mrb[0].mxu0
    %v2562 = vadd.f32 0.0, %v2561
    %v2563 = vpop.f32.mrb[0].mxu0
    %2564 = vmatprep.mubr.bf16.mxu0 0
    %2565 = vmatmul.mubr.bf16.gmra.mrb[0].mxu0 %v2494
    %v2566 = vpop.f32.mrb[0].mxu0
    %v2567 = vadd.f32 0.0, %v2566
    %v2568 = vpop.f32.mrb[0].mxu0
    %v2569 = vpop.f32.mrb[0].mxu0
    %v2570 = vadd.f32 0.0, %v2569
    %v2571 = vpop.f32.mrb[0].mxu0
    %2572 = vmatprep.mubr.bf16.mxu0 0
    %2573 = vmatmul.mubr.bf16.gmra.mrb[0].mxu0 %v2497
    %v2574 = vpop.f32.mrb[0].mxu0
    %v2575 = vadd.f32 0.0, %v2574
    %v2576 = vpop.f32.mrb[0].mxu0
    %v2577 = vpop.f32.mrb[0].mxu0
    %v2578 = vadd.f32 0.0, %v2577
    %v2579 = vpop.f32.mrb[0].mxu0
    %2580 = vmatprep.mubr.bf16.mxu0 0
    %2581 = vmatmul.mubr.bf16.gmra.mrb[0].mxu0 %v2500
    %v2582 = vpop.f32.mrb[0].mxu0
    %v2583 = vadd.f32 0.0, %v2582
    %v2584 = vpop.f32.mrb[0].mxu0
    %v2585 = vpop.f32.mrb[0].mxu0
    %v2586 = vadd.f32 0.0, %v2585
    %v2587 = vpop.f32.mrb[0].mxu0
    %2588 = vmatprep.mubr.bf16.mxu0 0
    %2589 = vmatmul.mubr.bf16.gmra.mrb[0].mxu0 %v2503
    %v2590 = vpop.f32.mrb[0].mxu0
    %v2591 = vadd.f32 0.0, %v2590
    %v2592 = vpop.f32.mrb[0].mxu0
    %v2593 = vpop.f32.mrb[0].mxu0
    %v2594 = vadd.f32 0.0, %v2593
    %v2595 = vpop.f32.mrb[0].mxu0
    %2596 = vmatprep.mubr.bf16.mxu0 0
    %2597 = vmatmul.mubr.bf16.gmra.mrb[0].mxu0 %v2506
    %v2598 = vpop.f32.mrb[0].mxu0
    %v2599 = vadd.f32 0.0, %v2598
    %v2600 = vpop.f32.mrb[0].mxu0
    %v2601 = vpop.f32.mrb[0].mxu0
    %v2602 = vadd.f32 0.0, %v2601
    %v2603 = vpop.f32.mrb[0].mxu0
    %2604 = vdwg.mxu0
    %v2605 = vadd.f32 %v2289, %v2543
    %v2606 = vadd.f32 %v2290, %v2546
    %v2607 = vadd.f32 %v2291, %v2551
    %v2608 = vadd.f32 %v2292, %v2554
    %v2609 = vadd.f32 %v2293, %v2559
    %v2610 = vadd.f32 %v2294, %v2562
    %v2611 = vadd.f32 %v2295, %v2567
    %v2612 = vadd.f32 %v2296, %v2570
    %v2613 = vadd.f32 %v2297, %v2575
    %v2614 = vadd.f32 %v2298, %v2578
    %v2615 = vadd.f32 %v2299, %v2583
    %v2616 = vadd.f32 %v2300, %v2586
    %v2617 = vadd.f32 %v2301, %v2591
    %v2618 = vadd.f32 %v2302, %v2594
    %v2619 = vadd.f32 %v2303, %v2599
    %v2620 = vadd.f32 %v2304, %v2602
    %s2621 = scalar_lea.vmem %s3, 384
    %v2622 = vld [vmem:[%s2621] sm:$0xf]
    %v2623 = vld [vmem:[%s2621 + $0x4] sm:$0xf]
    %v2624 = vld [vmem:[%s2621 + $0x8] sm:$0xf]
    %v2625 = vld [vmem:[%s2621 + $0xc] sm:$0xf]
    %v2626 = vld [vmem:[%s2621 + $0x10] sm:$0xf]
    %v2627 = vld [vmem:[%s2621 + $0x14] sm:$0xf]
    %v2628 = vld [vmem:[%s2621 + $0x18] sm:$0xf]
    %v2629 = vld [vmem:[%s2621 + $0x1c] sm:$0xf]
    %v2630 = vld [vmem:[%s2621 + $0x20] sm:$0xf]
    %v2631 = vld [vmem:[%s2621 + $0x24] sm:$0xf]
    %v2632 = vld [vmem:[%s2621 + $0x28] sm:$0xf]
    %v2633 = vld [vmem:[%s2621 + $0x2c] sm:$0xf]
    %v2634 = vld [vmem:[%s2621 + $0x30] sm:$0xf]
    %v2635 = vld [vmem:[%s2621 + $0x34] sm:$0xf]
    %v2636 = vld [vmem:[%s2621 + $0x38] sm:$0xf]
    %v2637 = vld [vmem:[%s2621 + $0x3c] sm:$0xf]
    %v2654 = vunpack.c.l.b16 %v2622
    %v2655 = vunpack.c.l.b16 %v2623
    %v2656 = vunpack.c.l.b16 %v2624
    %v2657 = vunpack.c.l.b16 %v2625
    %v2658 = vunpack.c.l.b16 %v2626
    %v2659 = vunpack.c.l.b16 %v2627
    %v2660 = vunpack.c.l.b16 %v2628
    %v2661 = vunpack.c.l.b16 %v2629
    %v2662 = vunpack.c.l.b16 %v2630
    %v2663 = vunpack.c.l.b16 %v2631
    %v2664 = vunpack.c.l.b16 %v2632
    %v2665 = vunpack.c.l.b16 %v2633
    %v2666 = vunpack.c.l.b16 %v2634
    %v2667 = vunpack.c.l.b16 %v2635
    %v2668 = vunpack.c.l.b16 %v2636
    %v2669 = vunpack.c.l.b16 %v2637
    %v2670 = vpack.c.b16 %v2655, %v2654
    %v2671 = vpack.c.b16 %v2657, %v2656
    %v2672 = vpack.c.b16 %v2659, %v2658
    %v2673 = vpack.c.b16 %v2661, %v2660
    %v2674 = vpack.c.b16 %v2663, %v2662
    %v2675 = vpack.c.b16 %v2665, %v2664
    %v2676 = vpack.c.b16 %v2667, %v2666
    %v2677 = vpack.c.b16 %v2669, %v2668
    %2686 = vmatprep.subr.bf16.mxu0 0
    %2687 = vmatpush1.bf16.msra.mxu0 %v750
    %2688 = vmatprep.subr.bf16.mxu0 0
    %2689 = vmatpush1.bf16.msra.mxu0 %v751
    %2690 = vmatprep.subr.bf16.mxu0 0
    %2691 = vmatpush1.bf16.msra.mxu0 %v752
    %2692 = vmatprep.subr.bf16.mxu0 0
    %2693 = vmatpush1.bf16.msra.mxu0 %v753
    %2694 = vmatprep.subr.bf16.mxu0 0
    %2695 = vmatpush1.bf16.msra.mxu0 %v754
    %2696 = vmatprep.subr.bf16.mxu0 0
    %2697 = vmatpush1.bf16.msra.mxu0 %v755
    %2698 = vmatprep.subr.bf16.mxu0 0
    %2699 = vmatpush1.bf16.msra.mxu0 %v756
    %2700 = vmatprep.subr.bf16.mxu0 0
    %2701 = vmatpush1.bf16.msra.mxu0 %v757
    %2702 = vmatprep.subr.bf16.mxu0 0
    %2703 = vmatpush1.bf16.msra.mxu0 0
    %2704 = vmatprep.subr.bf16.mxu0 0
    %2705 = vmatpush1.bf16.msra.mxu0 0
    %2706 = vmatprep.subr.bf16.mxu0 0
    %2707 = vmatpush1.bf16.msra.mxu0 0
    %2708 = vmatprep.subr.bf16.mxu0 0
    %2709 = vmatpush1.bf16.msra.mxu0 0
    %2710 = vmatprep.subr.bf16.mxu0 0
    %2711 = vmatpush1.bf16.msra.mxu0 0
    %2712 = vmatprep.subr.bf16.mxu0 0
    %2713 = vmatpush1.bf16.msra.mxu0 0
    %2714 = vmatprep.subr.bf16.mxu0 0
    %2715 = vmatpush1.bf16.msra.mxu0 0
    %2716 = vmatprep.subr.bf16.mxu0 0
    %2717 = vmatpush1.bf16.msra.mxu0 0
    %2718 = vmatprep.mubr.bf16.mxu0 0
    %2719 = vmatmul.mubr.bf16.gmra.mrb[0].mxu0 %v2670
    %v2720 = vpop.f32.mrb[0].mxu0
    %v2721 = vadd.f32 0.0, %v2720
    %v2722 = vpop.f32.mrb[0].mxu0
    %v2723 = vpop.f32.mrb[0].mxu0
    %v2724 = vadd.f32 0.0, %v2723
    %v2725 = vpop.f32.mrb[0].mxu0
    %2726 = vmatprep.mubr.bf16.mxu0 0
    %2727 = vmatmul.mubr.bf16.gmra.mrb[0].mxu0 %v2671
    %v2728 = vpop.f32.mrb[0].mxu0
    %v2729 = vadd.f32 0.0, %v2728
    %v2730 = vpop.f32.mrb[0].mxu0
    %v2731 = vpop.f32.mrb[0].mxu0
    %v2732 = vadd.f32 0.0, %v2731
    %v2733 = vpop.f32.mrb[0].mxu0
    %2734 = vmatprep.mubr.bf16.mxu0 0
    %2735 = vmatmul.mubr.bf16.gmra.mrb[0].mxu0 %v2672
    %v2736 = vpop.f32.mrb[0].mxu0
    %v2737 = vadd.f32 0.0, %v2736
    %v2738 = vpop.f32.mrb[0].mxu0
    %v2739 = vpop.f32.mrb[0].mxu0
    %v2740 = vadd.f32 0.0, %v2739
    %v2741 = vpop.f32.mrb[0].mxu0
    %2742 = vmatprep.mubr.bf16.mxu0 0
    %2743 = vmatmul.mubr.bf16.gmra.mrb[0].mxu0 %v2673
    %v2744 = vpop.f32.mrb[0].mxu0
    %v2745 = vadd.f32 0.0, %v2744
    %v2746 = vpop.f32.mrb[0].mxu0
    %v2747 = vpop.f32.mrb[0].mxu0
    %v2748 = vadd.f32 0.0, %v2747
    %v2749 = vpop.f32.mrb[0].mxu0
    %2750 = vmatprep.mubr.bf16.mxu0 0
    %2751 = vmatmul.mubr.bf16.gmra.mrb[0].mxu0 %v2674
    %v2752 = vpop.f32.mrb[0].mxu0
    %v2753 = vadd.f32 0.0, %v2752
    %v2754 = vpop.f32.mrb[0].mxu0
    %v2755 = vpop.f32.mrb[0].mxu0
    %v2756 = vadd.f32 0.0, %v2755
    %v2757 = vpop.f32.mrb[0].mxu0
    %2758 = vmatprep.mubr.bf16.mxu0 0
    %2759 = vmatmul.mubr.bf16.gmra.mrb[0].mxu0 %v2675
    %v2760 = vpop.f32.mrb[0].mxu0
    %v2761 = vadd.f32 0.0, %v2760
    %v2762 = vpop.f32.mrb[0].mxu0
    %v2763 = vpop.f32.mrb[0].mxu0
    %v2764 = vadd.f32 0.0, %v2763
    %v2765 = vpop.f32.mrb[0].mxu0
    %2766 = vmatprep.mubr.bf16.mxu0 0
    %2767 = vmatmul.mubr.bf16.gmra.mrb[0].mxu0 %v2676
    %v2768 = vpop.f32.mrb[0].mxu0
    %v2769 = vadd.f32 0.0, %v2768
    %v2770 = vpop.f32.mrb[0].mxu0
    %v2771 = vpop.f32.mrb[0].mxu0
    %v2772 = vadd.f32 0.0, %v2771
    %v2773 = vpop.f32.mrb[0].mxu0
    %2774 = vmatprep.mubr.bf16.mxu0 0
    %2775 = vmatmul.mubr.bf16.gmra.mrb[0].mxu0 %v2677
    %v2776 = vpop.f32.mrb[0].mxu0
    %v2777 = vadd.f32 0.0, %v2776
    %v2778 = vpop.f32.mrb[0].mxu0
    %v2779 = vpop.f32.mrb[0].mxu0
    %v2780 = vadd.f32 0.0, %v2779
    %v2781 = vpop.f32.mrb[0].mxu0
    %2782 = vdwg.mxu0
    %v2783 = vpack.c.bf16 %v2724, %v2721
    %v2784 = vpack.c.bf16 %v2732, %v2729
    %v2785 = vpack.c.bf16 %v2740, %v2737
    %v2786 = vpack.c.bf16 %v2748, %v2745
    %v2787 = vpack.c.bf16 %v2756, %v2753
    %v2788 = vpack.c.bf16 %v2764, %v2761
    %v2789 = vpack.c.bf16 %v2772, %v2769
    %v2790 = vpack.c.bf16 %v2780, %v2777
    %s2791 = scalar_lea.vmem %s4, 48
    %v2792 = vld [vmem:[%s2791] sm:$0xf]
    %v2793 = vld [vmem:[%s2791 + $0x4] sm:$0xf]
    %v2796 = vunpack.c.l.b16 %v2792
    %v2797 = vunpack.c.l.b16 %v2793
    %v2798 = vpack.c.b16 %v2797, %v2796
    %v2801 = vsel %vm1108, %v2783, 0
    %v2804 = vsel %vm1108, %v2784, 0
    %v2807 = vsel %vm1108, %v2785, 0
    %v2810 = vsel %vm1108, %v2786, 0
    %v2813 = vsel %vm1108, %v2787, 0
    %v2816 = vsel %vm1108, %v2788, 0
    %v2819 = vsel %vm1108, %v2789, 0
    %v2822 = vsel %vm1108, %v2790, 0
    %2824 = vmatprep.subr.bf16.mxu0 0
    %2825 = vmatpush1.bf16.msra.mxu0 %v2798
    %2826 = vmatprep.subr.bf16.mxu0 0
    %2827 = vmatpush1.bf16.msra.mxu0 0
    %2828 = vmatprep.subr.bf16.mxu0 0
    %2829 = vmatpush1.bf16.msra.mxu0 0
    %2830 = vmatprep.subr.bf16.mxu0 0
    %2831 = vmatpush1.bf16.msra.mxu0 0
    %2832 = vmatprep.subr.bf16.mxu0 0
    %2833 = vmatpush1.bf16.msra.mxu0 0
    %2834 = vmatprep.subr.bf16.mxu0 0
    %2835 = vmatpush1.bf16.msra.mxu0 0
    %2836 = vmatprep.subr.bf16.mxu0 0
    %2837 = vmatpush1.bf16.msra.mxu0 0
    %2838 = vmatprep.subr.bf16.mxu0 0
    %2839 = vmatpush1.bf16.msra.mxu0 0
    %2840 = vmatprep.subr.bf16.mxu0 0
    %2841 = vmatpush1.bf16.msra.mxu0 0
    %2842 = vmatprep.subr.bf16.mxu0 0
    %2843 = vmatpush1.bf16.msra.mxu0 0
    %2844 = vmatprep.subr.bf16.mxu0 0
    %2845 = vmatpush1.bf16.msra.mxu0 0
    %2846 = vmatprep.subr.bf16.mxu0 0
    %2847 = vmatpush1.bf16.msra.mxu0 0
    %2848 = vmatprep.subr.bf16.mxu0 0
    %2849 = vmatpush1.bf16.msra.mxu0 0
    %2850 = vmatprep.subr.bf16.mxu0 0
    %2851 = vmatpush1.bf16.msra.mxu0 0
    %2852 = vmatprep.subr.bf16.mxu0 0
    %2853 = vmatpush1.bf16.msra.mxu0 0
    %2854 = vmatprep.subr.bf16.mxu0 0
    %2855 = vmatpush1.bf16.msra.mxu0 0
    %2856 = vmatprep.mubr.bf16.mxu0 0
    %2857 = vmatmul.mubr.bf16.gmra.mrb[0].mxu0 %v2801
    %v2858 = vpop.f32.mrb[0].mxu0
    %v2859 = vadd.f32 0.0, %v2858
    %v2860 = vpop.f32.mrb[0].mxu0
    %v2861 = vpop.f32.mrb[0].mxu0
    %v2862 = vadd.f32 0.0, %v2861
    %v2863 = vpop.f32.mrb[0].mxu0
    %2864 = vmatprep.mubr.bf16.mxu0 0
    %2865 = vmatmul.mubr.bf16.gmra.mrb[0].mxu0 %v2804
    %v2866 = vpop.f32.mrb[0].mxu0
    %v2867 = vadd.f32 0.0, %v2866
    %v2868 = vpop.f32.mrb[0].mxu0
    %v2869 = vpop.f32.mrb[0].mxu0
    %v2870 = vadd.f32 0.0, %v2869
    %v2871 = vpop.f32.mrb[0].mxu0
    %2872 = vmatprep.mubr.bf16.mxu0 0
    %2873 = vmatmul.mubr.bf16.gmra.mrb[0].mxu0 %v2807
    %v2874 = vpop.f32.mrb[0].mxu0
    %v2875 = vadd.f32 0.0, %v2874
    %v2876 = vpop.f32.mrb[0].mxu0
    %v2877 = vpop.f32.mrb[0].mxu0
    %v2878 = vadd.f32 0.0, %v2877
    %v2879 = vpop.f32.mrb[0].mxu0
    %2880 = vmatprep.mubr.bf16.mxu0 0
    %2881 = vmatmul.mubr.bf16.gmra.mrb[0].mxu0 %v2810
    %v2882 = vpop.f32.mrb[0].mxu0
    %v2883 = vadd.f32 0.0, %v2882
    %v2884 = vpop.f32.mrb[0].mxu0
    %v2885 = vpop.f32.mrb[0].mxu0
    %v2886 = vadd.f32 0.0, %v2885
    %v2887 = vpop.f32.mrb[0].mxu0
    %2888 = vmatprep.mubr.bf16.mxu0 0
    %2889 = vmatmul.mubr.bf16.gmra.mrb[0].mxu0 %v2813
    %v2890 = vpop.f32.mrb[0].mxu0
    %v2891 = vadd.f32 0.0, %v2890
    %v2892 = vpop.f32.mrb[0].mxu0
    %v2893 = vpop.f32.mrb[0].mxu0
    %v2894 = vadd.f32 0.0, %v2893
    %v2895 = vpop.f32.mrb[0].mxu0
    %2896 = vmatprep.mubr.bf16.mxu0 0
    %2897 = vmatmul.mubr.bf16.gmra.mrb[0].mxu0 %v2816
    %v2898 = vpop.f32.mrb[0].mxu0
    %v2899 = vadd.f32 0.0, %v2898
    %v2900 = vpop.f32.mrb[0].mxu0
    %v2901 = vpop.f32.mrb[0].mxu0
    %v2902 = vadd.f32 0.0, %v2901
    %v2903 = vpop.f32.mrb[0].mxu0
    %2904 = vmatprep.mubr.bf16.mxu0 0
    %2905 = vmatmul.mubr.bf16.gmra.mrb[0].mxu0 %v2819
    %v2906 = vpop.f32.mrb[0].mxu0
    %v2907 = vadd.f32 0.0, %v2906
    %v2908 = vpop.f32.mrb[0].mxu0
    %v2909 = vpop.f32.mrb[0].mxu0
    %v2910 = vadd.f32 0.0, %v2909
    %v2911 = vpop.f32.mrb[0].mxu0
    %2912 = vmatprep.mubr.bf16.mxu0 0
    %2913 = vmatmul.mubr.bf16.gmra.mrb[0].mxu0 %v2822
    %v2914 = vpop.f32.mrb[0].mxu0
    %v2915 = vadd.f32 0.0, %v2914
    %v2916 = vpop.f32.mrb[0].mxu0
    %v2917 = vpop.f32.mrb[0].mxu0
    %v2918 = vadd.f32 0.0, %v2917
    %v2919 = vpop.f32.mrb[0].mxu0
    %2920 = vdwg.mxu0
    %v2921 = vadd.f32 %v2605, %v2859
    %v2922 = vadd.f32 %v2606, %v2862
    %v2923 = vadd.f32 %v2607, %v2867
    %v2924 = vadd.f32 %v2608, %v2870
    %v2925 = vadd.f32 %v2609, %v2875
    %v2926 = vadd.f32 %v2610, %v2878
    %v2927 = vadd.f32 %v2611, %v2883
    %v2928 = vadd.f32 %v2612, %v2886
    %v2929 = vadd.f32 %v2613, %v2891
    %v2930 = vadd.f32 %v2614, %v2894
    %v2931 = vadd.f32 %v2615, %v2899
    %v2932 = vadd.f32 %v2616, %v2902
    %v2933 = vadd.f32 %v2617, %v2907
    %v2934 = vadd.f32 %v2618, %v2910
    %v2935 = vadd.f32 %v2619, %v2915
    %v2936 = vadd.f32 %v2620, %v2918
    %s2937 = scalar_lea.vmem %s3, 448
    %v2938 = vld [vmem:[%s2937] sm:$0xf]
    %v2939 = vld [vmem:[%s2937 + $0x4] sm:$0xf]
    %v2940 = vld [vmem:[%s2937 + $0x8] sm:$0xf]
    %v2941 = vld [vmem:[%s2937 + $0xc] sm:$0xf]
    %v2942 = vld [vmem:[%s2937 + $0x10] sm:$0xf]
    %v2943 = vld [vmem:[%s2937 + $0x14] sm:$0xf]
    %v2944 = vld [vmem:[%s2937 + $0x18] sm:$0xf]
    %v2945 = vld [vmem:[%s2937 + $0x1c] sm:$0xf]
    %v2946 = vld [vmem:[%s2937 + $0x20] sm:$0xf]
    %v2947 = vld [vmem:[%s2937 + $0x24] sm:$0xf]
    %v2948 = vld [vmem:[%s2937 + $0x28] sm:$0xf]
    %v2949 = vld [vmem:[%s2937 + $0x2c] sm:$0xf]
    %v2950 = vld [vmem:[%s2937 + $0x30] sm:$0xf]
    %v2951 = vld [vmem:[%s2937 + $0x34] sm:$0xf]
    %v2952 = vld [vmem:[%s2937 + $0x38] sm:$0xf]
    %v2953 = vld [vmem:[%s2937 + $0x3c] sm:$0xf]
    %v2970 = vunpack.c.l.b16 %v2938
    %v2971 = vunpack.c.l.b16 %v2939
    %v2972 = vunpack.c.l.b16 %v2940
    %v2973 = vunpack.c.l.b16 %v2941
    %v2974 = vunpack.c.l.b16 %v2942
    %v2975 = vunpack.c.l.b16 %v2943
    %v2976 = vunpack.c.l.b16 %v2944
    %v2977 = vunpack.c.l.b16 %v2945
    %v2978 = vunpack.c.l.b16 %v2946
    %v2979 = vunpack.c.l.b16 %v2947
    %v2980 = vunpack.c.l.b16 %v2948
    %v2981 = vunpack.c.l.b16 %v2949
    %v2982 = vunpack.c.l.b16 %v2950
    %v2983 = vunpack.c.l.b16 %v2951
    %v2984 = vunpack.c.l.b16 %v2952
    %v2985 = vunpack.c.l.b16 %v2953
    %v2986 = vpack.c.b16 %v2971, %v2970
    %v2987 = vpack.c.b16 %v2973, %v2972
    %v2988 = vpack.c.b16 %v2975, %v2974
    %v2989 = vpack.c.b16 %v2977, %v2976
    %v2990 = vpack.c.b16 %v2979, %v2978
    %v2991 = vpack.c.b16 %v2981, %v2980
    %v2992 = vpack.c.b16 %v2983, %v2982
    %v2993 = vpack.c.b16 %v2985, %v2984
    %3002 = vmatprep.subr.bf16.mxu0 0
    %3003 = vmatpush1.bf16.msra.mxu0 %v750
    %3004 = vmatprep.subr.bf16.mxu0 0
    %3005 = vmatpush1.bf16.msra.mxu0 %v751
    %3006 = vmatprep.subr.bf16.mxu0 0
    %3007 = vmatpush1.bf16.msra.mxu0 %v752
    %3008 = vmatprep.subr.bf16.mxu0 0
    %3009 = vmatpush1.bf16.msra.mxu0 %v753
    %3010 = vmatprep.subr.bf16.mxu0 0
    %3011 = vmatpush1.bf16.msra.mxu0 %v754
    %3012 = vmatprep.subr.bf16.mxu0 0
    %3013 = vmatpush1.bf16.msra.mxu0 %v755
    %3014 = vmatprep.subr.bf16.mxu0 0
    %3015 = vmatpush1.bf16.msra.mxu0 %v756
    %3016 = vmatprep.subr.bf16.mxu0 0
    %3017 = vmatpush1.bf16.msra.mxu0 %v757
    %3018 = vmatprep.subr.bf16.mxu0 0
    %3019 = vmatpush1.bf16.msra.mxu0 0
    %3020 = vmatprep.subr.bf16.mxu0 0
    %3021 = vmatpush1.bf16.msra.mxu0 0
    %3022 = vmatprep.subr.bf16.mxu0 0
    %3023 = vmatpush1.bf16.msra.mxu0 0
    %3024 = vmatprep.subr.bf16.mxu0 0
    %3025 = vmatpush1.bf16.msra.mxu0 0
    %3026 = vmatprep.subr.bf16.mxu0 0
    %3027 = vmatpush1.bf16.msra.mxu0 0
    %3028 = vmatprep.subr.bf16.mxu0 0
    %3029 = vmatpush1.bf16.msra.mxu0 0
    %3030 = vmatprep.subr.bf16.mxu0 0
    %3031 = vmatpush1.bf16.msra.mxu0 0
    %3032 = vmatprep.subr.bf16.mxu0 0
    %3033 = vmatpush1.bf16.msra.mxu0 0
    %3034 = vmatprep.mubr.bf16.mxu0 0
    %3035 = vmatmul.mubr.bf16.gmra.mrb[0].mxu0 %v2986
    %v3036 = vpop.f32.mrb[0].mxu0
    %v3037 = vadd.f32 0.0, %v3036
    %v3038 = vpop.f32.mrb[0].mxu0
    %v3039 = vpop.f32.mrb[0].mxu0
    %v3040 = vadd.f32 0.0, %v3039
    %v3041 = vpop.f32.mrb[0].mxu0
    %3042 = vmatprep.mubr.bf16.mxu0 0
    %3043 = vmatmul.mubr.bf16.gmra.mrb[0].mxu0 %v2987
    %v3044 = vpop.f32.mrb[0].mxu0
    %v3045 = vadd.f32 0.0, %v3044
    %v3046 = vpop.f32.mrb[0].mxu0
    %v3047 = vpop.f32.mrb[0].mxu0
    %v3048 = vadd.f32 0.0, %v3047
    %v3049 = vpop.f32.mrb[0].mxu0
    %3050 = vmatprep.mubr.bf16.mxu0 0
    %3051 = vmatmul.mubr.bf16.gmra.mrb[0].mxu0 %v2988
    %v3052 = vpop.f32.mrb[0].mxu0
    %v3053 = vadd.f32 0.0, %v3052
    %v3054 = vpop.f32.mrb[0].mxu0
    %v3055 = vpop.f32.mrb[0].mxu0
    %v3056 = vadd.f32 0.0, %v3055
    %v3057 = vpop.f32.mrb[0].mxu0
    %3058 = vmatprep.mubr.bf16.mxu0 0
    %3059 = vmatmul.mubr.bf16.gmra.mrb[0].mxu0 %v2989
    %v3060 = vpop.f32.mrb[0].mxu0
    %v3061 = vadd.f32 0.0, %v3060
    %v3062 = vpop.f32.mrb[0].mxu0
    %v3063 = vpop.f32.mrb[0].mxu0
    %v3064 = vadd.f32 0.0, %v3063
    %v3065 = vpop.f32.mrb[0].mxu0
    %3066 = vmatprep.mubr.bf16.mxu0 0
    %3067 = vmatmul.mubr.bf16.gmra.mrb[0].mxu0 %v2990
    %v3068 = vpop.f32.mrb[0].mxu0
    %v3069 = vadd.f32 0.0, %v3068
    %v3070 = vpop.f32.mrb[0].mxu0
    %v3071 = vpop.f32.mrb[0].mxu0
    %v3072 = vadd.f32 0.0, %v3071
    %v3073 = vpop.f32.mrb[0].mxu0
    %3074 = vmatprep.mubr.bf16.mxu0 0
    %3075 = vmatmul.mubr.bf16.gmra.mrb[0].mxu0 %v2991
    %v3076 = vpop.f32.mrb[0].mxu0
    %v3077 = vadd.f32 0.0, %v3076
    %v3078 = vpop.f32.mrb[0].mxu0
    %v3079 = vpop.f32.mrb[0].mxu0
    %v3080 = vadd.f32 0.0, %v3079
    %v3081 = vpop.f32.mrb[0].mxu0
    %3082 = vmatprep.mubr.bf16.mxu0 0
    %3083 = vmatmul.mubr.bf16.gmra.mrb[0].mxu0 %v2992
    %v3084 = vpop.f32.mrb[0].mxu0
    %v3085 = vadd.f32 0.0, %v3084
    %v3086 = vpop.f32.mrb[0].mxu0
    %v3087 = vpop.f32.mrb[0].mxu0
    %v3088 = vadd.f32 0.0, %v3087
    %v3089 = vpop.f32.mrb[0].mxu0
    %3090 = vmatprep.mubr.bf16.mxu0 0
    %3091 = vmatmul.mubr.bf16.gmra.mrb[0].mxu0 %v2993
    %v3092 = vpop.f32.mrb[0].mxu0
    %v3093 = vadd.f32 0.0, %v3092
    %v3094 = vpop.f32.mrb[0].mxu0
    %v3095 = vpop.f32.mrb[0].mxu0
    %v3096 = vadd.f32 0.0, %v3095
    %v3097 = vpop.f32.mrb[0].mxu0
    %3098 = vdwg.mxu0
    %v3099 = vpack.c.bf16 %v3040, %v3037
    %v3100 = vpack.c.bf16 %v3048, %v3045
    %v3101 = vpack.c.bf16 %v3056, %v3053
    %v3102 = vpack.c.bf16 %v3064, %v3061
    %v3103 = vpack.c.bf16 %v3072, %v3069
    %v3104 = vpack.c.bf16 %v3080, %v3077
    %v3105 = vpack.c.bf16 %v3088, %v3085
    %v3106 = vpack.c.bf16 %v3096, %v3093
    %s3107 = scalar_lea.vmem %s4, 56
    %v3108 = vld [vmem:[%s3107] sm:$0xf]
    %v3109 = vld [vmem:[%s3107 + $0x4] sm:$0xf]
    %v3112 = vunpack.c.l.b16 %v3108
    %v3113 = vunpack.c.l.b16 %v3109
    %v3114 = vpack.c.b16 %v3113, %v3112
    %v3117 = vsel %vm1108, %v3099, 0
    %v3120 = vsel %vm1108, %v3100, 0
    %v3123 = vsel %vm1108, %v3101, 0
    %v3126 = vsel %vm1108, %v3102, 0
    %v3129 = vsel %vm1108, %v3103, 0
    %v3132 = vsel %vm1108, %v3104, 0
    %v3135 = vsel %vm1108, %v3105, 0
    %v3138 = vsel %vm1108, %v3106, 0
    %3140 = vmatprep.subr.bf16.mxu0 0
    %3141 = vmatpush1.bf16.msra.mxu0 %v3114
    %3142 = vmatprep.subr.bf16.mxu0 0
    %3143 = vmatpush1.bf16.msra.mxu0 0
    %3144 = vmatprep.subr.bf16.mxu0 0
    %3145 = vmatpush1.bf16.msra.mxu0 0
    %3146 = vmatprep.subr.bf16.mxu0 0
    %3147 = vmatpush1.bf16.msra.mxu0 0
    %3148 = vmatprep.subr.bf16.mxu0 0
    %3149 = vmatpush1.bf16.msra.mxu0 0
    %3150 = vmatprep.subr.bf16.mxu0 0
    %3151 = vmatpush1.bf16.msra.mxu0 0
    %3152 = vmatprep.subr.bf16.mxu0 0
    %3153 = vmatpush1.bf16.msra.mxu0 0
    %3154 = vmatprep.subr.bf16.mxu0 0
    %3155 = vmatpush1.bf16.msra.mxu0 0
    %3156 = vmatprep.subr.bf16.mxu0 0
    %3157 = vmatpush1.bf16.msra.mxu0 0
    %3158 = vmatprep.subr.bf16.mxu0 0
    %3159 = vmatpush1.bf16.msra.mxu0 0
    %3160 = vmatprep.subr.bf16.mxu0 0
    %3161 = vmatpush1.bf16.msra.mxu0 0
    %3162 = vmatprep.subr.bf16.mxu0 0
    %3163 = vmatpush1.bf16.msra.mxu0 0
    %3164 = vmatprep.subr.bf16.mxu0 0
    %3165 = vmatpush1.bf16.msra.mxu0 0
    %3166 = vmatprep.subr.bf16.mxu0 0
    %3167 = vmatpush1.bf16.msra.mxu0 0
    %3168 = vmatprep.subr.bf16.mxu0 0
    %3169 = vmatpush1.bf16.msra.mxu0 0
    %3170 = vmatprep.subr.bf16.mxu0 0
    %3171 = vmatpush1.bf16.msra.mxu0 0
    %3172 = vmatprep.mubr.bf16.mxu0 0
    %3173 = vmatmul.mubr.bf16.gmra.mrb[0].mxu0 %v3117
    %v3174 = vpop.f32.mrb[0].mxu0
    %v3175 = vadd.f32 0.0, %v3174
    %v3176 = vpop.f32.mrb[0].mxu0
    %v3177 = vpop.f32.mrb[0].mxu0
    %v3178 = vadd.f32 0.0, %v3177
    %v3179 = vpop.f32.mrb[0].mxu0
    %3180 = vmatprep.mubr.bf16.mxu0 0
    %3181 = vmatmul.mubr.bf16.gmra.mrb[0].mxu0 %v3120
    %v3182 = vpop.f32.mrb[0].mxu0
    %v3183 = vadd.f32 0.0, %v3182
    %v3184 = vpop.f32.mrb[0].mxu0
    %v3185 = vpop.f32.mrb[0].mxu0
    %v3186 = vadd.f32 0.0, %v3185
    %v3187 = vpop.f32.mrb[0].mxu0
    %3188 = vmatprep.mubr.bf16.mxu0 0
    %3189 = vmatmul.mubr.bf16.gmra.mrb[0].mxu0 %v3123
    %v3190 = vpop.f32.mrb[0].mxu0
    %v3191 = vadd.f32 0.0, %v3190
    %v3192 = vpop.f32.mrb[0].mxu0
    %v3193 = vpop.f32.mrb[0].mxu0
    %v3194 = vadd.f32 0.0, %v3193
    %v3195 = vpop.f32.mrb[0].mxu0
    %3196 = vmatprep.mubr.bf16.mxu0 0
    %3197 = vmatmul.mubr.bf16.gmra.mrb[0].mxu0 %v3126
    %v3198 = vpop.f32.mrb[0].mxu0
    %v3199 = vadd.f32 0.0, %v3198
    %v3200 = vpop.f32.mrb[0].mxu0
    %v3201 = vpop.f32.mrb[0].mxu0
    %v3202 = vadd.f32 0.0, %v3201
    %v3203 = vpop.f32.mrb[0].mxu0
    %3204 = vmatprep.mubr.bf16.mxu0 0
    %3205 = vmatmul.mubr.bf16.gmra.mrb[0].mxu0 %v3129
    %v3206 = vpop.f32.mrb[0].mxu0
    %v3207 = vadd.f32 0.0, %v3206
    %v3208 = vpop.f32.mrb[0].mxu0
    %v3209 = vpop.f32.mrb[0].mxu0
    %v3210 = vadd.f32 0.0, %v3209
    %v3211 = vpop.f32.mrb[0].mxu0
    %3212 = vmatprep.mubr.bf16.mxu0 0
    %3213 = vmatmul.mubr.bf16.gmra.mrb[0].mxu0 %v3132
    %v3214 = vpop.f32.mrb[0].mxu0
    %v3215 = vadd.f32 0.0, %v3214
    %v3216 = vpop.f32.mrb[0].mxu0
    %v3217 = vpop.f32.mrb[0].mxu0
    %v3218 = vadd.f32 0.0, %v3217
    %v3219 = vpop.f32.mrb[0].mxu0
    %3220 = vmatprep.mubr.bf16.mxu0 0
    %3221 = vmatmul.mubr.bf16.gmra.mrb[0].mxu0 %v3135
    %v3222 = vpop.f32.mrb[0].mxu0
    %v3223 = vadd.f32 0.0, %v3222
    %v3224 = vpop.f32.mrb[0].mxu0
    %v3225 = vpop.f32.mrb[0].mxu0
    %v3226 = vadd.f32 0.0, %v3225
    %v3227 = vpop.f32.mrb[0].mxu0
    %3228 = vmatprep.mubr.bf16.mxu0 0
    %3229 = vmatmul.mubr.bf16.gmra.mrb[0].mxu0 %v3138
    %v3230 = vpop.f32.mrb[0].mxu0
    %v3231 = vadd.f32 0.0, %v3230
    %v3232 = vpop.f32.mrb[0].mxu0
    %v3233 = vpop.f32.mrb[0].mxu0
    %v3234 = vadd.f32 0.0, %v3233
    %v3235 = vpop.f32.mrb[0].mxu0
    %3236 = vdwg.mxu0
    %v3237 = vadd.f32 %v2921, %v3175
    %v3238 = vadd.f32 %v2922, %v3178
    %v3239 = vadd.f32 %v2923, %v3183
    %v3240 = vadd.f32 %v2924, %v3186
    %v3241 = vadd.f32 %v2925, %v3191
    %v3242 = vadd.f32 %v2926, %v3194
    %v3243 = vadd.f32 %v2927, %v3199
    %v3244 = vadd.f32 %v2928, %v3202
    %v3245 = vadd.f32 %v2929, %v3207
    %v3246 = vadd.f32 %v2930, %v3210
    %v3247 = vadd.f32 %v2931, %v3215
    %v3248 = vadd.f32 %v2932, %v3218
    %v3249 = vadd.f32 %v2933, %v3223
    %v3250 = vadd.f32 %v2934, %v3226
    %v3251 = vadd.f32 %v2935, %v3231
    %v3252 = vadd.f32 %v2936, %v3234
    %s3253 = scalar_lea.vmem %s3, 512
    %v3254 = vld [vmem:[%s3253] sm:$0xf]
    %v3255 = vld [vmem:[%s3253 + $0x4] sm:$0xf]
    %v3256 = vld [vmem:[%s3253 + $0x8] sm:$0xf]
    %v3257 = vld [vmem:[%s3253 + $0xc] sm:$0xf]
    %v3258 = vld [vmem:[%s3253 + $0x10] sm:$0xf]
    %v3259 = vld [vmem:[%s3253 + $0x14] sm:$0xf]
    %v3260 = vld [vmem:[%s3253 + $0x18] sm:$0xf]
    %v3261 = vld [vmem:[%s3253 + $0x1c] sm:$0xf]
    %v3262 = vld [vmem:[%s3253 + $0x20] sm:$0xf]
    %v3263 = vld [vmem:[%s3253 + $0x24] sm:$0xf]
    %v3264 = vld [vmem:[%s3253 + $0x28] sm:$0xf]
    %v3265 = vld [vmem:[%s3253 + $0x2c] sm:$0xf]
    %v3266 = vld [vmem:[%s3253 + $0x30] sm:$0xf]
    %v3267 = vld [vmem:[%s3253 + $0x34] sm:$0xf]
    %v3268 = vld [vmem:[%s3253 + $0x38] sm:$0xf]
    %v3269 = vld [vmem:[%s3253 + $0x3c] sm:$0xf]
    %v3286 = vunpack.c.l.b16 %v3254
    %v3287 = vunpack.c.l.b16 %v3255
    %v3288 = vunpack.c.l.b16 %v3256
    %v3289 = vunpack.c.l.b16 %v3257
    %v3290 = vunpack.c.l.b16 %v3258
    %v3291 = vunpack.c.l.b16 %v3259
    %v3292 = vunpack.c.l.b16 %v3260
    %v3293 = vunpack.c.l.b16 %v3261
    %v3294 = vunpack.c.l.b16 %v3262
    %v3295 = vunpack.c.l.b16 %v3263
    %v3296 = vunpack.c.l.b16 %v3264
    %v3297 = vunpack.c.l.b16 %v3265
    %v3298 = vunpack.c.l.b16 %v3266
    %v3299 = vunpack.c.l.b16 %v3267
    %v3300 = vunpack.c.l.b16 %v3268
    %v3301 = vunpack.c.l.b16 %v3269
    %v3302 = vpack.c.b16 %v3287, %v3286
    %v3303 = vpack.c.b16 %v3289, %v3288
    %v3304 = vpack.c.b16 %v3291, %v3290
    %v3305 = vpack.c.b16 %v3293, %v3292
    %v3306 = vpack.c.b16 %v3295, %v3294
    %v3307 = vpack.c.b16 %v3297, %v3296
    %v3308 = vpack.c.b16 %v3299, %v3298
    %v3309 = vpack.c.b16 %v3301, %v3300
    %3318 = vmatprep.subr.bf16.mxu0 0
    %3319 = vmatpush1.bf16.msra.mxu0 %v750
    %3320 = vmatprep.subr.bf16.mxu0 0
    %3321 = vmatpush1.bf16.msra.mxu0 %v751
    %3322 = vmatprep.subr.bf16.mxu0 0
    %3323 = vmatpush1.bf16.msra.mxu0 %v752
    %3324 = vmatprep.subr.bf16.mxu0 0
    %3325 = vmatpush1.bf16.msra.mxu0 %v753
    %3326 = vmatprep.subr.bf16.mxu0 0
    %3327 = vmatpush1.bf16.msra.mxu0 %v754
    %3328 = vmatprep.subr.bf16.mxu0 0
    %3329 = vmatpush1.bf16.msra.mxu0 %v755
    %3330 = vmatprep.subr.bf16.mxu0 0
    %3331 = vmatpush1.bf16.msra.mxu0 %v756
    %3332 = vmatprep.subr.bf16.mxu0 0
    %3333 = vmatpush1.bf16.msra.mxu0 %v757
    %3334 = vmatprep.subr.bf16.mxu0 0
    %3335 = vmatpush1.bf16.msra.mxu0 0
    %3336 = vmatprep.subr.bf16.mxu0 0
    %3337 = vmatpush1.bf16.msra.mxu0 0
    %3338 = vmatprep.subr.bf16.mxu0 0
    %3339 = vmatpush1.bf16.msra.mxu0 0
    %3340 = vmatprep.subr.bf16.mxu0 0
    %3341 = vmatpush1.bf16.msra.mxu0 0
    %3342 = vmatprep.subr.bf16.mxu0 0
    %3343 = vmatpush1.bf16.msra.mxu0 0
    %3344 = vmatprep.subr.bf16.mxu0 0
    %3345 = vmatpush1.bf16.msra.mxu0 0
    %3346 = vmatprep.subr.bf16.mxu0 0
    %3347 = vmatpush1.bf16.msra.mxu0 0
    %3348 = vmatprep.subr.bf16.mxu0 0
    %3349 = vmatpush1.bf16.msra.mxu0 0
    %3350 = vmatprep.mubr.bf16.mxu0 0
    %3351 = vmatmul.mubr.bf16.gmra.mrb[0].mxu0 %v3302
    %v3352 = vpop.f32.mrb[0].mxu0
    %v3353 = vadd.f32 0.0, %v3352
    %v3354 = vpop.f32.mrb[0].mxu0
    %v3355 = vpop.f32.mrb[0].mxu0
    %v3356 = vadd.f32 0.0, %v3355
    %v3357 = vpop.f32.mrb[0].mxu0
    %3358 = vmatprep.mubr.bf16.mxu0 0
    %3359 = vmatmul.mubr.bf16.gmra.mrb[0].mxu0 %v3303
    %v3360 = vpop.f32.mrb[0].mxu0
    %v3361 = vadd.f32 0.0, %v3360
    %v3362 = vpop.f32.mrb[0].mxu0
    %v3363 = vpop.f32.mrb[0].mxu0
    %v3364 = vadd.f32 0.0, %v3363
    %v3365 = vpop.f32.mrb[0].mxu0
    %3366 = vmatprep.mubr.bf16.mxu0 0
    %3367 = vmatmul.mubr.bf16.gmra.mrb[0].mxu0 %v3304
    %v3368 = vpop.f32.mrb[0].mxu0
    %v3369 = vadd.f32 0.0, %v3368
    %v3370 = vpop.f32.mrb[0].mxu0
    %v3371 = vpop.f32.mrb[0].mxu0
    %v3372 = vadd.f32 0.0, %v3371
    %v3373 = vpop.f32.mrb[0].mxu0
    %3374 = vmatprep.mubr.bf16.mxu0 0
    %3375 = vmatmul.mubr.bf16.gmra.mrb[0].mxu0 %v3305
    %v3376 = vpop.f32.mrb[0].mxu0
    %v3377 = vadd.f32 0.0, %v3376
    %v3378 = vpop.f32.mrb[0].mxu0
    %v3379 = vpop.f32.mrb[0].mxu0
    %v3380 = vadd.f32 0.0, %v3379
    %v3381 = vpop.f32.mrb[0].mxu0
    %3382 = vmatprep.mubr.bf16.mxu0 0
    %3383 = vmatmul.mubr.bf16.gmra.mrb[0].mxu0 %v3306
    %v3384 = vpop.f32.mrb[0].mxu0
    %v3385 = vadd.f32 0.0, %v3384
    %v3386 = vpop.f32.mrb[0].mxu0
    %v3387 = vpop.f32.mrb[0].mxu0
    %v3388 = vadd.f32 0.0, %v3387
    %v3389 = vpop.f32.mrb[0].mxu0
    %3390 = vmatprep.mubr.bf16.mxu0 0
    %3391 = vmatmul.mubr.bf16.gmra.mrb[0].mxu0 %v3307
    %v3392 = vpop.f32.mrb[0].mxu0
    %v3393 = vadd.f32 0.0, %v3392
    %v3394 = vpop.f32.mrb[0].mxu0
    %v3395 = vpop.f32.mrb[0].mxu0
    %v3396 = vadd.f32 0.0, %v3395
    %v3397 = vpop.f32.mrb[0].mxu0
    %3398 = vmatprep.mubr.bf16.mxu0 0
    %3399 = vmatmul.mubr.bf16.gmra.mrb[0].mxu0 %v3308
    %v3400 = vpop.f32.mrb[0].mxu0
    %v3401 = vadd.f32 0.0, %v3400
    %v3402 = vpop.f32.mrb[0].mxu0
    %v3403 = vpop.f32.mrb[0].mxu0
    %v3404 = vadd.f32 0.0, %v3403
    %v3405 = vpop.f32.mrb[0].mxu0
    %3406 = vmatprep.mubr.bf16.mxu0 0
    %3407 = vmatmul.mubr.bf16.gmra.mrb[0].mxu0 %v3309
    %v3408 = vpop.f32.mrb[0].mxu0
    %v3409 = vadd.f32 0.0, %v3408
    %v3410 = vpop.f32.mrb[0].mxu0
    %v3411 = vpop.f32.mrb[0].mxu0
    %v3412 = vadd.f32 0.0, %v3411
    %v3413 = vpop.f32.mrb[0].mxu0
    %3414 = vdwg.mxu0
    %v3415 = vpack.c.bf16 %v3356, %v3353
    %v3416 = vpack.c.bf16 %v3364, %v3361
    %v3417 = vpack.c.bf16 %v3372, %v3369
    %v3418 = vpack.c.bf16 %v3380, %v3377
    %v3419 = vpack.c.bf16 %v3388, %v3385
    %v3420 = vpack.c.bf16 %v3396, %v3393
    %v3421 = vpack.c.bf16 %v3404, %v3401
    %v3422 = vpack.c.bf16 %v3412, %v3409
    %s3423 = scalar_lea.vmem %s4, 64
    %v3424 = vld [vmem:[%s3423] sm:$0xf]
    %v3425 = vld [vmem:[%s3423 + $0x4] sm:$0xf]
    %v3428 = vunpack.c.l.b16 %v3424
    %v3429 = vunpack.c.l.b16 %v3425
    %v3430 = vpack.c.b16 %v3429, %v3428
    %v3433 = vsel %vm1108, %v3415, 0
    %v3436 = vsel %vm1108, %v3416, 0
    %v3439 = vsel %vm1108, %v3417, 0
    %v3442 = vsel %vm1108, %v3418, 0
    %v3445 = vsel %vm1108, %v3419, 0
    %v3448 = vsel %vm1108, %v3420, 0
    %v3451 = vsel %vm1108, %v3421, 0
    %v3454 = vsel %vm1108, %v3422, 0
    %3456 = vmatprep.subr.bf16.mxu0 0
    %3457 = vmatpush1.bf16.msra.mxu0 %v3430
    %3458 = vmatprep.subr.bf16.mxu0 0
    %3459 = vmatpush1.bf16.msra.mxu0 0
    %3460 = vmatprep.subr.bf16.mxu0 0
    %3461 = vmatpush1.bf16.msra.mxu0 0
    %3462 = vmatprep.subr.bf16.mxu0 0
    %3463 = vmatpush1.bf16.msra.mxu0 0
    %3464 = vmatprep.subr.bf16.mxu0 0
    %3465 = vmatpush1.bf16.msra.mxu0 0
    %3466 = vmatprep.subr.bf16.mxu0 0
    %3467 = vmatpush1.bf16.msra.mxu0 0
    %3468 = vmatprep.subr.bf16.mxu0 0
    %3469 = vmatpush1.bf16.msra.mxu0 0
    %3470 = vmatprep.subr.bf16.mxu0 0
    %3471 = vmatpush1.bf16.msra.mxu0 0
    %3472 = vmatprep.subr.bf16.mxu0 0
    %3473 = vmatpush1.bf16.msra.mxu0 0
    %3474 = vmatprep.subr.bf16.mxu0 0
    %3475 = vmatpush1.bf16.msra.mxu0 0
    %3476 = vmatprep.subr.bf16.mxu0 0
    %3477 = vmatpush1.bf16.msra.mxu0 0
    %3478 = vmatprep.subr.bf16.mxu0 0
    %3479 = vmatpush1.bf16.msra.mxu0 0
    %3480 = vmatprep.subr.bf16.mxu0 0
    %3481 = vmatpush1.bf16.msra.mxu0 0
    %3482 = vmatprep.subr.bf16.mxu0 0
    %3483 = vmatpush1.bf16.msra.mxu0 0
    %3484 = vmatprep.subr.bf16.mxu0 0
    %3485 = vmatpush1.bf16.msra.mxu0 0
    %3486 = vmatprep.subr.bf16.mxu0 0
    %3487 = vmatpush1.bf16.msra.mxu0 0
    %3488 = vmatprep.mubr.bf16.mxu0 0
    %3489 = vmatmul.mubr.bf16.gmra.mrb[0].mxu0 %v3433
    %v3490 = vpop.f32.mrb[0].mxu0
    %v3491 = vadd.f32 0.0, %v3490
    %v3492 = vpop.f32.mrb[0].mxu0
    %v3493 = vpop.f32.mrb[0].mxu0
    %v3494 = vadd.f32 0.0, %v3493
    %v3495 = vpop.f32.mrb[0].mxu0
    %3496 = vmatprep.mubr.bf16.mxu0 0
    %3497 = vmatmul.mubr.bf16.gmra.mrb[0].mxu0 %v3436
    %v3498 = vpop.f32.mrb[0].mxu0
    %v3499 = vadd.f32 0.0, %v3498
    %v3500 = vpop.f32.mrb[0].mxu0
    %v3501 = vpop.f32.mrb[0].mxu0
    %v3502 = vadd.f32 0.0, %v3501
    %v3503 = vpop.f32.mrb[0].mxu0
    %3504 = vmatprep.mubr.bf16.mxu0 0
    %3505 = vmatmul.mubr.bf16.gmra.mrb[0].mxu0 %v3439
    %v3506 = vpop.f32.mrb[0].mxu0
    %v3507 = vadd.f32 0.0, %v3506
    %v3508 = vpop.f32.mrb[0].mxu0
    %v3509 = vpop.f32.mrb[0].mxu0
    %v3510 = vadd.f32 0.0, %v3509
    %v3511 = vpop.f32.mrb[0].mxu0
    %3512 = vmatprep.mubr.bf16.mxu0 0
    %3513 = vmatmul.mubr.bf16.gmra.mrb[0].mxu0 %v3442
    %v3514 = vpop.f32.mrb[0].mxu0
    %v3515 = vadd.f32 0.0, %v3514
    %v3516 = vpop.f32.mrb[0].mxu0
    %v3517 = vpop.f32.mrb[0].mxu0
    %v3518 = vadd.f32 0.0, %v3517
    %v3519 = vpop.f32.mrb[0].mxu0
    %3520 = vmatprep.mubr.bf16.mxu0 0
    %3521 = vmatmul.mubr.bf16.gmra.mrb[0].mxu0 %v3445
    %v3522 = vpop.f32.mrb[0].mxu0
    %v3523 = vadd.f32 0.0, %v3522
    %v3524 = vpop.f32.mrb[0].mxu0
    %v3525 = vpop.f32.mrb[0].mxu0
    %v3526 = vadd.f32 0.0, %v3525
    %v3527 = vpop.f32.mrb[0].mxu0
    %3528 = vmatprep.mubr.bf16.mxu0 0
    %3529 = vmatmul.mubr.bf16.gmra.mrb[0].mxu0 %v3448
    %v3530 = vpop.f32.mrb[0].mxu0
    %v3531 = vadd.f32 0.0, %v3530
    %v3532 = vpop.f32.mrb[0].mxu0
    %v3533 = vpop.f32.mrb[0].mxu0
    %v3534 = vadd.f32 0.0, %v3533
    %v3535 = vpop.f32.mrb[0].mxu0
    %3536 = vmatprep.mubr.bf16.mxu0 0
    %3537 = vmatmul.mubr.bf16.gmra.mrb[0].mxu0 %v3451
    %v3538 = vpop.f32.mrb[0].mxu0
    %v3539 = vadd.f32 0.0, %v3538
    %v3540 = vpop.f32.mrb[0].mxu0
    %v3541 = vpop.f32.mrb[0].mxu0
    %v3542 = vadd.f32 0.0, %v3541
    %v3543 = vpop.f32.mrb[0].mxu0
    %3544 = vmatprep.mubr.bf16.mxu0 0
    %3545 = vmatmul.mubr.bf16.gmra.mrb[0].mxu0 %v3454
    %v3546 = vpop.f32.mrb[0].mxu0
    %v3547 = vadd.f32 0.0, %v3546
    %v3548 = vpop.f32.mrb[0].mxu0
    %v3549 = vpop.f32.mrb[0].mxu0
    %v3550 = vadd.f32 0.0, %v3549
    %v3551 = vpop.f32.mrb[0].mxu0
    %3552 = vdwg.mxu0
    %v3553 = vadd.f32 %v3237, %v3491
    %v3554 = vadd.f32 %v3238, %v3494
    %v3555 = vadd.f32 %v3239, %v3499
    %v3556 = vadd.f32 %v3240, %v3502
    %v3557 = vadd.f32 %v3241, %v3507
    %v3558 = vadd.f32 %v3242, %v3510
    %v3559 = vadd.f32 %v3243, %v3515
    %v3560 = vadd.f32 %v3244, %v3518
    %v3561 = vadd.f32 %v3245, %v3523
    %v3562 = vadd.f32 %v3246, %v3526
    %v3563 = vadd.f32 %v3247, %v3531
    %v3564 = vadd.f32 %v3248, %v3534
    %v3565 = vadd.f32 %v3249, %v3539
    %v3566 = vadd.f32 %v3250, %v3542
    %v3567 = vadd.f32 %v3251, %v3547
    %v3568 = vadd.f32 %v3252, %v3550
    %v3569 = vmax.f32 %v3553, %v3557
    %v3570 = vmax.f32 %v3554, %v3558
    %v3571 = vmax.f32 %v3555, %v3559
    %v3572 = vmax.f32 %v3556, %v3560
    %v3573 = vmax.f32 %v3561, %v3565
    %v3574 = vmax.f32 %v3562, %v3566
    %v3575 = vmax.f32 %v3563, %v3567
    %v3576 = vmax.f32 %v3564, %v3568
    %v3577 = vmax.f32 %v3569, %v3573
    %v3578 = vmax.f32 %v3570, %v3574
    %v3579 = vmax.f32 %v3571, %v3575
    %v3580 = vmax.f32 %v3572, %v3576
    %v3581 = vld [vmem:[%s5] sm:$0x1]
    %v3583 = vlaneseq
    %v3584 = vshrl.u32 %v3583, 7
    %v3585 = vsub.s32 0, %v3584
    %v3586 = vrot.slane %v3581, %v3585
    %v3588 = vadd.f32 %v3577, %v3586
    %v3589 = vadd.f32 %v3578, %v3586
    %v3590 = vadd.f32 %v3579, %v3586
    %v3591 = vadd.f32 %v3580, %v3586
    %v3592 = vmax.f32 %v3588, 0.0
    %v3593 = vmax.f32 %v3589, 0.0
    %v3594 = vmax.f32 %v3590, 0.0
    %v3595 = vmax.f32 %v3591, 0.0
    %v3596 = vpack.c.bf16 %v3593, %v3592
    %v3597 = vpack.c.bf16 %v3595, %v3594
    %v3598 = vld [vmem:[%s6] sm:$0xf]
    %v3599 = vld [vmem:[%s6 + $0x4] sm:$0xf]
    %v3600 = vld [vmem:[%s6 + $0x8] sm:$0xf]
    %v3601 = vld [vmem:[%s6 + $0xc] sm:$0xf]
    %v3602 = vld [vmem:[%s6 + $0x10] sm:$0xf]
    %v3603 = vld [vmem:[%s6 + $0x14] sm:$0xf]
    %v3604 = vld [vmem:[%s6 + $0x18] sm:$0xf]
    %v3605 = vld [vmem:[%s6 + $0x1c] sm:$0xf]
    %v3607 = vrot.slane %v3596, 1
    %v3612 = vunpack.c.l.b16 %v3602
    %v3613 = vunpack.c.l.b16 %v3603
    %v3614 = vunpack.c.l.b16 %v3604
    %v3615 = vunpack.c.l.b16 %v3605
    %v3616 = vpack.c.b16 %v3613, %v3612
    %v3617 = vpack.c.b16 %v3615, %v3614
    %v3621 = vsel %vm277, %v3607, 0
    %3623 = vmatprep.subr.bf16.mxu0 0
    %3624 = vmatpush1.bf16.msra.mxu0 %v3616
    %3625 = vmatprep.subr.bf16.mxu0 0
    %3626 = vmatpush1.bf16.msra.mxu0 %v3617
    %3627 = vmatprep.subr.bf16.mxu0 0
    %3628 = vmatpush1.bf16.msra.mxu0 0
    %3629 = vmatprep.subr.bf16.mxu0 0
    %3630 = vmatpush1.bf16.msra.mxu0 0
    %3631 = vmatprep.subr.bf16.mxu0 0
    %3632 = vmatpush1.bf16.msra.mxu0 0
    %3633 = vmatprep.subr.bf16.mxu0 0
    %3634 = vmatpush1.bf16.msra.mxu0 0
    %3635 = vmatprep.subr.bf16.mxu0 0
    %3636 = vmatpush1.bf16.msra.mxu0 0
    %3637 = vmatprep.subr.bf16.mxu0 0
    %3638 = vmatpush1.bf16.msra.mxu0 0
    %3639 = vmatprep.subr.bf16.mxu0 0
    %3640 = vmatpush1.bf16.msra.mxu0 0
    %3641 = vmatprep.subr.bf16.mxu0 0
    %3642 = vmatpush1.bf16.msra.mxu0 0
    %3643 = vmatprep.subr.bf16.mxu0 0
    %3644 = vmatpush1.bf16.msra.mxu0 0
    %3645 = vmatprep.subr.bf16.mxu0 0
    %3646 = vmatpush1.bf16.msra.mxu0 0
    %3647 = vmatprep.subr.bf16.mxu0 0
    %3648 = vmatpush1.bf16.msra.mxu0 0
    %3649 = vmatprep.subr.bf16.mxu0 0
    %3650 = vmatpush1.bf16.msra.mxu0 0
    %3651 = vmatprep.subr.bf16.mxu0 0
    %3652 = vmatpush1.bf16.msra.mxu0 0
    %3653 = vmatprep.subr.bf16.mxu0 0
    %3654 = vmatpush1.bf16.msra.mxu0 0
    %3655 = vmatprep.mubr.bf16.mxu0 0
    %3656 = vmatmul.mubr.bf16.gmra.mrb[0].mxu0 %v3621
    %v3657 = vpop.f32.mrb[0].mxu0
    %v3658 = vadd.f32 0.0, %v3657
    %v3659 = vpop.f32.mrb[0].mxu0
    %v3660 = vpop.f32.mrb[0].mxu0
    %v3661 = vpop.f32.mrb[0].mxu0
    %3662 = vdwg.mxu0
    %v3667 = vunpack.c.l.b16 %v3598
    %v3668 = vunpack.c.l.b16 %v3599
    %v3669 = vunpack.c.l.b16 %v3600
    %v3670 = vunpack.c.l.b16 %v3601
    %v3671 = vpack.c.b16 %v3668, %v3667
    %v3672 = vpack.c.b16 %v3670, %v3669
    %v3676 = vsel %vm277, %v3596, 0
    %3678 = vmatprep.subr.bf16.mxu0 0
    %3679 = vmatpush1.bf16.msra.mxu0 %v3671
    %3680 = vmatprep.subr.bf16.mxu0 0
    %3681 = vmatpush1.bf16.msra.mxu0 %v3672
    %3682 = vmatprep.subr.bf16.mxu0 0
    %3683 = vmatpush1.bf16.msra.mxu0 0
    %3684 = vmatprep.subr.bf16.mxu0 0
    %3685 = vmatpush1.bf16.msra.mxu0 0
    %3686 = vmatprep.subr.bf16.mxu0 0
    %3687 = vmatpush1.bf16.msra.mxu0 0
    %3688 = vmatprep.subr.bf16.mxu0 0
    %3689 = vmatpush1.bf16.msra.mxu0 0
    %3690 = vmatprep.subr.bf16.mxu0 0
    %3691 = vmatpush1.bf16.msra.mxu0 0
    %3692 = vmatprep.subr.bf16.mxu0 0
    %3693 = vmatpush1.bf16.msra.mxu0 0
    %3694 = vmatprep.subr.bf16.mxu0 0
    %3695 = vmatpush1.bf16.msra.mxu0 0
    %3696 = vmatprep.subr.bf16.mxu0 0
    %3697 = vmatpush1.bf16.msra.mxu0 0
    %3698 = vmatprep.subr.bf16.mxu0 0
    %3699 = vmatpush1.bf16.msra.mxu0 0
    %3700 = vmatprep.subr.bf16.mxu0 0
    %3701 = vmatpush1.bf16.msra.mxu0 0
    %3702 = vmatprep.subr.bf16.mxu0 0
    %3703 = vmatpush1.bf16.msra.mxu0 0
    %3704 = vmatprep.subr.bf16.mxu0 0
    %3705 = vmatpush1.bf16.msra.mxu0 0
    %3706 = vmatprep.subr.bf16.mxu0 0
    %3707 = vmatpush1.bf16.msra.mxu0 0
    %3708 = vmatprep.subr.bf16.mxu0 0
    %3709 = vmatpush1.bf16.msra.mxu0 0
    %3710 = vmatprep.mubr.bf16.mxu0 0
    %3711 = vmatmul.mubr.bf16.gmra.mrb[0].mxu0 %v3676
    %v3712 = vpop.f32.mrb[0].mxu0
    %v3713 = vadd.f32 %v3658, %v3712
    %v3714 = vpop.f32.mrb[0].mxu0
    %v3715 = vpop.f32.mrb[0].mxu0
    %v3716 = vpop.f32.mrb[0].mxu0
    %3717 = vdwg.mxu0
    %v3718 = vld [vmem:[%s6 + $0x20] sm:$0xf]
    %v3719 = vld [vmem:[%s6 + $0x24] sm:$0xf]
    %v3720 = vld [vmem:[%s6 + $0x28] sm:$0xf]
    %v3721 = vld [vmem:[%s6 + $0x2c] sm:$0xf]
    %v3722 = vrot.slane %v3596, 2
    %v3727 = vunpack.c.l.b16 %v3718
    %v3728 = vunpack.c.l.b16 %v3719
    %v3729 = vunpack.c.l.b16 %v3720
    %v3730 = vunpack.c.l.b16 %v3721
    %v3731 = vpack.c.b16 %v3728, %v3727
    %v3732 = vpack.c.b16 %v3730, %v3729
    %v3736 = vsel %vm277, %v3722, 0
    %3738 = vmatprep.subr.bf16.mxu0 0
    %3739 = vmatpush1.bf16.msra.mxu0 %v3731
    %3740 = vmatprep.subr.bf16.mxu0 0
    %3741 = vmatpush1.bf16.msra.mxu0 %v3732
    %3742 = vmatprep.subr.bf16.mxu0 0
    %3743 = vmatpush1.bf16.msra.mxu0 0
    %3744 = vmatprep.subr.bf16.mxu0 0
    %3745 = vmatpush1.bf16.msra.mxu0 0
    %3746 = vmatprep.subr.bf16.mxu0 0
    %3747 = vmatpush1.bf16.msra.mxu0 0
    %3748 = vmatprep.subr.bf16.mxu0 0
    %3749 = vmatpush1.bf16.msra.mxu0 0
    %3750 = vmatprep.subr.bf16.mxu0 0
    %3751 = vmatpush1.bf16.msra.mxu0 0
    %3752 = vmatprep.subr.bf16.mxu0 0
    %3753 = vmatpush1.bf16.msra.mxu0 0
    %3754 = vmatprep.subr.bf16.mxu0 0
    %3755 = vmatpush1.bf16.msra.mxu0 0
    %3756 = vmatprep.subr.bf16.mxu0 0
    %3757 = vmatpush1.bf16.msra.mxu0 0
    %3758 = vmatprep.subr.bf16.mxu0 0
    %3759 = vmatpush1.bf16.msra.mxu0 0
    %3760 = vmatprep.subr.bf16.mxu0 0
    %3761 = vmatpush1.bf16.msra.mxu0 0
    %3762 = vmatprep.subr.bf16.mxu0 0
    %3763 = vmatpush1.bf16.msra.mxu0 0
    %3764 = vmatprep.subr.bf16.mxu0 0
    %3765 = vmatpush1.bf16.msra.mxu0 0
    %3766 = vmatprep.subr.bf16.mxu0 0
    %3767 = vmatpush1.bf16.msra.mxu0 0
    %3768 = vmatprep.subr.bf16.mxu0 0
    %3769 = vmatpush1.bf16.msra.mxu0 0
    %3770 = vmatprep.mubr.bf16.mxu0 0
    %3771 = vmatmul.mubr.bf16.gmra.mrb[0].mxu0 %v3736
    %v3772 = vpop.f32.mrb[0].mxu0
    %v3773 = vadd.f32 0.0, %v3772
    %v3774 = vpop.f32.mrb[0].mxu0
    %v3775 = vpop.f32.mrb[0].mxu0
    %v3776 = vpop.f32.mrb[0].mxu0
    %3777 = vdwg.mxu0
    %v3778 = vadd.f32 %v3713, %v3773
    %v3779 = vld [vmem:[%s6 + $0x30] sm:$0xf]
    %v3780 = vld [vmem:[%s6 + $0x34] sm:$0xf]
    %v3781 = vld [vmem:[%s6 + $0x38] sm:$0xf]
    %v3782 = vld [vmem:[%s6 + $0x3c] sm:$0xf]
    %v3783 = vrot.slane %v3596, 3
    %v3788 = vunpack.c.l.b16 %v3779
    %v3789 = vunpack.c.l.b16 %v3780
    %v3790 = vunpack.c.l.b16 %v3781
    %v3791 = vunpack.c.l.b16 %v3782
    %v3792 = vpack.c.b16 %v3789, %v3788
    %v3793 = vpack.c.b16 %v3791, %v3790
    %v3797 = vsel %vm277, %v3783, 0
    %3799 = vmatprep.subr.bf16.mxu0 0
    %3800 = vmatpush1.bf16.msra.mxu0 %v3792
    %3801 = vmatprep.subr.bf16.mxu0 0
    %3802 = vmatpush1.bf16.msra.mxu0 %v3793
    %3803 = vmatprep.subr.bf16.mxu0 0
    %3804 = vmatpush1.bf16.msra.mxu0 0
    %3805 = vmatprep.subr.bf16.mxu0 0
    %3806 = vmatpush1.bf16.msra.mxu0 0
    %3807 = vmatprep.subr.bf16.mxu0 0
    %3808 = vmatpush1.bf16.msra.mxu0 0
    %3809 = vmatprep.subr.bf16.mxu0 0
    %3810 = vmatpush1.bf16.msra.mxu0 0
    %3811 = vmatprep.subr.bf16.mxu0 0
    %3812 = vmatpush1.bf16.msra.mxu0 0
    %3813 = vmatprep.subr.bf16.mxu0 0
    %3814 = vmatpush1.bf16.msra.mxu0 0
    %3815 = vmatprep.subr.bf16.mxu0 0
    %3816 = vmatpush1.bf16.msra.mxu0 0
    %3817 = vmatprep.subr.bf16.mxu0 0
    %3818 = vmatpush1.bf16.msra.mxu0 0
    %3819 = vmatprep.subr.bf16.mxu0 0
    %3820 = vmatpush1.bf16.msra.mxu0 0
    %3821 = vmatprep.subr.bf16.mxu0 0
    %3822 = vmatpush1.bf16.msra.mxu0 0
    %3823 = vmatprep.subr.bf16.mxu0 0
    %3824 = vmatpush1.bf16.msra.mxu0 0
    %3825 = vmatprep.subr.bf16.mxu0 0
    %3826 = vmatpush1.bf16.msra.mxu0 0
    %3827 = vmatprep.subr.bf16.mxu0 0
    %3828 = vmatpush1.bf16.msra.mxu0 0
    %3829 = vmatprep.subr.bf16.mxu0 0
    %3830 = vmatpush1.bf16.msra.mxu0 0
    %3831 = vmatprep.mubr.bf16.mxu0 0
    %3832 = vmatmul.mubr.bf16.gmra.mrb[0].mxu0 %v3797
    %v3833 = vpop.f32.mrb[0].mxu0
    %v3834 = vadd.f32 0.0, %v3833
    %v3835 = vpop.f32.mrb[0].mxu0
    %v3836 = vpop.f32.mrb[0].mxu0
    %v3837 = vpop.f32.mrb[0].mxu0
    %3838 = vdwg.mxu0
    %v3839 = vadd.f32 %v3778, %v3834
    %v3840 = vld [vmem:[%s6 + $0x40] sm:$0xf]
    %v3841 = vld [vmem:[%s6 + $0x44] sm:$0xf]
    %v3842 = vld [vmem:[%s6 + $0x48] sm:$0xf]
    %v3843 = vld [vmem:[%s6 + $0x4c] sm:$0xf]
    %v3844 = vrot.slane %v3596, 4
    %v3849 = vunpack.c.l.b16 %v3840
    %v3850 = vunpack.c.l.b16 %v3841
    %v3851 = vunpack.c.l.b16 %v3842
    %v3852 = vunpack.c.l.b16 %v3843
    %v3853 = vpack.c.b16 %v3850, %v3849
    %v3854 = vpack.c.b16 %v3852, %v3851
    %v3858 = vsel %vm277, %v3844, 0
    %3860 = vmatprep.subr.bf16.mxu0 0
    %3861 = vmatpush1.bf16.msra.mxu0 %v3853
    %3862 = vmatprep.subr.bf16.mxu0 0
    %3863 = vmatpush1.bf16.msra.mxu0 %v3854
    %3864 = vmatprep.subr.bf16.mxu0 0
    %3865 = vmatpush1.bf16.msra.mxu0 0
    %3866 = vmatprep.subr.bf16.mxu0 0
    %3867 = vmatpush1.bf16.msra.mxu0 0
    %3868 = vmatprep.subr.bf16.mxu0 0
    %3869 = vmatpush1.bf16.msra.mxu0 0
    %3870 = vmatprep.subr.bf16.mxu0 0
    %3871 = vmatpush1.bf16.msra.mxu0 0
    %3872 = vmatprep.subr.bf16.mxu0 0
    %3873 = vmatpush1.bf16.msra.mxu0 0
    %3874 = vmatprep.subr.bf16.mxu0 0
    %3875 = vmatpush1.bf16.msra.mxu0 0
    %3876 = vmatprep.subr.bf16.mxu0 0
    %3877 = vmatpush1.bf16.msra.mxu0 0
    %3878 = vmatprep.subr.bf16.mxu0 0
    %3879 = vmatpush1.bf16.msra.mxu0 0
    %3880 = vmatprep.subr.bf16.mxu0 0
    %3881 = vmatpush1.bf16.msra.mxu0 0
    %3882 = vmatprep.subr.bf16.mxu0 0
    %3883 = vmatpush1.bf16.msra.mxu0 0
    %3884 = vmatprep.subr.bf16.mxu0 0
    %3885 = vmatpush1.bf16.msra.mxu0 0
    %3886 = vmatprep.subr.bf16.mxu0 0
    %3887 = vmatpush1.bf16.msra.mxu0 0
    %3888 = vmatprep.subr.bf16.mxu0 0
    %3889 = vmatpush1.bf16.msra.mxu0 0
    %3890 = vmatprep.subr.bf16.mxu0 0
    %3891 = vmatpush1.bf16.msra.mxu0 0
    %3892 = vmatprep.mubr.bf16.mxu0 0
    %3893 = vmatmul.mubr.bf16.gmra.mrb[0].mxu0 %v3858
    %v3894 = vpop.f32.mrb[0].mxu0
    %v3895 = vadd.f32 0.0, %v3894
    %v3896 = vpop.f32.mrb[0].mxu0
    %v3897 = vpop.f32.mrb[0].mxu0
    %v3898 = vpop.f32.mrb[0].mxu0
    %3899 = vdwg.mxu0
    %v3900 = vadd.f32 %v3839, %v3895
    %v3901 = vld [vmem:[%s6 + $0x50] sm:$0xf]
    %v3902 = vld [vmem:[%s6 + $0x54] sm:$0xf]
    %v3903 = vld [vmem:[%s6 + $0x58] sm:$0xf]
    %v3904 = vld [vmem:[%s6 + $0x5c] sm:$0xf]
    %v3905 = vrot.slane %v3596, 5
    %v3910 = vunpack.c.l.b16 %v3901
    %v3911 = vunpack.c.l.b16 %v3902
    %v3912 = vunpack.c.l.b16 %v3903
    %v3913 = vunpack.c.l.b16 %v3904
    %v3914 = vpack.c.b16 %v3911, %v3910
    %v3915 = vpack.c.b16 %v3913, %v3912
    %v3919 = vsel %vm277, %v3905, 0
    %3921 = vmatprep.subr.bf16.mxu0 0
    %3922 = vmatpush1.bf16.msra.mxu0 %v3914
    %3923 = vmatprep.subr.bf16.mxu0 0
    %3924 = vmatpush1.bf16.msra.mxu0 %v3915
    %3925 = vmatprep.subr.bf16.mxu0 0
    %3926 = vmatpush1.bf16.msra.mxu0 0
    %3927 = vmatprep.subr.bf16.mxu0 0
    %3928 = vmatpush1.bf16.msra.mxu0 0
    %3929 = vmatprep.subr.bf16.mxu0 0
    %3930 = vmatpush1.bf16.msra.mxu0 0
    %3931 = vmatprep.subr.bf16.mxu0 0
    %3932 = vmatpush1.bf16.msra.mxu0 0
    %3933 = vmatprep.subr.bf16.mxu0 0
    %3934 = vmatpush1.bf16.msra.mxu0 0
    %3935 = vmatprep.subr.bf16.mxu0 0
    %3936 = vmatpush1.bf16.msra.mxu0 0
    %3937 = vmatprep.subr.bf16.mxu0 0
    %3938 = vmatpush1.bf16.msra.mxu0 0
    %3939 = vmatprep.subr.bf16.mxu0 0
    %3940 = vmatpush1.bf16.msra.mxu0 0
    %3941 = vmatprep.subr.bf16.mxu0 0
    %3942 = vmatpush1.bf16.msra.mxu0 0
    %3943 = vmatprep.subr.bf16.mxu0 0
    %3944 = vmatpush1.bf16.msra.mxu0 0
    %3945 = vmatprep.subr.bf16.mxu0 0
    %3946 = vmatpush1.bf16.msra.mxu0 0
    %3947 = vmatprep.subr.bf16.mxu0 0
    %3948 = vmatpush1.bf16.msra.mxu0 0
    %3949 = vmatprep.subr.bf16.mxu0 0
    %3950 = vmatpush1.bf16.msra.mxu0 0
    %3951 = vmatprep.subr.bf16.mxu0 0
    %3952 = vmatpush1.bf16.msra.mxu0 0
    %3953 = vmatprep.mubr.bf16.mxu0 0
    %3954 = vmatmul.mubr.bf16.gmra.mrb[0].mxu0 %v3919
    %v3955 = vpop.f32.mrb[0].mxu0
    %v3956 = vadd.f32 0.0, %v3955
    %v3957 = vpop.f32.mrb[0].mxu0
    %v3958 = vpop.f32.mrb[0].mxu0
    %v3959 = vpop.f32.mrb[0].mxu0
    %3960 = vdwg.mxu0
    %v3961 = vadd.f32 %v3900, %v3956
    %v3962 = vld [vmem:[%s6 + $0x60] sm:$0xf]
    %v3963 = vld [vmem:[%s6 + $0x64] sm:$0xf]
    %v3964 = vld [vmem:[%s6 + $0x68] sm:$0xf]
    %v3965 = vld [vmem:[%s6 + $0x6c] sm:$0xf]
    %v3966 = vrot.slane %v3596, 6
    %v3971 = vunpack.c.l.b16 %v3962
    %v3972 = vunpack.c.l.b16 %v3963
    %v3973 = vunpack.c.l.b16 %v3964
    %v3974 = vunpack.c.l.b16 %v3965
    %v3975 = vpack.c.b16 %v3972, %v3971
    %v3976 = vpack.c.b16 %v3974, %v3973
    %v3980 = vsel %vm277, %v3966, 0
    %3982 = vmatprep.subr.bf16.mxu0 0
    %3983 = vmatpush1.bf16.msra.mxu0 %v3975
    %3984 = vmatprep.subr.bf16.mxu0 0
    %3985 = vmatpush1.bf16.msra.mxu0 %v3976
    %3986 = vmatprep.subr.bf16.mxu0 0
    %3987 = vmatpush1.bf16.msra.mxu0 0
    %3988 = vmatprep.subr.bf16.mxu0 0
    %3989 = vmatpush1.bf16.msra.mxu0 0
    %3990 = vmatprep.subr.bf16.mxu0 0
    %3991 = vmatpush1.bf16.msra.mxu0 0
    %3992 = vmatprep.subr.bf16.mxu0 0
    %3993 = vmatpush1.bf16.msra.mxu0 0
    %3994 = vmatprep.subr.bf16.mxu0 0
    %3995 = vmatpush1.bf16.msra.mxu0 0
    %3996 = vmatprep.subr.bf16.mxu0 0
    %3997 = vmatpush1.bf16.msra.mxu0 0
    %3998 = vmatprep.subr.bf16.mxu0 0
    %3999 = vmatpush1.bf16.msra.mxu0 0
    %4000 = vmatprep.subr.bf16.mxu0 0
    %4001 = vmatpush1.bf16.msra.mxu0 0
    %4002 = vmatprep.subr.bf16.mxu0 0
    %4003 = vmatpush1.bf16.msra.mxu0 0
    %4004 = vmatprep.subr.bf16.mxu0 0
    %4005 = vmatpush1.bf16.msra.mxu0 0
    %4006 = vmatprep.subr.bf16.mxu0 0
    %4007 = vmatpush1.bf16.msra.mxu0 0
    %4008 = vmatprep.subr.bf16.mxu0 0
    %4009 = vmatpush1.bf16.msra.mxu0 0
    %4010 = vmatprep.subr.bf16.mxu0 0
    %4011 = vmatpush1.bf16.msra.mxu0 0
    %4012 = vmatprep.subr.bf16.mxu0 0
    %4013 = vmatpush1.bf16.msra.mxu0 0
    %4014 = vmatprep.mubr.bf16.mxu0 0
    %4015 = vmatmul.mubr.bf16.gmra.mrb[0].mxu0 %v3980
    %v4016 = vpop.f32.mrb[0].mxu0
    %v4017 = vadd.f32 0.0, %v4016
    %v4018 = vpop.f32.mrb[0].mxu0
    %v4019 = vpop.f32.mrb[0].mxu0
    %v4020 = vpop.f32.mrb[0].mxu0
    %4021 = vdwg.mxu0
    %v4022 = vadd.f32 %v3961, %v4017
    %v4023 = vld [vmem:[%s6 + $0x70] sm:$0xf]
    %v4024 = vld [vmem:[%s6 + $0x74] sm:$0xf]
    %v4025 = vld [vmem:[%s6 + $0x78] sm:$0xf]
    %v4026 = vld [vmem:[%s6 + $0x7c] sm:$0xf]
    %v4027 = vrot.slane %v3596, 7
    %v4032 = vunpack.c.l.b16 %v4023
    %v4033 = vunpack.c.l.b16 %v4024
    %v4034 = vunpack.c.l.b16 %v4025
    %v4035 = vunpack.c.l.b16 %v4026
    %v4036 = vpack.c.b16 %v4033, %v4032
    %v4037 = vpack.c.b16 %v4035, %v4034
    %v4041 = vsel %vm277, %v4027, 0
    %4043 = vmatprep.subr.bf16.mxu0 0
    %4044 = vmatpush1.bf16.msra.mxu0 %v4036
    %4045 = vmatprep.subr.bf16.mxu0 0
    %4046 = vmatpush1.bf16.msra.mxu0 %v4037
    %4047 = vmatprep.subr.bf16.mxu0 0
    %4048 = vmatpush1.bf16.msra.mxu0 0
    %4049 = vmatprep.subr.bf16.mxu0 0
    %4050 = vmatpush1.bf16.msra.mxu0 0
    %4051 = vmatprep.subr.bf16.mxu0 0
    %4052 = vmatpush1.bf16.msra.mxu0 0
    %4053 = vmatprep.subr.bf16.mxu0 0
    %4054 = vmatpush1.bf16.msra.mxu0 0
    %4055 = vmatprep.subr.bf16.mxu0 0
    %4056 = vmatpush1.bf16.msra.mxu0 0
    %4057 = vmatprep.subr.bf16.mxu0 0
    %4058 = vmatpush1.bf16.msra.mxu0 0
    %4059 = vmatprep.subr.bf16.mxu0 0
    %4060 = vmatpush1.bf16.msra.mxu0 0
    %4061 = vmatprep.subr.bf16.mxu0 0
    %4062 = vmatpush1.bf16.msra.mxu0 0
    %4063 = vmatprep.subr.bf16.mxu0 0
    %4064 = vmatpush1.bf16.msra.mxu0 0
    %4065 = vmatprep.subr.bf16.mxu0 0
    %4066 = vmatpush1.bf16.msra.mxu0 0
    %4067 = vmatprep.subr.bf16.mxu0 0
    %4068 = vmatpush1.bf16.msra.mxu0 0
    %4069 = vmatprep.subr.bf16.mxu0 0
    %4070 = vmatpush1.bf16.msra.mxu0 0
    %4071 = vmatprep.subr.bf16.mxu0 0
    %4072 = vmatpush1.bf16.msra.mxu0 0
    %4073 = vmatprep.subr.bf16.mxu0 0
    %4074 = vmatpush1.bf16.msra.mxu0 0
    %4075 = vmatprep.mubr.bf16.mxu0 0
    %4076 = vmatmul.mubr.bf16.gmra.mrb[0].mxu0 %v4041
    %v4077 = vpop.f32.mrb[0].mxu0
    %v4078 = vadd.f32 0.0, %v4077
    %v4079 = vpop.f32.mrb[0].mxu0
    %v4080 = vpop.f32.mrb[0].mxu0
    %v4081 = vpop.f32.mrb[0].mxu0
    %4082 = vdwg.mxu0
    %v4083 = vadd.f32 %v4022, %v4078
    %v4084 = vld [vmem:[%s6 + $0x80] sm:$0xf]
    %v4085 = vld [vmem:[%s6 + $0x84] sm:$0xf]
    %v4086 = vld [vmem:[%s6 + $0x88] sm:$0xf]
    %v4087 = vld [vmem:[%s6 + $0x8c] sm:$0xf]
    %v4092 = vunpack.c.l.b16 %v4084
    %v4093 = vunpack.c.l.b16 %v4085
    %v4094 = vunpack.c.l.b16 %v4086
    %v4095 = vunpack.c.l.b16 %v4087
    %v4096 = vpack.c.b16 %v4093, %v4092
    %v4097 = vpack.c.b16 %v4095, %v4094
    %v4101 = vsel %vm277, %v3597, 0
    %4103 = vmatprep.subr.bf16.mxu0 0
    %4104 = vmatpush1.bf16.msra.mxu0 %v4096
    %4105 = vmatprep.subr.bf16.mxu0 0
    %4106 = vmatpush1.bf16.msra.mxu0 %v4097
    %4107 = vmatprep.subr.bf16.mxu0 0
    %4108 = vmatpush1.bf16.msra.mxu0 0
    %4109 = vmatprep.subr.bf16.mxu0 0
    %4110 = vmatpush1.bf16.msra.mxu0 0
    %4111 = vmatprep.subr.bf16.mxu0 0
    %4112 = vmatpush1.bf16.msra.mxu0 0
    %4113 = vmatprep.subr.bf16.mxu0 0
    %4114 = vmatpush1.bf16.msra.mxu0 0
    %4115 = vmatprep.subr.bf16.mxu0 0
    %4116 = vmatpush1.bf16.msra.mxu0 0
    %4117 = vmatprep.subr.bf16.mxu0 0
    %4118 = vmatpush1.bf16.msra.mxu0 0
    %4119 = vmatprep.subr.bf16.mxu0 0
    %4120 = vmatpush1.bf16.msra.mxu0 0
    %4121 = vmatprep.subr.bf16.mxu0 0
    %4122 = vmatpush1.bf16.msra.mxu0 0
    %4123 = vmatprep.subr.bf16.mxu0 0
    %4124 = vmatpush1.bf16.msra.mxu0 0
    %4125 = vmatprep.subr.bf16.mxu0 0
    %4126 = vmatpush1.bf16.msra.mxu0 0
    %4127 = vmatprep.subr.bf16.mxu0 0
    %4128 = vmatpush1.bf16.msra.mxu0 0
    %4129 = vmatprep.subr.bf16.mxu0 0
    %4130 = vmatpush1.bf16.msra.mxu0 0
    %4131 = vmatprep.subr.bf16.mxu0 0
    %4132 = vmatpush1.bf16.msra.mxu0 0
    %4133 = vmatprep.subr.bf16.mxu0 0
    %4134 = vmatpush1.bf16.msra.mxu0 0
    %4135 = vmatprep.mubr.bf16.mxu0 0
    %4136 = vmatmul.mubr.bf16.gmra.mrb[0].mxu0 %v4101
    %v4137 = vpop.f32.mrb[0].mxu0
    %v4138 = vadd.f32 0.0, %v4137
    %v4139 = vpop.f32.mrb[0].mxu0
    %v4140 = vpop.f32.mrb[0].mxu0
    %v4141 = vpop.f32.mrb[0].mxu0
    %4142 = vdwg.mxu0
    %v4143 = vadd.f32 %v4083, %v4138
    %v4144 = vld [vmem:[%s6 + $0x90] sm:$0xf]
    %v4145 = vld [vmem:[%s6 + $0x94] sm:$0xf]
    %v4146 = vld [vmem:[%s6 + $0x98] sm:$0xf]
    %v4147 = vld [vmem:[%s6 + $0x9c] sm:$0xf]
    %v4149 = vrot.slane %v3597, 1
    %v4154 = vunpack.c.l.b16 %v4144
    %v4155 = vunpack.c.l.b16 %v4145
    %v4156 = vunpack.c.l.b16 %v4146
    %v4157 = vunpack.c.l.b16 %v4147
    %v4158 = vpack.c.b16 %v4155, %v4154
    %v4159 = vpack.c.b16 %v4157, %v4156
    %v4163 = vsel %vm277, %v4149, 0
    %4165 = vmatprep.subr.bf16.mxu0 0
    %4166 = vmatpush1.bf16.msra.mxu0 %v4158
    %4167 = vmatprep.subr.bf16.mxu0 0
    %4168 = vmatpush1.bf16.msra.mxu0 %v4159
    %4169 = vmatprep.subr.bf16.mxu0 0
    %4170 = vmatpush1.bf16.msra.mxu0 0
    %4171 = vmatprep.subr.bf16.mxu0 0
    %4172 = vmatpush1.bf16.msra.mxu0 0
    %4173 = vmatprep.subr.bf16.mxu0 0
    %4174 = vmatpush1.bf16.msra.mxu0 0
    %4175 = vmatprep.subr.bf16.mxu0 0
    %4176 = vmatpush1.bf16.msra.mxu0 0
    %4177 = vmatprep.subr.bf16.mxu0 0
    %4178 = vmatpush1.bf16.msra.mxu0 0
    %4179 = vmatprep.subr.bf16.mxu0 0
    %4180 = vmatpush1.bf16.msra.mxu0 0
    %4181 = vmatprep.subr.bf16.mxu0 0
    %4182 = vmatpush1.bf16.msra.mxu0 0
    %4183 = vmatprep.subr.bf16.mxu0 0
    %4184 = vmatpush1.bf16.msra.mxu0 0
    %4185 = vmatprep.subr.bf16.mxu0 0
    %4186 = vmatpush1.bf16.msra.mxu0 0
    %4187 = vmatprep.subr.bf16.mxu0 0
    %4188 = vmatpush1.bf16.msra.mxu0 0
    %4189 = vmatprep.subr.bf16.mxu0 0
    %4190 = vmatpush1.bf16.msra.mxu0 0
    %4191 = vmatprep.subr.bf16.mxu0 0
    %4192 = vmatpush1.bf16.msra.mxu0 0
    %4193 = vmatprep.subr.bf16.mxu0 0
    %4194 = vmatpush1.bf16.msra.mxu0 0
    %4195 = vmatprep.subr.bf16.mxu0 0
    %4196 = vmatpush1.bf16.msra.mxu0 0
    %4197 = vmatprep.mubr.bf16.mxu0 0
    %4198 = vmatmul.mubr.bf16.gmra.mrb[0].mxu0 %v4163
    %v4199 = vpop.f32.mrb[0].mxu0
    %v4200 = vadd.f32 0.0, %v4199
    %v4201 = vpop.f32.mrb[0].mxu0
    %v4202 = vpop.f32.mrb[0].mxu0
    %v4203 = vpop.f32.mrb[0].mxu0
    %4204 = vdwg.mxu0
    %v4205 = vadd.f32 %v4143, %v4200
    %v4206 = vld [vmem:[%s6 + $0xa0] sm:$0xf]
    %v4207 = vld [vmem:[%s6 + $0xa4] sm:$0xf]
    %v4208 = vld [vmem:[%s6 + $0xa8] sm:$0xf]
    %v4209 = vld [vmem:[%s6 + $0xac] sm:$0xf]
    %v4210 = vrot.slane %v3597, 2
    %v4215 = vunpack.c.l.b16 %v4206
    %v4216 = vunpack.c.l.b16 %v4207
    %v4217 = vunpack.c.l.b16 %v4208
    %v4218 = vunpack.c.l.b16 %v4209
    %v4219 = vpack.c.b16 %v4216, %v4215
    %v4220 = vpack.c.b16 %v4218, %v4217
    %v4224 = vsel %vm277, %v4210, 0
    %4226 = vmatprep.subr.bf16.mxu0 0
    %4227 = vmatpush1.bf16.msra.mxu0 %v4219
    %4228 = vmatprep.subr.bf16.mxu0 0
    %4229 = vmatpush1.bf16.msra.mxu0 %v4220
    %4230 = vmatprep.subr.bf16.mxu0 0
    %4231 = vmatpush1.bf16.msra.mxu0 0
    %4232 = vmatprep.subr.bf16.mxu0 0
    %4233 = vmatpush1.bf16.msra.mxu0 0
    %4234 = vmatprep.subr.bf16.mxu0 0
    %4235 = vmatpush1.bf16.msra.mxu0 0
    %4236 = vmatprep.subr.bf16.mxu0 0
    %4237 = vmatpush1.bf16.msra.mxu0 0
    %4238 = vmatprep.subr.bf16.mxu0 0
    %4239 = vmatpush1.bf16.msra.mxu0 0
    %4240 = vmatprep.subr.bf16.mxu0 0
    %4241 = vmatpush1.bf16.msra.mxu0 0
    %4242 = vmatprep.subr.bf16.mxu0 0
    %4243 = vmatpush1.bf16.msra.mxu0 0
    %4244 = vmatprep.subr.bf16.mxu0 0
    %4245 = vmatpush1.bf16.msra.mxu0 0
    %4246 = vmatprep.subr.bf16.mxu0 0
    %4247 = vmatpush1.bf16.msra.mxu0 0
    %4248 = vmatprep.subr.bf16.mxu0 0
    %4249 = vmatpush1.bf16.msra.mxu0 0
    %4250 = vmatprep.subr.bf16.mxu0 0
    %4251 = vmatpush1.bf16.msra.mxu0 0
    %4252 = vmatprep.subr.bf16.mxu0 0
    %4253 = vmatpush1.bf16.msra.mxu0 0
    %4254 = vmatprep.subr.bf16.mxu0 0
    %4255 = vmatpush1.bf16.msra.mxu0 0
    %4256 = vmatprep.subr.bf16.mxu0 0
    %4257 = vmatpush1.bf16.msra.mxu0 0
    %4258 = vmatprep.mubr.bf16.mxu0 0
    %4259 = vmatmul.mubr.bf16.gmra.mrb[0].mxu0 %v4224
    %v4260 = vpop.f32.mrb[0].mxu0
    %v4261 = vadd.f32 0.0, %v4260
    %v4262 = vpop.f32.mrb[0].mxu0
    %v4263 = vpop.f32.mrb[0].mxu0
    %v4264 = vpop.f32.mrb[0].mxu0
    %4265 = vdwg.mxu0
    %v4266 = vadd.f32 %v4205, %v4261
    %v4267 = vld [vmem:[%s6 + $0xb0] sm:$0xf]
    %v4268 = vld [vmem:[%s6 + $0xb4] sm:$0xf]
    %v4269 = vld [vmem:[%s6 + $0xb8] sm:$0xf]
    %v4270 = vld [vmem:[%s6 + $0xbc] sm:$0xf]
    %v4271 = vrot.slane %v3597, 3
    %v4276 = vunpack.c.l.b16 %v4267
    %v4277 = vunpack.c.l.b16 %v4268
    %v4278 = vunpack.c.l.b16 %v4269
    %v4279 = vunpack.c.l.b16 %v4270
    %v4280 = vpack.c.b16 %v4277, %v4276
    %v4281 = vpack.c.b16 %v4279, %v4278
    %v4285 = vsel %vm277, %v4271, 0
    %4287 = vmatprep.subr.bf16.mxu0 0
    %4288 = vmatpush1.bf16.msra.mxu0 %v4280
    %4289 = vmatprep.subr.bf16.mxu0 0
    %4290 = vmatpush1.bf16.msra.mxu0 %v4281
    %4291 = vmatprep.subr.bf16.mxu0 0
    %4292 = vmatpush1.bf16.msra.mxu0 0
    %4293 = vmatprep.subr.bf16.mxu0 0
    %4294 = vmatpush1.bf16.msra.mxu0 0
    %4295 = vmatprep.subr.bf16.mxu0 0
    %4296 = vmatpush1.bf16.msra.mxu0 0
    %4297 = vmatprep.subr.bf16.mxu0 0
    %4298 = vmatpush1.bf16.msra.mxu0 0
    %4299 = vmatprep.subr.bf16.mxu0 0
    %4300 = vmatpush1.bf16.msra.mxu0 0
    %4301 = vmatprep.subr.bf16.mxu0 0
    %4302 = vmatpush1.bf16.msra.mxu0 0
    %4303 = vmatprep.subr.bf16.mxu0 0
    %4304 = vmatpush1.bf16.msra.mxu0 0
    %4305 = vmatprep.subr.bf16.mxu0 0
    %4306 = vmatpush1.bf16.msra.mxu0 0
    %4307 = vmatprep.subr.bf16.mxu0 0
    %4308 = vmatpush1.bf16.msra.mxu0 0
    %4309 = vmatprep.subr.bf16.mxu0 0
    %4310 = vmatpush1.bf16.msra.mxu0 0
    %4311 = vmatprep.subr.bf16.mxu0 0
    %4312 = vmatpush1.bf16.msra.mxu0 0
    %4313 = vmatprep.subr.bf16.mxu0 0
    %4314 = vmatpush1.bf16.msra.mxu0 0
    %4315 = vmatprep.subr.bf16.mxu0 0
    %4316 = vmatpush1.bf16.msra.mxu0 0
    %4317 = vmatprep.subr.bf16.mxu0 0
    %4318 = vmatpush1.bf16.msra.mxu0 0
    %4319 = vmatprep.mubr.bf16.mxu0 0
    %4320 = vmatmul.mubr.bf16.gmra.mrb[0].mxu0 %v4285
    %v4321 = vpop.f32.mrb[0].mxu0
    %v4322 = vadd.f32 0.0, %v4321
    %v4323 = vpop.f32.mrb[0].mxu0
    %v4324 = vpop.f32.mrb[0].mxu0
    %v4325 = vpop.f32.mrb[0].mxu0
    %4326 = vdwg.mxu0
    %v4327 = vadd.f32 %v4266, %v4322
    %v4328 = vld [vmem:[%s6 + $0xc0] sm:$0xf]
    %v4329 = vld [vmem:[%s6 + $0xc4] sm:$0xf]
    %v4330 = vld [vmem:[%s6 + $0xc8] sm:$0xf]
    %v4331 = vld [vmem:[%s6 + $0xcc] sm:$0xf]
    %v4332 = vrot.slane %v3597, 4
    %v4337 = vunpack.c.l.b16 %v4328
    %v4338 = vunpack.c.l.b16 %v4329
    %v4339 = vunpack.c.l.b16 %v4330
    %v4340 = vunpack.c.l.b16 %v4331
    %v4341 = vpack.c.b16 %v4338, %v4337
    %v4342 = vpack.c.b16 %v4340, %v4339
    %v4346 = vsel %vm277, %v4332, 0
    %4348 = vmatprep.subr.bf16.mxu0 0
    %4349 = vmatpush1.bf16.msra.mxu0 %v4341
    %4350 = vmatprep.subr.bf16.mxu0 0
    %4351 = vmatpush1.bf16.msra.mxu0 %v4342
    %4352 = vmatprep.subr.bf16.mxu0 0
    %4353 = vmatpush1.bf16.msra.mxu0 0
    %4354 = vmatprep.subr.bf16.mxu0 0
    %4355 = vmatpush1.bf16.msra.mxu0 0
    %4356 = vmatprep.subr.bf16.mxu0 0
    %4357 = vmatpush1.bf16.msra.mxu0 0
    %4358 = vmatprep.subr.bf16.mxu0 0
    %4359 = vmatpush1.bf16.msra.mxu0 0
    %4360 = vmatprep.subr.bf16.mxu0 0
    %4361 = vmatpush1.bf16.msra.mxu0 0
    %4362 = vmatprep.subr.bf16.mxu0 0
    %4363 = vmatpush1.bf16.msra.mxu0 0
    %4364 = vmatprep.subr.bf16.mxu0 0
    %4365 = vmatpush1.bf16.msra.mxu0 0
    %4366 = vmatprep.subr.bf16.mxu0 0
    %4367 = vmatpush1.bf16.msra.mxu0 0
    %4368 = vmatprep.subr.bf16.mxu0 0
    %4369 = vmatpush1.bf16.msra.mxu0 0
    %4370 = vmatprep.subr.bf16.mxu0 0
    %4371 = vmatpush1.bf16.msra.mxu0 0
    %4372 = vmatprep.subr.bf16.mxu0 0
    %4373 = vmatpush1.bf16.msra.mxu0 0
    %4374 = vmatprep.subr.bf16.mxu0 0
    %4375 = vmatpush1.bf16.msra.mxu0 0
    %4376 = vmatprep.subr.bf16.mxu0 0
    %4377 = vmatpush1.bf16.msra.mxu0 0
    %4378 = vmatprep.subr.bf16.mxu0 0
    %4379 = vmatpush1.bf16.msra.mxu0 0
    %4380 = vmatprep.mubr.bf16.mxu0 0
    %4381 = vmatmul.mubr.bf16.gmra.mrb[0].mxu0 %v4346
    %v4382 = vpop.f32.mrb[0].mxu0
    %v4383 = vadd.f32 0.0, %v4382
    %v4384 = vpop.f32.mrb[0].mxu0
    %v4385 = vpop.f32.mrb[0].mxu0
    %v4386 = vpop.f32.mrb[0].mxu0
    %4387 = vdwg.mxu0
    %v4388 = vadd.f32 %v4327, %v4383
    %v4389 = vld [vmem:[%s6 + $0xd0] sm:$0xf]
    %v4390 = vld [vmem:[%s6 + $0xd4] sm:$0xf]
    %v4391 = vld [vmem:[%s6 + $0xd8] sm:$0xf]
    %v4392 = vld [vmem:[%s6 + $0xdc] sm:$0xf]
    %v4393 = vrot.slane %v3597, 5
    %v4398 = vunpack.c.l.b16 %v4389
    %v4399 = vunpack.c.l.b16 %v4390
    %v4400 = vunpack.c.l.b16 %v4391
    %v4401 = vunpack.c.l.b16 %v4392
    %v4402 = vpack.c.b16 %v4399, %v4398
    %v4403 = vpack.c.b16 %v4401, %v4400
    %v4407 = vsel %vm277, %v4393, 0
    %4409 = vmatprep.subr.bf16.mxu0 0
    %4410 = vmatpush1.bf16.msra.mxu0 %v4402
    %4411 = vmatprep.subr.bf16.mxu0 0
    %4412 = vmatpush1.bf16.msra.mxu0 %v4403
    %4413 = vmatprep.subr.bf16.mxu0 0
    %4414 = vmatpush1.bf16.msra.mxu0 0
    %4415 = vmatprep.subr.bf16.mxu0 0
    %4416 = vmatpush1.bf16.msra.mxu0 0
    %4417 = vmatprep.subr.bf16.mxu0 0
    %4418 = vmatpush1.bf16.msra.mxu0 0
    %4419 = vmatprep.subr.bf16.mxu0 0
    %4420 = vmatpush1.bf16.msra.mxu0 0
    %4421 = vmatprep.subr.bf16.mxu0 0
    %4422 = vmatpush1.bf16.msra.mxu0 0
    %4423 = vmatprep.subr.bf16.mxu0 0
    %4424 = vmatpush1.bf16.msra.mxu0 0
    %4425 = vmatprep.subr.bf16.mxu0 0
    %4426 = vmatpush1.bf16.msra.mxu0 0
    %4427 = vmatprep.subr.bf16.mxu0 0
    %4428 = vmatpush1.bf16.msra.mxu0 0
    %4429 = vmatprep.subr.bf16.mxu0 0
    %4430 = vmatpush1.bf16.msra.mxu0 0
    %4431 = vmatprep.subr.bf16.mxu0 0
    %4432 = vmatpush1.bf16.msra.mxu0 0
    %4433 = vmatprep.subr.bf16.mxu0 0
    %4434 = vmatpush1.bf16.msra.mxu0 0
    %4435 = vmatprep.subr.bf16.mxu0 0
    %4436 = vmatpush1.bf16.msra.mxu0 0
    %4437 = vmatprep.subr.bf16.mxu0 0
    %4438 = vmatpush1.bf16.msra.mxu0 0
    %4439 = vmatprep.subr.bf16.mxu0 0
    %4440 = vmatpush1.bf16.msra.mxu0 0
    %4441 = vmatprep.mubr.bf16.mxu0 0
    %4442 = vmatmul.mubr.bf16.gmra.mrb[0].mxu0 %v4407
    %v4443 = vpop.f32.mrb[0].mxu0
    %v4444 = vadd.f32 0.0, %v4443
    %v4445 = vpop.f32.mrb[0].mxu0
    %v4446 = vpop.f32.mrb[0].mxu0
    %v4447 = vpop.f32.mrb[0].mxu0
    %4448 = vdwg.mxu0
    %v4449 = vadd.f32 %v4388, %v4444
    %v4450 = vld [vmem:[%s6 + $0xe0] sm:$0xf]
    %v4451 = vld [vmem:[%s6 + $0xe4] sm:$0xf]
    %v4452 = vld [vmem:[%s6 + $0xe8] sm:$0xf]
    %v4453 = vld [vmem:[%s6 + $0xec] sm:$0xf]
    %v4454 = vrot.slane %v3597, 6
    %v4459 = vunpack.c.l.b16 %v4450
    %v4460 = vunpack.c.l.b16 %v4451
    %v4461 = vunpack.c.l.b16 %v4452
    %v4462 = vunpack.c.l.b16 %v4453
    %v4463 = vpack.c.b16 %v4460, %v4459
    %v4464 = vpack.c.b16 %v4462, %v4461
    %v4468 = vsel %vm277, %v4454, 0
    %4470 = vmatprep.subr.bf16.mxu0 0
    %4471 = vmatpush1.bf16.msra.mxu0 %v4463
    %4472 = vmatprep.subr.bf16.mxu0 0
    %4473 = vmatpush1.bf16.msra.mxu0 %v4464
    %4474 = vmatprep.subr.bf16.mxu0 0
    %4475 = vmatpush1.bf16.msra.mxu0 0
    %4476 = vmatprep.subr.bf16.mxu0 0
    %4477 = vmatpush1.bf16.msra.mxu0 0
    %4478 = vmatprep.subr.bf16.mxu0 0
    %4479 = vmatpush1.bf16.msra.mxu0 0
    %4480 = vmatprep.subr.bf16.mxu0 0
    %4481 = vmatpush1.bf16.msra.mxu0 0
    %4482 = vmatprep.subr.bf16.mxu0 0
    %4483 = vmatpush1.bf16.msra.mxu0 0
    %4484 = vmatprep.subr.bf16.mxu0 0
    %4485 = vmatpush1.bf16.msra.mxu0 0
    %4486 = vmatprep.subr.bf16.mxu0 0
    %4487 = vmatpush1.bf16.msra.mxu0 0
    %4488 = vmatprep.subr.bf16.mxu0 0
    %4489 = vmatpush1.bf16.msra.mxu0 0
    %4490 = vmatprep.subr.bf16.mxu0 0
    %4491 = vmatpush1.bf16.msra.mxu0 0
    %4492 = vmatprep.subr.bf16.mxu0 0
    %4493 = vmatpush1.bf16.msra.mxu0 0
    %4494 = vmatprep.subr.bf16.mxu0 0
    %4495 = vmatpush1.bf16.msra.mxu0 0
    %4496 = vmatprep.subr.bf16.mxu0 0
    %4497 = vmatpush1.bf16.msra.mxu0 0
    %4498 = vmatprep.subr.bf16.mxu0 0
    %4499 = vmatpush1.bf16.msra.mxu0 0
    %4500 = vmatprep.subr.bf16.mxu0 0
    %4501 = vmatpush1.bf16.msra.mxu0 0
    %4502 = vmatprep.mubr.bf16.mxu0 0
    %4503 = vmatmul.mubr.bf16.gmra.mrb[0].mxu0 %v4468
    %v4504 = vpop.f32.mrb[0].mxu0
    %v4505 = vadd.f32 0.0, %v4504
    %v4506 = vpop.f32.mrb[0].mxu0
    %v4507 = vpop.f32.mrb[0].mxu0
    %v4508 = vpop.f32.mrb[0].mxu0
    %4509 = vdwg.mxu0
    %v4510 = vadd.f32 %v4449, %v4505
    %v4511 = vld [vmem:[%s6 + $0xf0] sm:$0xf]
    %v4512 = vld [vmem:[%s6 + $0xf4] sm:$0xf]
    %v4513 = vld [vmem:[%s6 + $0xf8] sm:$0xf]
    %v4514 = vld [vmem:[%s6 + $0xfc] sm:$0xf]
    %v4515 = vrot.slane %v3597, 7
    %v4520 = vunpack.c.l.b16 %v4511
    %v4521 = vunpack.c.l.b16 %v4512
    %v4522 = vunpack.c.l.b16 %v4513
    %v4523 = vunpack.c.l.b16 %v4514
    %v4524 = vpack.c.b16 %v4521, %v4520
    %v4525 = vpack.c.b16 %v4523, %v4522
    %v4529 = vsel %vm277, %v4515, 0
    %4531 = vmatprep.subr.bf16.mxu0 0
    %4532 = vmatpush1.bf16.msra.mxu0 %v4524
    %4533 = vmatprep.subr.bf16.mxu0 0
    %4534 = vmatpush1.bf16.msra.mxu0 %v4525
    %4535 = vmatprep.subr.bf16.mxu0 0
    %4536 = vmatpush1.bf16.msra.mxu0 0
    %4537 = vmatprep.subr.bf16.mxu0 0
    %4538 = vmatpush1.bf16.msra.mxu0 0
    %4539 = vmatprep.subr.bf16.mxu0 0
    %4540 = vmatpush1.bf16.msra.mxu0 0
    %4541 = vmatprep.subr.bf16.mxu0 0
    %4542 = vmatpush1.bf16.msra.mxu0 0
    %4543 = vmatprep.subr.bf16.mxu0 0
    %4544 = vmatpush1.bf16.msra.mxu0 0
    %4545 = vmatprep.subr.bf16.mxu0 0
    %4546 = vmatpush1.bf16.msra.mxu0 0
    %4547 = vmatprep.subr.bf16.mxu0 0
    %4548 = vmatpush1.bf16.msra.mxu0 0
    %4549 = vmatprep.subr.bf16.mxu0 0
    %4550 = vmatpush1.bf16.msra.mxu0 0
    %4551 = vmatprep.subr.bf16.mxu0 0
    %4552 = vmatpush1.bf16.msra.mxu0 0
    %4553 = vmatprep.subr.bf16.mxu0 0
    %4554 = vmatpush1.bf16.msra.mxu0 0
    %4555 = vmatprep.subr.bf16.mxu0 0
    %4556 = vmatpush1.bf16.msra.mxu0 0
    %4557 = vmatprep.subr.bf16.mxu0 0
    %4558 = vmatpush1.bf16.msra.mxu0 0
    %4559 = vmatprep.subr.bf16.mxu0 0
    %4560 = vmatpush1.bf16.msra.mxu0 0
    %4561 = vmatprep.subr.bf16.mxu0 0
    %4562 = vmatpush1.bf16.msra.mxu0 0
    %4563 = vmatprep.mubr.bf16.mxu0 0
    %4564 = vmatmul.mubr.bf16.gmra.mrb[0].mxu0 %v4529
    %v4565 = vpop.f32.mrb[0].mxu0
    %v4566 = vadd.f32 0.0, %v4565
    %v4567 = vpop.f32.mrb[0].mxu0
    %v4568 = vpop.f32.mrb[0].mxu0
    %v4569 = vpop.f32.mrb[0].mxu0
    %4570 = vdwg.mxu0
    %v4571 = vadd.f32 %v4510, %v4566
    %v4572 = vld [vmem:[%s7] sm:$0x1]
    %v4574 = vlaneseq
    %v4575 = vshrl.u32 %v4574, 7
    %v4576 = vsub.s32 0, %v4575
    %v4577 = vrot.slane %v4572, %v4576
    %v4579 = vadd.f32 %v4571, %v4577
    %v4580 = vmax.f32 %v4579, 0.0
    %v4581 = vpack.c.bf16 %v4580, %v4580
    %v4582 = vld [vmem:[%s8] sm:$0xf]
    %v4583 = vld [vmem:[%s8 + $0x4] sm:$0xf]
    %v4584 = vld [vmem:[%s8 + $0x8] sm:$0xf]
    %v4585 = vld [vmem:[%s8 + $0xc] sm:$0xf]
    %v4586 = vld [vmem:[%s8 + $0x10] sm:$0xf]
    %v4587 = vld [vmem:[%s8 + $0x14] sm:$0xf]
    %v4588 = vld [vmem:[%s8 + $0x18] sm:$0xf]
    %v4589 = vld [vmem:[%s8 + $0x1c] sm:$0xf]
    %v4590 = vld [vmem:[%s8 + $0x20] sm:$0xf]
    %v4591 = vld [vmem:[%s8 + $0x24] sm:$0xf]
    %v4592 = vld [vmem:[%s8 + $0x28] sm:$0xf]
    %v4593 = vld [vmem:[%s8 + $0x2c] sm:$0xf]
    %v4594 = vld [vmem:[%s8 + $0x30] sm:$0xf]
    %v4595 = vld [vmem:[%s8 + $0x34] sm:$0xf]
    %v4596 = vld [vmem:[%s8 + $0x38] sm:$0xf]
    %v4597 = vld [vmem:[%s8 + $0x3c] sm:$0xf]
    %v4598 = vld [vmem:[%s9] sm:$0x1]
    %v4600 = vlaneseq
    %v4601 = vshrl.u32 %v4600, 7
    %v4602 = vsub.s32 0, %v4601
    %v4603 = vrot.slane %v4598, %v4602
    %v4621 = vunpack.c.l.b16 %v4582
    %v4622 = vunpack.c.l.b16 %v4583
    %v4623 = vunpack.c.l.b16 %v4584
    %v4624 = vunpack.c.l.b16 %v4585
    %v4625 = vunpack.c.l.b16 %v4586
    %v4626 = vunpack.c.l.b16 %v4587
    %v4627 = vunpack.c.l.b16 %v4588
    %v4628 = vunpack.c.l.b16 %v4589
    %v4629 = vunpack.c.l.b16 %v4590
    %v4630 = vunpack.c.l.b16 %v4591
    %v4631 = vunpack.c.l.b16 %v4592
    %v4632 = vunpack.c.l.b16 %v4593
    %v4633 = vunpack.c.l.b16 %v4594
    %v4634 = vunpack.c.l.b16 %v4595
    %v4635 = vunpack.c.l.b16 %v4596
    %v4636 = vunpack.c.l.b16 %v4597
    %v4637 = vpack.c.b16 %v4622, %v4621
    %v4638 = vpack.c.b16 %v4624, %v4623
    %v4639 = vpack.c.b16 %v4626, %v4625
    %v4640 = vpack.c.b16 %v4628, %v4627
    %v4641 = vpack.c.b16 %v4630, %v4629
    %v4642 = vpack.c.b16 %v4632, %v4631
    %v4643 = vpack.c.b16 %v4634, %v4633
    %v4644 = vpack.c.b16 %v4636, %v4635
    %4653 = vmatprep.subr.bf16.mxu0 0
    %4654 = vmatpush1.bf16.msra.mxu0 %v4637
    %4655 = vmatprep.subr.bf16.mxu0 0
    %4656 = vmatpush1.bf16.msra.mxu0 %v4638
    %4657 = vmatprep.subr.bf16.mxu0 0
    %4658 = vmatpush1.bf16.msra.mxu0 %v4639
    %4659 = vmatprep.subr.bf16.mxu0 0
    %4660 = vmatpush1.bf16.msra.mxu0 %v4640
    %4661 = vmatprep.subr.bf16.mxu0 0
    %4662 = vmatpush1.bf16.msra.mxu0 %v4641
    %4663 = vmatprep.subr.bf16.mxu0 0
    %4664 = vmatpush1.bf16.msra.mxu0 %v4642
    %4665 = vmatprep.subr.bf16.mxu0 0
    %4666 = vmatpush1.bf16.msra.mxu0 %v4643
    %4667 = vmatprep.subr.bf16.mxu0 0
    %4668 = vmatpush1.bf16.msra.mxu0 %v4644
    %4669 = vmatprep.subr.bf16.mxu0 0
    %4670 = vmatpush1.bf16.msra.mxu0 0
    %4671 = vmatprep.subr.bf16.mxu0 0
    %4672 = vmatpush1.bf16.msra.mxu0 0
    %4673 = vmatprep.subr.bf16.mxu0 0
    %4674 = vmatpush1.bf16.msra.mxu0 0
    %4675 = vmatprep.subr.bf16.mxu0 0
    %4676 = vmatpush1.bf16.msra.mxu0 0
    %4677 = vmatprep.subr.bf16.mxu0 0
    %4678 = vmatpush1.bf16.msra.mxu0 0
    %4679 = vmatprep.subr.bf16.mxu0 0
    %4680 = vmatpush1.bf16.msra.mxu0 0
    %4681 = vmatprep.subr.bf16.mxu0 0
    %4682 = vmatpush1.bf16.msra.mxu0 0
    %4683 = vmatprep.subr.bf16.mxu0 0
    %4684 = vmatpush1.bf16.msra.mxu0 0
    %4685 = vmatprep.mubr.bf16.mxu0 0
    %4686 = vmatmul.mubr.bf16.gmra.mrb[0].mxu0 %v4581
    %v4687 = vpop.f32.mrb[0].mxu0
    %v4688 = vadd.f32 %v4603, %v4687
    %v4689 = vpop.f32.mrb[0].mxu0
    %v4690 = vpop.f32.mrb[0].mxu0
    %v4691 = vpop.f32.mrb[0].mxu0
    %4692 = vdwg.mxu0
    %4693 = vst [vmem:[#allocation2] sm:$0x3] %v4688
    // Predicated region
    $region42: #{anemianet_forward.1} parent=1 // pred_check
      _
    $region43: #{anemianet_forward.1} parent=1 // pred_check_branch
      %4695 = sbr.rel (0) target = $region45
    $region44: #{anemianet_forward.1} parent=1 // pred_region
      %s4697 = ssub.s32 32, 32
      %4698 = vsyncadd [#allocation3], %s4697
      %s4700 = sshll.u32 [#allocation2], 4
      %s4701 = int_to_ptr.vmem [resolvable:$true] %s4700
      %4703 = dma.vmem_to_hbm [thread:$0]  %s4701, 32, %s10, [#allocation3]
    $region45: #{anemianet_forward.1} parent=1 // pred_fallthru
      _
    // Predicated region
    $region46: #{anemianet_forward.1} parent=1 // pred_check
      _
    $region47: #{anemianet_forward.1} parent=1 // pred_check_branch
      %4705 = sbr.rel (0) target = $region49
    $region48: #{anemianet_forward.1} parent=1 // pred_region
      %4706 = dma.done [#allocation3], 32
    $region49: #{anemianet_forward.1} parent=1 // pred_fallthru
      _
    %4707 = vsyncpa [#allocation3], 1

</llo_original>
